<compile_context>
chip_gen: v5e
topology: v5e:2x2
jax: 0.10.0
libtpu: 0.0.40
codegen_flags: <defaults>
</compile_context>

<pallas_src>
import jax
import jax.numpy as jnp
import numpy as np
from jax.experimental import pallas as pl
from jax.experimental.pallas import tpu as pltpu


# ----------------------------------------------------------------------------
# Fused forward kernel: one grid step == one batch tile of Bt samples
# ----------------------------------------------------------------------------
def _convnet_kernel(x_ref, w1_ref, b1_ref, w2_ref, b2_ref, w3_ref, b3_ref,
                    w4_ref, b4_ref, o_ref):
    f32 = jnp.float32
    bf16 = jnp.bfloat16

    # conv1 as dense GEMM: (Bt, 18) @ (18, 576)
    h = jnp.dot(x_ref[...], w1_ref[...], preferred_element_type=f32)
    h = jnp.maximum(h + b1_ref[...], 0.0).astype(bf16)          # (Bt, 576)

    # conv2 as dense GEMM: (Bt, 576) @ (576, 1152)  -- the bulk of the FLOPs
    h = jnp.dot(h, w2_ref[...], preferred_element_type=f32)
    h = jnp.maximum(h + b2_ref[...], 0.0).astype(bf16)          # (Bt, 1152)

    # conv3 as dense GEMM: (Bt, 1152) @ (1152, 128); keep f32 for the tiny lin1
    h = jnp.dot(h, w3_ref[...], preferred_element_type=f32)
    h = jnp.maximum(h + b3_ref[...], 0.0)                       # (Bt, 128) f32

    # lin1 (flatten order folded into w4 on the host), computed directly in the
    # lane-dense (1, Bt) orientation: (1, 128) x (Bt, 128)^T -> (1, Bt).
    y = jax.lax.dot_general(w4_ref[...], h,
                            (((1,), (1,)), ((), ())),
                            preferred_element_type=f32)          # (1, Bt)
    o_ref[0] = y + b4_ref[0]                                     # scalar bias (SMEM)


# ----------------------------------------------------------------------------
# One-time host-side weight re-layout: fold each conv into a dense operator
# over the NHWC-flattened activation (built exactly via one-hot basis convs).
# ----------------------------------------------------------------------------
def preprocess_params(params):
    def dense_conv_op(w_oihw, b, H, W, pad):
        w = np.asarray(w_oihw, dtype=np.float32)
        O, C, KH, KW = w.shape
        d_in = H * W * C
        # One-hot basis in NHWC flatten order (h*W*C + w*C + c), conv in NCHW.
        basis = np.eye(d_in, dtype=np.float32).reshape(d_in, H, W, C)
        basis = jnp.asarray(basis.transpose(0, 3, 1, 2))          # (d_in, C, H, W)
        y = jax.lax.conv_general_dilated(
            basis, jnp.asarray(w), (1, 1), ((pad, pad), (pad, pad)),
            dimension_numbers=("NCHW", "OIHW", "NCHW"))
        Ho, Wo = int(y.shape[2]), int(y.shape[3])
        op = np.asarray(jnp.transpose(y, (0, 2, 3, 1))).reshape(d_in, Ho * Wo * O)
        bias = np.tile(np.asarray(b, np.float32), Ho * Wo).reshape(1, Ho * Wo * O)
        return (jnp.asarray(op, jnp.bfloat16),
                jnp.asarray(bias, jnp.float32), Ho, Wo)

    w1, b1, H1, W1 = dense_conv_op(params["conv1_w"], params["conv1_b"], 3, 3, 1)
    w2, b2, H2, W2 = dense_conv_op(params["conv2_w"], params["conv2_b"], H1, W1, 1)
    w3, b3, H3, W3 = dense_conv_op(params["conv3_w"], params["conv3_b"], H2, W2, 1)

    # lin1 weight: fold PyTorch's NCHW flatten (c,h,w) into the kernel's NHWC
    # column order (h,w,c) so conv3's output needs no permutation in-kernel.
    co = np.asarray(params["lin1_w"], np.float32).shape[1] // (H3 * W3)
    wl = np.asarray(params["lin1_w"], np.float32).reshape(co, H3, W3)   # (c,h,w)
    w4 = np.transpose(wl, (1, 2, 0)).reshape(1, H3 * W3 * co)           # (h,w,c)

    return {
        "w1": w1, "b1": b1,        # (18, 576) bf16, (1, 576) f32
        "w2": w2, "b2": b2,        # (576, 1152) bf16, (1, 1152) f32
        "w3": w3, "b3": b3,        # (1152, 128) bf16, (1, 128) f32
        "w4": jnp.asarray(w4, jnp.float32),                              # (1, 128)
        "b4": jnp.asarray(np.asarray(params["lin1_b"], np.float32).reshape(1)),
    }


# ----------------------------------------------------------------------------
# Wrapper: batch-tiled grid, lane-dense output
# ----------------------------------------------------------------------------
def _round_up(n, m):
    return ((n + m - 1) // m) * m


def convnet_forward(kparams, x_nchw, block_b=256):
    B = x_nchw.shape[0]
    Bt = min(block_b, _round_up(B, 8))        # batch tile (MXU M dimension)
    G = (B + Bt - 1) // Bt                    # grid length (>=2 blocks fills both v7x TCs)
    Bpad = G * Bt

    d1 = kparams["w1"].shape[0]               # 18
    n1 = kparams["w1"].shape[1]               # 576
    n2 = kparams["w2"].shape[1]               # 1152
    n3 = kparams["w3"].shape[1]               # 128

    # NCHW -> NHWC flatten (matches the dense operators' input ordering).
    x = jnp.transpose(x_nchw, (0, 2, 3, 1)).reshape(B, d1)
    if Bpad != B:
        x = jnp.pad(x, ((0, Bpad - B), (0, 0)))
    x = x.astype(jnp.bfloat16)

    out = pl.pallas_call(
        _convnet_kernel,
        out_shape=jax.ShapeDtypeStruct((G, 1, Bt), jnp.float32),
        grid=(G,),
        in_specs=[
            pl.BlockSpec((Bt, d1), lambda g: (g, 0)),            # x batch tile
            pl.BlockSpec((d1, n1), lambda g: (0, 0)),            # conv1 dense op
            pl.BlockSpec((1, n1), lambda g: (0, 0)),             # conv1 bias
            pl.BlockSpec((n1, n2), lambda g: (0, 0)),            # conv2 dense op
            pl.BlockSpec((1, n2), lambda g: (0, 0)),             # conv2 bias
            pl.BlockSpec((n2, n3), lambda g: (0, 0)),            # conv3 dense op
            pl.BlockSpec((1, n3), lambda g: (0, 0)),             # conv3 bias
            pl.BlockSpec((1, n3), lambda g: (0, 0)),             # lin1 weights (permuted)
            pl.BlockSpec(memory_space=pltpu.MemorySpace.SMEM),   # lin1 bias scalar
        ],
        out_specs=pl.BlockSpec((1, 1, Bt), lambda g: (g, 0, 0)),  # lane-dense row
        compiler_params=pltpu.CompilerParams(
            dimension_semantics=("parallel",),
            vmem_limit_bytes=32 * 1024 * 1024,
        ),
    )(x, kparams["w1"], kparams["b1"], kparams["w2"], kparams["b2"],
      kparams["w3"], kparams["b3"], kparams["w4"], kparams["b4"])

    return out.reshape(Bpad, 1)[:B]


# ----------------------------------------------------------------------------
# Parameter init (deterministic, PyTorch-default-style) and pure-JAX reference
# ----------------------------------------------------------------------------
def init_params(key):
    ks = jax.random.split(key, 8)

    def u(k, shape, fan_in):
        bound = 1.0 / np.sqrt(fan_in)
        return jax.random.uniform(k, shape, jnp.float32, -bound, bound)

    return {
        "conv1_w": u(ks[0], (64, 2, 3, 3), 2 * 3 * 3),
        "conv1_b": u(ks[1], (64,), 2 * 3 * 3),
        "conv2_w": u(ks[2], (128, 64, 3, 3), 64 * 3 * 3),
        "conv2_b": u(ks[3], (128,), 64 * 3 * 3),
        "conv3_w": u(ks[4], (8, 128, 2, 2), 128 * 2 * 2),
        "conv3_b": u(ks[5], (8,), 128 * 2 * 2),
        "lin1_w": u(ks[6], (1, 128), 128),
        "lin1_b": u(ks[7], (1,), 128),
    }


def reference_forward(params, x_nchw):
    """Pure-JAX f32 reference matching the PyTorch module semantics."""
    def conv(x, w, b, pad):
        y = jax.lax.conv_general_dilated(
            x, w, window_strides=(1, 1),
            padding=((pad, pad), (pad, pad)),
            dimension_numbers=("NCHW", "OIHW", "NCHW"))
        return jax.nn.relu(y + b[None, :, None, None])

    out = conv(x_nchw, params["conv1_w"], params["conv1_b"], 1)
    out = conv(out, params["conv2_w"], params["conv2_b"], 1)
    out = conv(out, params["conv3_w"], params["conv3_b"], 1)
    flat = out.reshape(out.shape[0], -1)
    return flat @ params["lin1_w"].T + params["lin1_b"]


if __name__ == "__main__":
    key = jax.random.PRNGKey(0)
    pkey, xkey, xkey2 = jax.random.split(key, 3)
    params = init_params(pkey)
    kparams = preprocess_params(params)       # one-time weight re-layout

    fwd = jax.jit(convnet_forward)

    # Small demo batch. Input (B, C, H, W) = (2, 2, 3, 3); H = W = 3 is forced
    # by Linear(128, 1) (conv3 with k=2, pad=1 gives 4x4, and 8*4*4 == 128).
    x_small = jax.random.normal(xkey, (2, 2, 3, 3), jnp.float32)
    y_small = jax.block_until_ready(fwd(kparams, x_small))
    assert y_small.shape == (2, 1) and y_small.dtype == jnp.float32
    np.testing.assert_allclose(np.asarray(y_small),
                               np.asarray(reference_forward(params, x_small)),
                               rtol=5e-2, atol=1e-2)   # bf16 datapath tolerance

    # Larger batch exercising the batch-tiled path: 2 grid blocks of Bt=256
    # (fills the MXU M dimension and uses both TensorCores on v7x).
    x_big = jax.random.normal(xkey2, (512, 2, 3, 3), jnp.float32)
    y_big = jax.block_until_ready(fwd(kparams, x_big))
    assert y_big.shape == (512, 1)
    np.testing.assert_allclose(np.asarray(y_big),
                               np.asarray(reference_forward(params, x_big)),
                               rtol=5e-2, atol=1e-2)

    print("KERNEL_OK")
</pallas_src>

<mosaic_0001>
module attributes {stable_mosaic.version = 11 : i64} {
  func.func @_convnet_kernel(%arg0: i32, %arg1: memref<8x18xbf16, #tpu.memory_space<vmem>>, %arg2: memref<18x576xbf16, #tpu.memory_space<vmem>>, %arg3: memref<1x576xf32, #tpu.memory_space<vmem>>, %arg4: memref<576x1152xbf16, #tpu.memory_space<vmem>>, %arg5: memref<1x1152xf32, #tpu.memory_space<vmem>>, %arg6: memref<1152x128xbf16, #tpu.memory_space<vmem>>, %arg7: memref<1x128xf32, #tpu.memory_space<vmem>>, %arg8: memref<1x128xf32, #tpu.memory_space<vmem>>, %arg9: memref<1xf32, #tpu.memory_space<smem>>, %arg10: memref<1x1x8xf32, #tpu.memory_space<vmem>>) attributes {dimension_semantics = [#tpu.dimension_semantics<parallel>], iteration_bounds = array<i64: 1>, scalar_prefetch = 0 : i64, scratch_operands = 0 : i64, tpu.core_type = #tpu.core_type<tc>, window_params = [{transform_indices = @transform_0, window_bounds = array<i64: 8, 18>}, {pipeline_mode = #tpu.pipeline_mode<synchronous>, transform_indices = @transform_1, window_bounds = array<i64: 18, 576>}, {pipeline_mode = #tpu.pipeline_mode<synchronous>, transform_indices = @transform_2, window_bounds = array<i64: 1, 576>}, {pipeline_mode = #tpu.pipeline_mode<synchronous>, transform_indices = @transform_3, window_bounds = array<i64: 576, 1152>}, {pipeline_mode = #tpu.pipeline_mode<synchronous>, transform_indices = @transform_4, window_bounds = array<i64: 1, 1152>}, {pipeline_mode = #tpu.pipeline_mode<synchronous>, transform_indices = @transform_5, window_bounds = array<i64: 1152, 128>}, {pipeline_mode = #tpu.pipeline_mode<synchronous>, transform_indices = @transform_6, window_bounds = array<i64: 1, 128>}, {pipeline_mode = #tpu.pipeline_mode<synchronous>, transform_indices = @transform_7, window_bounds = array<i64: 1, 128>}, {transform_indices = @transform_8, window_bounds = array<i64: 1>}, {transform_indices = @transform_9, window_bounds = array<i64: 1, 1, 8>}]} {
    %c0 = arith.constant 0 : index
    %c0_0 = arith.constant 0 : index
    %0 = vector.load %arg1[%c0, %c0_0] : memref<8x18xbf16, #tpu.memory_space<vmem>>, vector<8x18xbf16>
    %c0_1 = arith.constant 0 : index
    %c0_2 = arith.constant 0 : index
    %1 = vector.load %arg2[%c0_1, %c0_2] : memref<18x576xbf16, #tpu.memory_space<vmem>>, vector<18x576xbf16>
    %cst = arith.constant dense<0.000000e+00> : vector<8x576xf32>
    %2 = tpu.matmul %0, %1, %cst {dimension_numbers = #tpu.dot_dimension_numbers<[1], [0], [0], [1], [0, 0, 1, 1], [], []>} : vector<8x18xbf16>, vector<18x576xbf16>, vector<8x576xf32> -> vector<8x576xf32>
    %c0_3 = arith.constant 0 : index
    %c0_4 = arith.constant 0 : index
    %3 = vector.load %arg3[%c0_3, %c0_4] : memref<1x576xf32, #tpu.memory_space<vmem>>, vector<1x576xf32>
    %4 = vector.broadcast %3 : vector<1x576xf32> to vector<8x576xf32>
    %5 = arith.addf %2, %4 : vector<8x576xf32>
    %cst_5 = arith.constant 0.000000e+00 : f32
    %6 = vector.broadcast %cst_5 : f32 to vector<8x576xf32>
    %7 = arith.maximumf %5, %6 : vector<8x576xf32>
    %8 = arith.truncf %7 : vector<8x576xf32> to vector<8x576xbf16>
    %c0_6 = arith.constant 0 : index
    %c0_7 = arith.constant 0 : index
    %9 = vector.load %arg4[%c0_6, %c0_7] : memref<576x1152xbf16, #tpu.memory_space<vmem>>, vector<576x1152xbf16>
    %cst_8 = arith.constant dense<0.000000e+00> : vector<8x1152xf32>
    %10 = tpu.matmul %8, %9, %cst_8 {dimension_numbers = #tpu.dot_dimension_numbers<[1], [0], [0], [1], [0, 0, 1, 1], [], []>} : vector<8x576xbf16>, vector<576x1152xbf16>, vector<8x1152xf32> -> vector<8x1152xf32>
    %c0_9 = arith.constant 0 : index
    %c0_10 = arith.constant 0 : index
    %11 = vector.load %arg5[%c0_9, %c0_10] : memref<1x1152xf32, #tpu.memory_space<vmem>>, vector<1x1152xf32>
    %12 = vector.broadcast %11 : vector<1x1152xf32> to vector<8x1152xf32>
    %13 = arith.addf %10, %12 : vector<8x1152xf32>
    %cst_11 = arith.constant 0.000000e+00 : f32
    %14 = vector.broadcast %cst_11 : f32 to vector<8x1152xf32>
    %15 = arith.maximumf %13, %14 : vector<8x1152xf32>
    %16 = arith.truncf %15 : vector<8x1152xf32> to vector<8x1152xbf16>
    %c0_12 = arith.constant 0 : index
    %c0_13 = arith.constant 0 : index
    %17 = vector.load %arg6[%c0_12, %c0_13] : memref<1152x128xbf16, #tpu.memory_space<vmem>>, vector<1152x128xbf16>
    %cst_14 = arith.constant dense<0.000000e+00> : vector<8x128xf32>
    %18 = tpu.matmul %16, %17, %cst_14 {dimension_numbers = #tpu.dot_dimension_numbers<[1], [0], [0], [1], [0, 0, 1, 1], [], []>} : vector<8x1152xbf16>, vector<1152x128xbf16>, vector<8x128xf32> -> vector<8x128xf32>
    %c0_15 = arith.constant 0 : index
    %c0_16 = arith.constant 0 : index
    %19 = vector.load %arg7[%c0_15, %c0_16] : memref<1x128xf32, #tpu.memory_space<vmem>>, vector<1x128xf32>
    %20 = vector.broadcast %19 : vector<1x128xf32> to vector<8x128xf32>
    %21 = arith.addf %18, %20 : vector<8x128xf32>
    %cst_17 = arith.constant 0.000000e+00 : f32
    %22 = vector.broadcast %cst_17 : f32 to vector<8x128xf32>
    %23 = arith.maximumf %21, %22 : vector<8x128xf32>
    %c0_18 = arith.constant 0 : index
    %c0_19 = arith.constant 0 : index
    %24 = vector.load %arg8[%c0_18, %c0_19] : memref<1x128xf32, #tpu.memory_space<vmem>>, vector<1x128xf32>
    %cst_20 = arith.constant dense<0.000000e+00> : vector<1x8xf32>
    %25 = tpu.matmul %24, %23, %cst_20 {dimension_numbers = #tpu.dot_dimension_numbers<[1], [1], [0], [0], [0, 0, 1, 0], [], []>} : vector<1x128xf32>, vector<8x128xf32>, vector<1x8xf32> -> vector<1x8xf32>
    %c0_21 = arith.constant 0 : index
    %26 = memref.load %arg9[%c0_21] : memref<1xf32, #tpu.memory_space<smem>>
    %27 = vector.broadcast %26 : f32 to vector<1x8xf32>
    %28 = arith.addf %25, %27 : vector<1x8xf32>
    %c0_22 = arith.constant 0 : index
    %c0_23 = arith.constant 0 : index
    %c0_24 = arith.constant 0 : index
    %29 = vector.load %arg10[%c0_22, %c0_23, %c0_24] : memref<1x1x8xf32, #tpu.memory_space<vmem>>, vector<1x1x8xf32>
    %30 = vector.shape_cast %29 : vector<1x1x8xf32> to vector<1x8xf32>
    %31 = vector.shape_cast %28 : vector<1x8xf32> to vector<1x1x8xf32>
    tpu.vector_store %arg10[%c0_22, %c0_23, %c0_24], %31 {strides = array<i32>} : memref<1x1x8xf32, #tpu.memory_space<vmem>>, vector<1x1x8xf32>,
    return
  }
  func.func @transform_0(%arg0: i32) -> (i32, i32) {
    %c0_i32 = arith.constant 0 : i32
    %c0_i32_0 = arith.constant 0 : i32
    return %arg0, %c0_i32 : i32, i32
  }
  func.func @transform_1(%arg0: i32) -> (i32, i32) {
    %c0_i32 = arith.constant 0 : i32
    %c0_i32_0 = arith.constant 0 : i32
    %c0_i32_1 = arith.constant 0 : i32
    return %c0_i32, %c0_i32_0 : i32, i32
  }
  func.func @transform_2(%arg0: i32) -> (i32, i32) {
    %c0_i32 = arith.constant 0 : i32
    %c0_i32_0 = arith.constant 0 : i32
    %c0_i32_1 = arith.constant 0 : i32
    return %c0_i32, %c0_i32_0 : i32, i32
  }
  func.func @transform_3(%arg0: i32) -> (i32, i32) {
    %c0_i32 = arith.constant 0 : i32
    %c0_i32_0 = arith.constant 0 : i32
    %c0_i32_1 = arith.constant 0 : i32
    return %c0_i32, %c0_i32_0 : i32, i32
  }
  func.func @transform_4(%arg0: i32) -> (i32, i32) {
    %c0_i32 = arith.constant 0 : i32
    %c0_i32_0 = arith.constant 0 : i32
    %c0_i32_1 = arith.constant 0 : i32
    return %c0_i32, %c0_i32_0 : i32, i32
  }
  func.func @transform_5(%arg0: i32) -> (i32, i32) {
    %c0_i32 = arith.constant 0 : i32
    %c0_i32_0 = arith.constant 0 : i32
    %c0_i32_1 = arith.constant 0 : i32
    return %c0_i32, %c0_i32_0 : i32, i32
  }
  func.func @transform_6(%arg0: i32) -> (i32, i32) {
    %c0_i32 = arith.constant 0 : i32
    %c0_i32_0 = arith.constant 0 : i32
    %c0_i32_1 = arith.constant 0 : i32
    return %c0_i32, %c0_i32_0 : i32, i32
  }
  func.func @transform_7(%arg0: i32) -> (i32, i32) {
    %c0_i32 = arith.constant 0 : i32
    %c0_i32_0 = arith.constant 0 : i32
    %c0_i32_1 = arith.constant 0 : i32
    return %c0_i32, %c0_i32_0 : i32, i32
  }
  func.func @transform_8(%arg0: i32) -> i32 {
    %c0_i32 = arith.constant 0 : i32
    %c0_i32_0 = arith.constant 0 : i32
    return %c0_i32 : i32
  }
  func.func @transform_9(%arg0: i32) -> (i32, i32, i32) {
    %c0_i32 = arith.constant 0 : i32
    %c0_i32_0 = arith.constant 0 : i32
    %c0_i32_1 = arith.constant 0 : i32
    return %arg0, %c0_i32, %c0_i32_0 : i32, i32, i32
  }
}

</mosaic_0001>

<llo_original>
// kernel: convnet_forward.1
$region0: #{convnet_forward.1}
  #allocation0 [shape = 'u32[]', space=smem, size = 0x4, offset = 0x4, fixed_abs, tag = 'smem constant byte address 0x4 - core index']
  #allocation1 [shape = 'u32[72,128]{1,0:T(1,128)}', space=vmem, size = 0x9000, scoped, tag = 'internal scratch']
  #allocation2 [shape = 'f32[1]{0:T(128)S(6)}', space=smem, size = 0x200, scoped, tag = 'scoped memory for convnet_forward.1']
  %s0 = inlined_call_operand.vmem [shape: bf16[8,18], index: 0, kind: input, shape index: {}]
  %s1 = inlined_call_operand.hbm [shape: bf16[18,576], index: 1, kind: input, shape index: {}]
  %s2 = inlined_call_operand.hbm [shape: f32[1,576], index: 2, kind: input, shape index: {}]
  %s3 = inlined_call_operand.hbm [shape: bf16[576,1152], index: 3, kind: input, shape index: {}]
  %s4 = inlined_call_operand.hbm [shape: f32[1,1152], index: 4, kind: input, shape index: {}]
  %s5 = inlined_call_operand.hbm [shape: bf16[1152,128], index: 5, kind: input, shape index: {}]
  %s6 = inlined_call_operand.hbm [shape: f32[1,128], index: 6, kind: input, shape index: {}]
  %s7 = inlined_call_operand.hbm [shape: f32[1,128], index: 7, kind: input, shape index: {}]
  %s8 = inlined_call_operand.<no memory space> [shape: f32[1], index: 8, kind: input, shape index: {}]
  %s9 = inlined_call_operand.vmem [shape: f32[1,1,8], index: 9, kind: output, shape index: {}]
  %s10 = sld [smem:[#allocation0]]
  $region74: #{convnet_forward.1} parent=0
    _
  %s12 = ssub.s32 1, %s10
  %s13 = scalar_select 0, %s12, %s10
  %14 = sst [smem:[#allocation2]] %s8
  $region1: #{convnet_forward.1} parent=0
    #allocation3 [shape = 'u8[30720]{0}', space=vmem, size = 0x7800, scoped, tag = 'input window, operand 1, single buffered']
    #allocation4 [shape = 's32[1]{0}', space=sflag, size = 0x4, scoped, tag = 'scoped memory for convnet_forward.1']
    #allocation5 [shape = 'u8[2560]{0}', space=vmem, size = 0xc00, scoped, tag = 'input window, operand 2, single buffered']
    #allocation6 [shape = 's32[1]{0}', space=sflag, size = 0x4, scoped, tag = 'scoped memory for convnet_forward.1']
    #allocation7 [shape = 'u8[1327104]{0}', space=vmem, size = 0x144000, scoped, tag = 'input window, operand 3, single buffered']
    #allocation8 [shape = 'u8[4608]{0}', space=vmem, size = 0x1400, scoped, tag = 'input window, operand 4, single buffered']
    #allocation9 [shape = 's32[1]{0}', space=sflag, size = 0x4, scoped, tag = 'scoped memory for convnet_forward.1']
    #allocation10 [shape = 'u8[294912]{0}', space=vmem, size = 0x48000, scoped, tag = 'input window, operand 5, single buffered']
    #allocation11 [shape = 'u8[512]{0}', space=vmem, size = 0x400, scoped, tag = 'input window, operand 6, single buffered']
    #allocation12 [shape = 's32[1]{0}', space=sflag, size = 0x4, scoped, tag = 'scoped memory for convnet_forward.1']
    #allocation13 [shape = 'u8[512]{0}', space=vmem, size = 0x400, scoped, tag = 'input window, operand 7, single buffered']
    %15 = vsyncpa [#allocation4], 0
    %16 = vsyncpa [#allocation6], 0
    %17 = vsyncpa [#allocation9], 0
    %18 = vsyncpa [#allocation12], 0
    // Predicated region
    $region2: #{convnet_forward.1} parent=1 // pred_check
      _
    $region3: #{convnet_forward.1} parent=1 // pred_check_branch
      %20 = sbr.rel (0) target = $region5
    $region4: #{convnet_forward.1} parent=1 // pred_region
      _
    $region5: #{convnet_forward.1} parent=1 // pred_fallthru
      _
    // Predicated region
    $region6: #{convnet_forward.1} parent=1 // pred_check
      _
    $region7: #{convnet_forward.1} parent=1 // pred_check_branch
      %22 = sbr.rel (0) target = $region9
    $region8: #{convnet_forward.1} parent=1 // pred_region
      %24 = vsyncadd [#allocation4], 0
      %s25 = sshll.u32 %s1, 4
      %s26 = int_to_ptr.hbm [resolvable:$true] %s25
      %s27 = sshll.u32 [#allocation3], 4
      %s28 = int_to_ptr.vmem [resolvable:$true] %s27
      %33 = dma.hbm_to_vmem [thread:$0]  %s26, 960, %s28, [#allocation4], 320, 320, 20
    $region9: #{convnet_forward.1} parent=1 // pred_fallthru
      _
    // Predicated region
    $region10: #{convnet_forward.1} parent=1 // pred_check
      _
    $region11: #{convnet_forward.1} parent=1 // pred_check_branch
      %35 = sbr.rel (0) target = $region13
    $region12: #{convnet_forward.1} parent=1 // pred_region
      %37 = vsyncadd [#allocation6], 0
      %s39 = sshll.u32 %s2, 4
      %s40 = int_to_ptr.hbm [resolvable:$true] %s39
      %s41 = sshll.u32 [#allocation5], 4
      %s42 = int_to_ptr.vmem [resolvable:$true] %s41
      %44 = dma.hbm_to_vmem [thread:$0]  %s40, 80, %s42, [#allocation6]
    $region13: #{convnet_forward.1} parent=1 // pred_fallthru
      _
    // Predicated region
    $region14: #{convnet_forward.1} parent=1 // pred_check
      _
    $region15: #{convnet_forward.1} parent=1 // pred_check_branch
      %46 = sbr.rel (0) target = $region17
    $region16: #{convnet_forward.1} parent=1 // pred_region
      %48 = vsyncadd [#allocation6], 0
      %s49 = sshll.u32 %s3, 4
      %s50 = int_to_ptr.hbm [resolvable:$true] %s49
      %s51 = sshll.u32 [#allocation7], 4
      %s52 = int_to_ptr.vmem [resolvable:$true] %s51
      %57 = dma.hbm_to_vmem [thread:$0]  %s50, 41472, %s52, [#allocation6], 576, 576, 36
    $region17: #{convnet_forward.1} parent=1 // pred_fallthru
      _
    // Predicated region
    $region18: #{convnet_forward.1} parent=1 // pred_check
      _
    $region19: #{convnet_forward.1} parent=1 // pred_check_branch
      %59 = sbr.rel (0) target = $region21
    $region20: #{convnet_forward.1} parent=1 // pred_region
      %61 = vsyncadd [#allocation9], 0
      %s63 = sshll.u32 %s4, 4
      %s64 = int_to_ptr.hbm [resolvable:$true] %s63
      %s65 = sshll.u32 [#allocation8], 4
      %s66 = int_to_ptr.vmem [resolvable:$true] %s65
      %68 = dma.hbm_to_vmem [thread:$0]  %s64, 144, %s66, [#allocation9]
    $region21: #{convnet_forward.1} parent=1 // pred_fallthru
      _
    // Predicated region
    $region22: #{convnet_forward.1} parent=1 // pred_check
      _
    $region23: #{convnet_forward.1} parent=1 // pred_check_branch
      %70 = sbr.rel (0) target = $region25
    $region24: #{convnet_forward.1} parent=1 // pred_region
      %72 = vsyncadd [#allocation9], 0
      %s73 = sshll.u32 %s5, 4
      %s74 = int_to_ptr.hbm [resolvable:$true] %s73
      %s75 = sshll.u32 [#allocation10], 4
      %s76 = int_to_ptr.vmem [resolvable:$true] %s75
      %81 = dma.hbm_to_vmem [thread:$0]  %s74, 9216, %s76, [#allocation9], 64, 64, 4
    $region25: #{convnet_forward.1} parent=1 // pred_fallthru
      _
    // Predicated region
    $region26: #{convnet_forward.1} parent=1 // pred_check
      _
    $region27: #{convnet_forward.1} parent=1 // pred_check_branch
      %83 = sbr.rel (0) target = $region29
    $region28: #{convnet_forward.1} parent=1 // pred_region
      %85 = vsyncadd [#allocation12], 0
      %s87 = sshll.u32 %s6, 4
      %s88 = int_to_ptr.hbm [resolvable:$true] %s87
      %s89 = sshll.u32 [#allocation11], 4
      %s90 = int_to_ptr.vmem [resolvable:$true] %s89
      %92 = dma.hbm_to_vmem [thread:$0]  %s88, 16, %s90, [#allocation12]
    $region29: #{convnet_forward.1} parent=1 // pred_fallthru
      _
    // Predicated region
    $region30: #{convnet_forward.1} parent=1 // pred_check
      _
    $region31: #{convnet_forward.1} parent=1 // pred_check_branch
      %94 = sbr.rel (0) target = $region33
    $region32: #{convnet_forward.1} parent=1 // pred_region
      %96 = vsyncadd [#allocation12], 0
      %s98 = sshll.u32 %s7, 4
      %s99 = int_to_ptr.hbm [resolvable:$true] %s98
      %s100 = sshll.u32 [#allocation13], 4
      %s101 = int_to_ptr.vmem [resolvable:$true] %s100
      %103 = dma.hbm_to_vmem [thread:$0]  %s99, 16, %s101, [#allocation12]
    $region33: #{convnet_forward.1} parent=1 // pred_fallthru
      _
    // Predicated region
    $region34: #{convnet_forward.1} parent=1 // pred_check
      _
    $region35: #{convnet_forward.1} parent=1 // pred_check_branch
      %105 = sbr.rel (0) target = $region37
    $region36: #{convnet_forward.1} parent=1 // pred_region
      _
    $region37: #{convnet_forward.1} parent=1 // pred_fallthru
      _
    // Predicated region
    $region38: #{convnet_forward.1} parent=1 // pred_check
      _
    $region39: #{convnet_forward.1} parent=1 // pred_check_branch
      %107 = sbr.rel (0) target = $region41
    $region40: #{convnet_forward.1} parent=1 // pred_region
      %109 = dma.done [#allocation4], 960
    $region41: #{convnet_forward.1} parent=1 // pred_fallthru
      _
    // Predicated region
    $region42: #{convnet_forward.1} parent=1 // pred_check
      _
    $region43: #{convnet_forward.1} parent=1 // pred_check_branch
      %111 = sbr.rel (0) target = $region45
    $region44: #{convnet_forward.1} parent=1 // pred_region
      %113 = dma.done [#allocation6], 80
    $region45: #{convnet_forward.1} parent=1 // pred_fallthru
      _
    // Predicated region
    $region46: #{convnet_forward.1} parent=1 // pred_check
      _
    $region47: #{convnet_forward.1} parent=1 // pred_check_branch
      %115 = sbr.rel (0) target = $region49
    $region48: #{convnet_forward.1} parent=1 // pred_region
      %117 = dma.done [#allocation6], 41472
    $region49: #{convnet_forward.1} parent=1 // pred_fallthru
      _
    // Predicated region
    $region50: #{convnet_forward.1} parent=1 // pred_check
      _
    $region51: #{convnet_forward.1} parent=1 // pred_check_branch
      %119 = sbr.rel (0) target = $region53
    $region52: #{convnet_forward.1} parent=1 // pred_region
      %121 = dma.done [#allocation9], 144
    $region53: #{convnet_forward.1} parent=1 // pred_fallthru
      _
    // Predicated region
    $region54: #{convnet_forward.1} parent=1 // pred_check
      _
    $region55: #{convnet_forward.1} parent=1 // pred_check_branch
      %123 = sbr.rel (0) target = $region57
    $region56: #{convnet_forward.1} parent=1 // pred_region
      %125 = dma.done [#allocation9], 9216
    $region57: #{convnet_forward.1} parent=1 // pred_fallthru
      _
    // Predicated region
    $region58: #{convnet_forward.1} parent=1 // pred_check
      _
    $region59: #{convnet_forward.1} parent=1 // pred_check_branch
      %127 = sbr.rel (0) target = $region61
    $region60: #{convnet_forward.1} parent=1 // pred_region
      %129 = dma.done [#allocation12], 16
    $region61: #{convnet_forward.1} parent=1 // pred_fallthru
      _
    // Predicated region
    $region62: #{convnet_forward.1} parent=1 // pred_check
      _
    $region63: #{convnet_forward.1} parent=1 // pred_check_branch
      %131 = sbr.rel (0) target = $region65
    $region64: #{convnet_forward.1} parent=1 // pred_region
      %133 = dma.done [#allocation12], 16
    $region65: #{convnet_forward.1} parent=1 // pred_fallthru
      _
    %v135 = vld [vmem:[%s0] sm:$0xf]
    %v136 = vld [vmem:[#allocation3] sm:$0xff]
    %v137 = vld [vmem:[#allocation3 + $0x8] sm:$0xff]
    %v138 = vld [vmem:[#allocation3 + $0x10] sm:$0xf]
    %v139 = vld [vmem:[#allocation3 + $0x14] sm:$0xff]
    %v140 = vld [vmem:[#allocation3 + $0x1c] sm:$0xff]
    %v141 = vld [vmem:[#allocation3 + $0x24] sm:$0xf]
    %v142 = vld [vmem:[#allocation3 + $0x28] sm:$0x11]
    %v143 = vld [vmem:[#allocation3 + $0x30] sm:$0x11]
    %v144 = vld [vmem:[#allocation3 + $0x38] sm:$0x1]
    %v145 = vld [vmem:[#allocation5] sm:$0x1f]
    %v147 = vperm.slane %v145, 0
    %v148 = vperm.slane %v145, 1
    %v149 = vperm.slane %v145, 2
    %v150 = vperm.slane %v145, 3
    %v151 = vperm.slane %v145, 4
    %v166 = vunpack.c.l.b16 %v136
    %v167 = vunpack.c.h.b16 %v136
    %v168 = vunpack.c.l.b16 %v137
    %v169 = vunpack.c.h.b16 %v137
    %v170 = vunpack.c.l.b16 %v138
    %v171 = vunpack.c.l.b16 %v139
    %v172 = vunpack.c.h.b16 %v139
    %v173 = vunpack.c.l.b16 %v140
    %v174 = vunpack.c.h.b16 %v140
    %v175 = vunpack.c.l.b16 %v141
    %v176 = vunpack.c.l.b16 %v142
    %v177 = vunpack.c.h.b16 %v142
    %v178 = vunpack.c.l.b16 %v143
    %v179 = vunpack.c.h.b16 %v143
    %v180 = vunpack.c.l.b16 %v144
    %v181 = vpack.c.b16 %v171, %v166
    %v182 = vpack.c.b16 %v172, %v167
    %v183 = vpack.c.b16 %v173, %v168
    %v184 = vpack.c.b16 %v174, %v169
    %v185 = vpack.c.b16 %v175, %v170
    %v186 = vpack.c.b16 %v176, %v176
    %v187 = vpack.c.b16 %v177, %v177
    %v188 = vpack.c.b16 %v178, %v178
    %v189 = vpack.c.b16 %v179, %v179
    %v190 = vpack.c.b16 %v180, %v180
    %vm196 = vcmask 146432
    %v198 = vsel %vm196, %v135, 0
    %vm200 = vcmask 1040384
    %v202 = vsel %vm200, %v186, 0
    %v205 = vsel %vm200, %v187, 0
    %v208 = vsel %vm200, %v188, 0
    %v211 = vsel %vm200, %v189, 0
    %v214 = vsel %vm200, %v190, 0
    %216 = vmatpush.bf16.msra.mxu0 0
    %217 = vmatpush.bf16.msra.mxu0 0
    %218 = vmatpush.bf16.msra.mxu0 0
    %219 = vmatpush.bf16.msra.mxu0 0
    %220 = vmatpush.bf16.msra.mxu0 0
    %221 = vmatpush.bf16.msra.mxu0 0
    %222 = vmatpush.bf16.msra.mxu0 %v202
    %223 = vmatpush.bf16.msra.mxu0 %v181
    %224 = vmatmul.bf16.gmra.mxu0 %v198
    %v225 = vpop.f32.mrf.mxu0
    %v226 = vadd.f32 %v147, %v225
    %v227 = vpop.f32.mrf.mxu0
    %228 = vdwg.mxu0
    %229 = vmatpush.bf16.msra.mxu0 0
    %230 = vmatpush.bf16.msra.mxu0 0
    %231 = vmatpush.bf16.msra.mxu0 0
    %232 = vmatpush.bf16.msra.mxu0 0
    %233 = vmatpush.bf16.msra.mxu0 0
    %234 = vmatpush.bf16.msra.mxu0 0
    %235 = vmatpush.bf16.msra.mxu0 %v205
    %236 = vmatpush.bf16.msra.mxu0 %v182
    %237 = vmatmul.bf16.gmra.mxu0 %v198
    %v238 = vpop.f32.mrf.mxu0
    %v239 = vadd.f32 %v148, %v238
    %v240 = vpop.f32.mrf.mxu0
    %241 = vdwg.mxu0
    %242 = vmatpush.bf16.msra.mxu0 0
    %243 = vmatpush.bf16.msra.mxu0 0
    %244 = vmatpush.bf16.msra.mxu0 0
    %245 = vmatpush.bf16.msra.mxu0 0
    %246 = vmatpush.bf16.msra.mxu0 0
    %247 = vmatpush.bf16.msra.mxu0 0
    %248 = vmatpush.bf16.msra.mxu0 %v208
    %249 = vmatpush.bf16.msra.mxu0 %v183
    %250 = vmatmul.bf16.gmra.mxu0 %v198
    %v251 = vpop.f32.mrf.mxu0
    %v252 = vadd.f32 %v149, %v251
    %v253 = vpop.f32.mrf.mxu0
    %254 = vdwg.mxu0
    %255 = vmatpush.bf16.msra.mxu0 0
    %256 = vmatpush.bf16.msra.mxu0 0
    %257 = vmatpush.bf16.msra.mxu0 0
    %258 = vmatpush.bf16.msra.mxu0 0
    %259 = vmatpush.bf16.msra.mxu0 0
    %260 = vmatpush.bf16.msra.mxu0 0
    %261 = vmatpush.bf16.msra.mxu0 %v211
    %262 = vmatpush.bf16.msra.mxu0 %v184
    %263 = vmatmul.bf16.gmra.mxu0 %v198
    %v264 = vpop.f32.mrf.mxu0
    %v265 = vadd.f32 %v150, %v264
    %v266 = vpop.f32.mrf.mxu0
    %267 = vdwg.mxu0
    %268 = vmatpush.bf16.msra.mxu0 0
    %269 = vmatpush.bf16.msra.mxu0 0
    %270 = vmatpush.bf16.msra.mxu0 0
    %271 = vmatpush.bf16.msra.mxu0 0
    %272 = vmatpush.bf16.msra.mxu0 0
    %273 = vmatpush.bf16.msra.mxu0 0
    %274 = vmatpush.bf16.msra.mxu0 %v214
    %275 = vmatpush.bf16.msra.mxu0 %v185
    %276 = vmatmul.bf16.gmra.mxu0 %v198
    %v277 = vpop.f32.mrf.mxu0
    %v278 = vadd.f32 %v151, %v277
    %v279 = vpop.f32.mrf.mxu0
    %280 = vdwg.mxu0
    %v281 = vmax.f32 %v226, 0.0
    %v282 = vmax.f32 %v239, 0.0
    %v283 = vmax.f32 %v252, 0.0
    %v284 = vmax.f32 %v265, 0.0
    %v285 = vmax.f32 %v278, 0.0
    %v286 = vpack.c.bf16 %v281, %v281
    %v287 = vpack.c.bf16 %v282, %v282
    %v288 = vpack.c.bf16 %v283, %v283
    %v289 = vpack.c.bf16 %v284, %v284
    %v290 = vpack.c.bf16 %v285, %v285
    %v291 = vld [vmem:[#allocation7] sm:$0xff]
    %v292 = vld [vmem:[#allocation7 + $0x8] sm:$0xff]
    %v293 = vld [vmem:[#allocation7 + $0x10] sm:$0xff]
    %v294 = vld [vmem:[#allocation7 + $0x18] sm:$0xff]
    %v295 = vld [vmem:[#allocation7 + $0x20] sm:$0xf]
    %v296 = vld [vmem:[#allocation7 + $0x24] sm:$0xff]
    %v297 = vld [vmem:[#allocation7 + $0x2c] sm:$0xff]
    %v298 = vld [vmem:[#allocation7 + $0x34] sm:$0xff]
    %v299 = vld [vmem:[#allocation7 + $0x3c] sm:$0xff]
    %v300 = vld [vmem:[#allocation7 + $0x44] sm:$0xf]
    %v301 = vld [vmem:[#allocation7 + $0x48] sm:$0xff]
    %v302 = vld [vmem:[#allocation7 + $0x50] sm:$0xff]
    %v303 = vld [vmem:[#allocation7 + $0x58] sm:$0xff]
    %v304 = vld [vmem:[#allocation7 + $0x60] sm:$0xff]
    %v305 = vld [vmem:[#allocation7 + $0x68] sm:$0xf]
    %v306 = vld [vmem:[#allocation7 + $0x6c] sm:$0xff]
    %v307 = vld [vmem:[#allocation7 + $0x74] sm:$0xff]
    %v308 = vld [vmem:[#allocation7 + $0x7c] sm:$0xff]
    %v309 = vld [vmem:[#allocation7 + $0x84] sm:$0xff]
    %v310 = vld [vmem:[#allocation7 + $0x8c] sm:$0xf]
    %v311 = vld [vmem:[#allocation7 + $0x90] sm:$0xff]
    %v312 = vld [vmem:[#allocation7 + $0x98] sm:$0xff]
    %v313 = vld [vmem:[#allocation7 + $0xa0] sm:$0xff]
    %v314 = vld [vmem:[#allocation7 + $0xa8] sm:$0xff]
    %v315 = vld [vmem:[#allocation7 + $0xb0] sm:$0xf]
    %v316 = vld [vmem:[#allocation7 + $0xb4] sm:$0xff]
    %v317 = vld [vmem:[#allocation7 + $0xbc] sm:$0xff]
    %v318 = vld [vmem:[#allocation7 + $0xc4] sm:$0xff]
    %v319 = vld [vmem:[#allocation7 + $0xcc] sm:$0xff]
    %v320 = vld [vmem:[#allocation7 + $0xd4] sm:$0xf]
    %v321 = vld [vmem:[#allocation7 + $0xd8] sm:$0xff]
    %v322 = vld [vmem:[#allocation7 + $0xe0] sm:$0xff]
    %v323 = vld [vmem:[#allocation7 + $0xe8] sm:$0xff]
    %v324 = vld [vmem:[#allocation7 + $0xf0] sm:$0xff]
    %v325 = vld [vmem:[#allocation7 + $0xf8] sm:$0xf]
    %v326 = vld [vmem:[#allocation7 + $0xfc] sm:$0xff]
    %v327 = vld [vmem:[#allocation7 + $0x104] sm:$0xff]
    %v328 = vld [vmem:[#allocation7 + $0x10c] sm:$0xff]
    %v329 = vld [vmem:[#allocation7 + $0x114] sm:$0xff]
    %v330 = vld [vmem:[#allocation7 + $0x11c] sm:$0xf]
    %v331 = vld [vmem:[#allocation7 + $0x120] sm:$0xff]
    %v332 = vld [vmem:[#allocation7 + $0x128] sm:$0xff]
    %v333 = vld [vmem:[#allocation7 + $0x130] sm:$0xff]
    %v334 = vld [vmem:[#allocation7 + $0x138] sm:$0xff]
    %v335 = vld [vmem:[#allocation7 + $0x140] sm:$0xf]
    %v336 = vld [vmem:[#allocation7 + $0x144] sm:$0xff]
    %v337 = vld [vmem:[#allocation7 + $0x14c] sm:$0xff]
    %v338 = vld [vmem:[#allocation7 + $0x154] sm:$0xff]
    %v339 = vld [vmem:[#allocation7 + $0x15c] sm:$0xff]
    %v340 = vld [vmem:[#allocation7 + $0x164] sm:$0xf]
    %v341 = vld [vmem:[#allocation7 + $0x168] sm:$0xff]
    %v342 = vld [vmem:[#allocation7 + $0x170] sm:$0xff]
    %v343 = vld [vmem:[#allocation7 + $0x178] sm:$0xff]
    %v344 = vld [vmem:[#allocation7 + $0x180] sm:$0xff]
    %v345 = vld [vmem:[#allocation7 + $0x188] sm:$0xf]
    %v346 = vld [vmem:[#allocation7 + $0x18c] sm:$0xff]
    %v347 = vld [vmem:[#allocation7 + $0x194] sm:$0xff]
    %v348 = vld [vmem:[#allocation7 + $0x19c] sm:$0xff]
    %v349 = vld [vmem:[#allocation7 + $0x1a4] sm:$0xff]
    %v350 = vld [vmem:[#allocation7 + $0x1ac] sm:$0xf]
    %v351 = vld [vmem:[#allocation7 + $0x1b0] sm:$0xff]
    %v352 = vld [vmem:[#allocation7 + $0x1b8] sm:$0xff]
    %v353 = vld [vmem:[#allocation7 + $0x1c0] sm:$0xff]
    %v354 = vld [vmem:[#allocation7 + $0x1c8] sm:$0xff]
    %v355 = vld [vmem:[#allocation7 + $0x1d0] sm:$0xf]
    %v356 = vld [vmem:[#allocation7 + $0x1d4] sm:$0xff]
    %v357 = vld [vmem:[#allocation7 + $0x1dc] sm:$0xff]
    %v358 = vld [vmem:[#allocation7 + $0x1e4] sm:$0xff]
    %v359 = vld [vmem:[#allocation7 + $0x1ec] sm:$0xff]
    %v360 = vld [vmem:[#allocation7 + $0x1f4] sm:$0xf]
    %v361 = vld [vmem:[#allocation7 + $0x1f8] sm:$0xff]
    %v362 = vld [vmem:[#allocation7 + $0x200] sm:$0xff]
    %v363 = vld [vmem:[#allocation7 + $0x208] sm:$0xff]
    %v364 = vld [vmem:[#allocation7 + $0x210] sm:$0xff]
    %v365 = vld [vmem:[#allocation7 + $0x218] sm:$0xf]
    %v366 = vld [vmem:[#allocation7 + $0x21c] sm:$0xff]
    %v367 = vld [vmem:[#allocation7 + $0x224] sm:$0xff]
    %v368 = vld [vmem:[#allocation7 + $0x22c] sm:$0xff]
    %v369 = vld [vmem:[#allocation7 + $0x234] sm:$0xff]
    %v370 = vld [vmem:[#allocation7 + $0x23c] sm:$0xf]
    %v371 = vld [vmem:[#allocation7 + $0x240] sm:$0xff]
    %v372 = vld [vmem:[#allocation7 + $0x248] sm:$0xff]
    %v373 = vld [vmem:[#allocation7 + $0x250] sm:$0xff]
    %v374 = vld [vmem:[#allocation7 + $0x258] sm:$0xff]
    %v375 = vld [vmem:[#allocation7 + $0x260] sm:$0xf]
    %v376 = vld [vmem:[#allocation7 + $0x264] sm:$0xff]
    %v377 = vld [vmem:[#allocation7 + $0x26c] sm:$0xff]
    %v378 = vld [vmem:[#allocation7 + $0x274] sm:$0xff]
    %v379 = vld [vmem:[#allocation7 + $0x27c] sm:$0xff]
    %v380 = vld [vmem:[#allocation7 + $0x284] sm:$0xf]
    %v381 = vld [vmem:[#allocation7 + $0x288] sm:$0xff]
    %v382 = vld [vmem:[#allocation7 + $0x290] sm:$0xff]
    %v383 = vld [vmem:[#allocation7 + $0x298] sm:$0xff]
    %v384 = vld [vmem:[#allocation7 + $0x2a0] sm:$0xff]
    %v385 = vld [vmem:[#allocation7 + $0x2a8] sm:$0xf]
    %v386 = vld [vmem:[#allocation7 + $0x2ac] sm:$0xff]
    %v387 = vld [vmem:[#allocation7 + $0x2b4] sm:$0xff]
    %v388 = vld [vmem:[#allocation7 + $0x2bc] sm:$0xff]
    %v389 = vld [vmem:[#allocation7 + $0x2c4] sm:$0xff]
    %v390 = vld [vmem:[#allocation7 + $0x2cc] sm:$0xf]
    %v391 = vld [vmem:[#allocation7 + $0x2d0] sm:$0xff]
    %v392 = vld [vmem:[#allocation7 + $0x2d8] sm:$0xff]
    %v393 = vld [vmem:[#allocation7 + $0x2e0] sm:$0xff]
    %v394 = vld [vmem:[#allocation7 + $0x2e8] sm:$0xff]
    %v395 = vld [vmem:[#allocation7 + $0x2f0] sm:$0xf]
    %v396 = vld [vmem:[#allocation7 + $0x2f4] sm:$0xff]
    %v397 = vld [vmem:[#allocation7 + $0x2fc] sm:$0xff]
    %v398 = vld [vmem:[#allocation7 + $0x304] sm:$0xff]
    %v399 = vld [vmem:[#allocation7 + $0x30c] sm:$0xff]
    %v400 = vld [vmem:[#allocation7 + $0x314] sm:$0xf]
    %v401 = vld [vmem:[#allocation7 + $0x318] sm:$0xff]
    %v402 = vld [vmem:[#allocation7 + $0x320] sm:$0xff]
    %v403 = vld [vmem:[#allocation7 + $0x328] sm:$0xff]
    %v404 = vld [vmem:[#allocation7 + $0x330] sm:$0xff]
    %v405 = vld [vmem:[#allocation7 + $0x338] sm:$0xf]
    %v406 = vld [vmem:[#allocation7 + $0x33c] sm:$0xff]
    %v407 = vld [vmem:[#allocation7 + $0x344] sm:$0xff]
    %v408 = vld [vmem:[#allocation7 + $0x34c] sm:$0xff]
    %v409 = vld [vmem:[#allocation7 + $0x354] sm:$0xff]
    %v410 = vld [vmem:[#allocation7 + $0x35c] sm:$0xf]
    %v411 = vld [vmem:[#allocation7 + $0x360] sm:$0xff]
    %v412 = vld [vmem:[#allocation7 + $0x368] sm:$0xff]
    %v413 = vld [vmem:[#allocation7 + $0x370] sm:$0xff]
    %v414 = vld [vmem:[#allocation7 + $0x378] sm:$0xff]
    %v415 = vld [vmem:[#allocation7 + $0x380] sm:$0xf]
    %v416 = vld [vmem:[#allocation7 + $0x384] sm:$0xff]
    %v417 = vld [vmem:[#allocation7 + $0x38c] sm:$0xff]
    %v418 = vld [vmem:[#allocation7 + $0x394] sm:$0xff]
    %v419 = vld [vmem:[#allocation7 + $0x39c] sm:$0xff]
    %v420 = vld [vmem:[#allocation7 + $0x3a4] sm:$0xf]
    %v421 = vld [vmem:[#allocation7 + $0x3a8] sm:$0xff]
    %v422 = vld [vmem:[#allocation7 + $0x3b0] sm:$0xff]
    %v423 = vld [vmem:[#allocation7 + $0x3b8] sm:$0xff]
    %v424 = vld [vmem:[#allocation7 + $0x3c0] sm:$0xff]
    %v425 = vld [vmem:[#allocation7 + $0x3c8] sm:$0xf]
    %v426 = vld [vmem:[#allocation7 + $0x3cc] sm:$0xff]
    %v427 = vld [vmem:[#allocation7 + $0x3d4] sm:$0xff]
    %v428 = vld [vmem:[#allocation7 + $0x3dc] sm:$0xff]
    %v429 = vld [vmem:[#allocation7 + $0x3e4] sm:$0xff]
    %v430 = vld [vmem:[#allocation7 + $0x3ec] sm:$0xf]
    %v431 = vld [vmem:[#allocation7 + $0x3f0] sm:$0xff]
    %v432 = vld [vmem:[#allocation7 + $0x3f8] sm:$0xff]
    %v433 = vld [vmem:[#allocation7 + $0x400] sm:$0xff]
    %v434 = vld [vmem:[#allocation7 + $0x408] sm:$0xff]
    %v435 = vld [vmem:[#allocation7 + $0x410] sm:$0xf]
    %v436 = vld [vmem:[#allocation7 + $0x414] sm:$0xff]
    %v437 = vld [vmem:[#allocation7 + $0x41c] sm:$0xff]
    %v438 = vld [vmem:[#allocation7 + $0x424] sm:$0xff]
    %v439 = vld [vmem:[#allocation7 + $0x42c] sm:$0xff]
    %v440 = vld [vmem:[#allocation7 + $0x434] sm:$0xf]
    %v441 = vld [vmem:[#allocation7 + $0x438] sm:$0xff]
    %v442 = vld [vmem:[#allocation7 + $0x440] sm:$0xff]
    %v443 = vld [vmem:[#allocation7 + $0x448] sm:$0xff]
    %v444 = vld [vmem:[#allocation7 + $0x450] sm:$0xff]
    %v445 = vld [vmem:[#allocation7 + $0x458] sm:$0xf]
    %v446 = vld [vmem:[#allocation7 + $0x45c] sm:$0xff]
    %v447 = vld [vmem:[#allocation7 + $0x464] sm:$0xff]
    %v448 = vld [vmem:[#allocation7 + $0x46c] sm:$0xff]
    %v449 = vld [vmem:[#allocation7 + $0x474] sm:$0xff]
    %v450 = vld [vmem:[#allocation7 + $0x47c] sm:$0xf]
    %v451 = vld [vmem:[#allocation7 + $0x480] sm:$0xff]
    %v452 = vld [vmem:[#allocation7 + $0x488] sm:$0xff]
    %v453 = vld [vmem:[#allocation7 + $0x490] sm:$0xff]
    %v454 = vld [vmem:[#allocation7 + $0x498] sm:$0xff]
    %v455 = vld [vmem:[#allocation7 + $0x4a0] sm:$0xf]
    %v456 = vld [vmem:[#allocation7 + $0x4a4] sm:$0xff]
    %v457 = vld [vmem:[#allocation7 + $0x4ac] sm:$0xff]
    %v458 = vld [vmem:[#allocation7 + $0x4b4] sm:$0xff]
    %v459 = vld [vmem:[#allocation7 + $0x4bc] sm:$0xff]
    %v460 = vld [vmem:[#allocation7 + $0x4c4] sm:$0xf]
    %v461 = vld [vmem:[#allocation7 + $0x4c8] sm:$0xff]
    %v462 = vld [vmem:[#allocation7 + $0x4d0] sm:$0xff]
    %v463 = vld [vmem:[#allocation7 + $0x4d8] sm:$0xff]
    %v464 = vld [vmem:[#allocation7 + $0x4e0] sm:$0xff]
    %v465 = vld [vmem:[#allocation7 + $0x4e8] sm:$0xf]
    %v466 = vld [vmem:[#allocation7 + $0x4ec] sm:$0xff]
    %v467 = vld [vmem:[#allocation7 + $0x4f4] sm:$0xff]
    %v468 = vld [vmem:[#allocation7 + $0x4fc] sm:$0xff]
    %v469 = vld [vmem:[#allocation7 + $0x504] sm:$0xff]
    %v470 = vld [vmem:[#allocation7 + $0x50c] sm:$0xf]
    %v471 = vld [vmem:[#allocation7 + $0x510] sm:$0xff]
    %v472 = vld [vmem:[#allocation7 + $0x518] sm:$0xff]
    %v473 = vld [vmem:[#allocation7 + $0x520] sm:$0xff]
    %v474 = vld [vmem:[#allocation7 + $0x528] sm:$0xff]
    %v475 = vld [vmem:[#allocation7 + $0x530] sm:$0xf]
    %v476 = vld [vmem:[#allocation7 + $0x534] sm:$0xff]
    %v477 = vld [vmem:[#allocation7 + $0x53c] sm:$0xff]
    %v478 = vld [vmem:[#allocation7 + $0x544] sm:$0xff]
    %v479 = vld [vmem:[#allocation7 + $0x54c] sm:$0xff]
    %v480 = vld [vmem:[#allocation7 + $0x554] sm:$0xf]
    %v481 = vld [vmem:[#allocation7 + $0x558] sm:$0xff]
    %v482 = vld [vmem:[#allocation7 + $0x560] sm:$0xff]
    %v483 = vld [vmem:[#allocation7 + $0x568] sm:$0xff]
    %v484 = vld [vmem:[#allocation7 + $0x570] sm:$0xff]
    %v485 = vld [vmem:[#allocation7 + $0x578] sm:$0xf]
    %v486 = vld [vmem:[#allocation7 + $0x57c] sm:$0xff]
    %v487 = vld [vmem:[#allocation7 + $0x584] sm:$0xff]
    %v488 = vld [vmem:[#allocation7 + $0x58c] sm:$0xff]
    %v489 = vld [vmem:[#allocation7 + $0x594] sm:$0xff]
    %v490 = vld [vmem:[#allocation7 + $0x59c] sm:$0xf]
    %v491 = vld [vmem:[#allocation7 + $0x5a0] sm:$0xff]
    %v492 = vld [vmem:[#allocation7 + $0x5a8] sm:$0xff]
    %v493 = vld [vmem:[#allocation7 + $0x5b0] sm:$0xff]
    %v494 = vld [vmem:[#allocation7 + $0x5b8] sm:$0xff]
    %v495 = vld [vmem:[#allocation7 + $0x5c0] sm:$0xf]
    %v496 = vld [vmem:[#allocation7 + $0x5c4] sm:$0xff]
    %v497 = vld [vmem:[#allocation7 + $0x5cc] sm:$0xff]
    %v498 = vld [vmem:[#allocation7 + $0x5d4] sm:$0xff]
    %v499 = vld [vmem:[#allocation7 + $0x5dc] sm:$0xff]
    %v500 = vld [vmem:[#allocation7 + $0x5e4] sm:$0xf]
    %v501 = vld [vmem:[#allocation7 + $0x5e8] sm:$0xff]
    %v502 = vld [vmem:[#allocation7 + $0x5f0] sm:$0xff]
    %v503 = vld [vmem:[#allocation7 + $0x5f8] sm:$0xff]
    %v504 = vld [vmem:[#allocation7 + $0x600] sm:$0xff]
    %v505 = vld [vmem:[#allocation7 + $0x608] sm:$0xf]
    %v506 = vld [vmem:[#allocation7 + $0x60c] sm:$0xff]
    %v507 = vld [vmem:[#allocation7 + $0x614] sm:$0xff]
    %v508 = vld [vmem:[#allocation7 + $0x61c] sm:$0xff]
    %v509 = vld [vmem:[#allocation7 + $0x624] sm:$0xff]
    %v510 = vld [vmem:[#allocation7 + $0x62c] sm:$0xf]
    %v511 = vld [vmem:[#allocation7 + $0x630] sm:$0xff]
    %v512 = vld [vmem:[#allocation7 + $0x638] sm:$0xff]
    %v513 = vld [vmem:[#allocation7 + $0x640] sm:$0xff]
    %v514 = vld [vmem:[#allocation7 + $0x648] sm:$0xff]
    %v515 = vld [vmem:[#allocation7 + $0x650] sm:$0xf]
    %v516 = vld [vmem:[#allocation7 + $0x654] sm:$0xff]
    %v517 = vld [vmem:[#allocation7 + $0x65c] sm:$0xff]
    %v518 = vld [vmem:[#allocation7 + $0x664] sm:$0xff]
    %v519 = vld [vmem:[#allocation7 + $0x66c] sm:$0xff]
    %v520 = vld [vmem:[#allocation7 + $0x674] sm:$0xf]
    %v521 = vld [vmem:[#allocation7 + $0x678] sm:$0xff]
    %v522 = vld [vmem:[#allocation7 + $0x680] sm:$0xff]
    %v523 = vld [vmem:[#allocation7 + $0x688] sm:$0xff]
    %v524 = vld [vmem:[#allocation7 + $0x690] sm:$0xff]
    %v525 = vld [vmem:[#allocation7 + $0x698] sm:$0xf]
    %v526 = vld [vmem:[#allocation7 + $0x69c] sm:$0xff]
    %v527 = vld [vmem:[#allocation7 + $0x6a4] sm:$0xff]
    %v528 = vld [vmem:[#allocation7 + $0x6ac] sm:$0xff]
    %v529 = vld [vmem:[#allocation7 + $0x6b4] sm:$0xff]
    %v530 = vld [vmem:[#allocation7 + $0x6bc] sm:$0xf]
    %v531 = vld [vmem:[#allocation7 + $0x6c0] sm:$0xff]
    %v532 = vld [vmem:[#allocation7 + $0x6c8] sm:$0xff]
    %v533 = vld [vmem:[#allocation7 + $0x6d0] sm:$0xff]
    %v534 = vld [vmem:[#allocation7 + $0x6d8] sm:$0xff]
    %v535 = vld [vmem:[#allocation7 + $0x6e0] sm:$0xf]
    %v536 = vld [vmem:[#allocation7 + $0x6e4] sm:$0xff]
    %v537 = vld [vmem:[#allocation7 + $0x6ec] sm:$0xff]
    %v538 = vld [vmem:[#allocation7 + $0x6f4] sm:$0xff]
    %v539 = vld [vmem:[#allocation7 + $0x6fc] sm:$0xff]
    %v540 = vld [vmem:[#allocation7 + $0x704] sm:$0xf]
    %v541 = vld [vmem:[#allocation7 + $0x708] sm:$0xff]
    %v542 = vld [vmem:[#allocation7 + $0x710] sm:$0xff]
    %v543 = vld [vmem:[#allocation7 + $0x718] sm:$0xff]
    %v544 = vld [vmem:[#allocation7 + $0x720] sm:$0xff]
    %v545 = vld [vmem:[#allocation7 + $0x728] sm:$0xf]
    %v546 = vld [vmem:[#allocation7 + $0x72c] sm:$0xff]
    %v547 = vld [vmem:[#allocation7 + $0x734] sm:$0xff]
    %v548 = vld [vmem:[#allocation7 + $0x73c] sm:$0xff]
    %v549 = vld [vmem:[#allocation7 + $0x744] sm:$0xff]
    %v550 = vld [vmem:[#allocation7 + $0x74c] sm:$0xf]
    %v551 = vld [vmem:[#allocation7 + $0x750] sm:$0xff]
    %v552 = vld [vmem:[#allocation7 + $0x758] sm:$0xff]
    %v553 = vld [vmem:[#allocation7 + $0x760] sm:$0xff]
    %v554 = vld [vmem:[#allocation7 + $0x768] sm:$0xff]
    %v555 = vld [vmem:[#allocation7 + $0x770] sm:$0xf]
    %v556 = vld [vmem:[#allocation7 + $0x774] sm:$0xff]
    %v557 = vld [vmem:[#allocation7 + $0x77c] sm:$0xff]
    %v558 = vld [vmem:[#allocation7 + $0x784] sm:$0xff]
    %v559 = vld [vmem:[#allocation7 + $0x78c] sm:$0xff]
    %v560 = vld [vmem:[#allocation7 + $0x794] sm:$0xf]
    %v561 = vld [vmem:[#allocation7 + $0x798] sm:$0xff]
    %v562 = vld [vmem:[#allocation7 + $0x7a0] sm:$0xff]
    %v563 = vld [vmem:[#allocation7 + $0x7a8] sm:$0xff]
    %v564 = vld [vmem:[#allocation7 + $0x7b0] sm:$0xff]
    %v565 = vld [vmem:[#allocation7 + $0x7b8] sm:$0xf]
    %v566 = vld [vmem:[#allocation7 + $0x7bc] sm:$0xff]
    %v567 = vld [vmem:[#allocation7 + $0x7c4] sm:$0xff]
    %v568 = vld [vmem:[#allocation7 + $0x7cc] sm:$0xff]
    %v569 = vld [vmem:[#allocation7 + $0x7d4] sm:$0xff]
    %v570 = vld [vmem:[#allocation7 + $0x7dc] sm:$0xf]
    %v571 = vld [vmem:[#allocation7 + $0x7e0] sm:$0xff]
    %v572 = vld [vmem:[#allocation7 + $0x7e8] sm:$0xff]
    %v573 = vld [vmem:[#allocation7 + $0x7f0] sm:$0xff]
    %v574 = vld [vmem:[#allocation7 + $0x7f8] sm:$0xff]
    %v575 = vld [vmem:[#allocation7 + $0x800] sm:$0xf]
    %v576 = vld [vmem:[#allocation7 + $0x804] sm:$0xff]
    %v577 = vld [vmem:[#allocation7 + $0x80c] sm:$0xff]
    %v578 = vld [vmem:[#allocation7 + $0x814] sm:$0xff]
    %v579 = vld [vmem:[#allocation7 + $0x81c] sm:$0xff]
    %v580 = vld [vmem:[#allocation7 + $0x824] sm:$0xf]
    %v581 = vld [vmem:[#allocation7 + $0x828] sm:$0xff]
    %v582 = vld [vmem:[#allocation7 + $0x830] sm:$0xff]
    %v583 = vld [vmem:[#allocation7 + $0x838] sm:$0xff]
    %v584 = vld [vmem:[#allocation7 + $0x840] sm:$0xff]
    %v585 = vld [vmem:[#allocation7 + $0x848] sm:$0xf]
    %v586 = vld [vmem:[#allocation7 + $0x84c] sm:$0xff]
    %v587 = vld [vmem:[#allocation7 + $0x854] sm:$0xff]
    %v588 = vld [vmem:[#allocation7 + $0x85c] sm:$0xff]
    %v589 = vld [vmem:[#allocation7 + $0x864] sm:$0xff]
    %v590 = vld [vmem:[#allocation7 + $0x86c] sm:$0xf]
    %v591 = vld [vmem:[#allocation7 + $0x870] sm:$0xff]
    %v592 = vld [vmem:[#allocation7 + $0x878] sm:$0xff]
    %v593 = vld [vmem:[#allocation7 + $0x880] sm:$0xff]
    %v594 = vld [vmem:[#allocation7 + $0x888] sm:$0xff]
    %v595 = vld [vmem:[#allocation7 + $0x890] sm:$0xf]
    %v596 = vld [vmem:[#allocation7 + $0x894] sm:$0xff]
    %v597 = vld [vmem:[#allocation7 + $0x89c] sm:$0xff]
    %v598 = vld [vmem:[#allocation7 + $0x8a4] sm:$0xff]
    %v599 = vld [vmem:[#allocation7 + $0x8ac] sm:$0xff]
    %v600 = vld [vmem:[#allocation7 + $0x8b4] sm:$0xf]
    %v601 = vld [vmem:[#allocation7 + $0x8b8] sm:$0xff]
    %v602 = vld [vmem:[#allocation7 + $0x8c0] sm:$0xff]
    %v603 = vld [vmem:[#allocation7 + $0x8c8] sm:$0xff]
    %v604 = vld [vmem:[#allocation7 + $0x8d0] sm:$0xff]
    %v605 = vld [vmem:[#allocation7 + $0x8d8] sm:$0xf]
    %v606 = vld [vmem:[#allocation7 + $0x8dc] sm:$0xff]
    %v607 = vld [vmem:[#allocation7 + $0x8e4] sm:$0xff]
    %v608 = vld [vmem:[#allocation7 + $0x8ec] sm:$0xff]
    %v609 = vld [vmem:[#allocation7 + $0x8f4] sm:$0xff]
    %v610 = vld [vmem:[#allocation7 + $0x8fc] sm:$0xf]
    %v611 = vld [vmem:[#allocation7 + $0x900] sm:$0xff]
    %v612 = vld [vmem:[#allocation7 + $0x908] sm:$0xff]
    %v613 = vld [vmem:[#allocation7 + $0x910] sm:$0xff]
    %v614 = vld [vmem:[#allocation7 + $0x918] sm:$0xff]
    %v615 = vld [vmem:[#allocation7 + $0x920] sm:$0xf]
    %v616 = vld [vmem:[#allocation7 + $0x924] sm:$0xff]
    %v617 = vld [vmem:[#allocation7 + $0x92c] sm:$0xff]
    %v618 = vld [vmem:[#allocation7 + $0x934] sm:$0xff]
    %v619 = vld [vmem:[#allocation7 + $0x93c] sm:$0xff]
    %v620 = vld [vmem:[#allocation7 + $0x944] sm:$0xf]
    %v621 = vld [vmem:[#allocation7 + $0x948] sm:$0xff]
    %v622 = vld [vmem:[#allocation7 + $0x950] sm:$0xff]
    %v623 = vld [vmem:[#allocation7 + $0x958] sm:$0xff]
    %v624 = vld [vmem:[#allocation7 + $0x960] sm:$0xff]
    %v625 = vld [vmem:[#allocation7 + $0x968] sm:$0xf]
    %v626 = vld [vmem:[#allocation7 + $0x96c] sm:$0xff]
    %v627 = vld [vmem:[#allocation7 + $0x974] sm:$0xff]
    %v628 = vld [vmem:[#allocation7 + $0x97c] sm:$0xff]
    %v629 = vld [vmem:[#allocation7 + $0x984] sm:$0xff]
    %v630 = vld [vmem:[#allocation7 + $0x98c] sm:$0xf]
    %v631 = vld [vmem:[#allocation7 + $0x990] sm:$0xff]
    %v632 = vld [vmem:[#allocation7 + $0x998] sm:$0xff]
    %v633 = vld [vmem:[#allocation7 + $0x9a0] sm:$0xff]
    %v634 = vld [vmem:[#allocation7 + $0x9a8] sm:$0xff]
    %v635 = vld [vmem:[#allocation7 + $0x9b0] sm:$0xf]
    %v636 = vld [vmem:[#allocation7 + $0x9b4] sm:$0xff]
    %v637 = vld [vmem:[#allocation7 + $0x9bc] sm:$0xff]
    %v638 = vld [vmem:[#allocation7 + $0x9c4] sm:$0xff]
    %v639 = vld [vmem:[#allocation7 + $0x9cc] sm:$0xff]
    %v640 = vld [vmem:[#allocation7 + $0x9d4] sm:$0xf]
    %v641 = vld [vmem:[#allocation7 + $0x9d8] sm:$0xff]
    %v642 = vld [vmem:[#allocation7 + $0x9e0] sm:$0xff]
    %v643 = vld [vmem:[#allocation7 + $0x9e8] sm:$0xff]
    %v644 = vld [vmem:[#allocation7 + $0x9f0] sm:$0xff]
    %v645 = vld [vmem:[#allocation7 + $0x9f8] sm:$0xf]
    %v646 = vld [vmem:[#allocation7 + $0x9fc] sm:$0xff]
    %v647 = vld [vmem:[#allocation7 + $0xa04] sm:$0xff]
    %v648 = vld [vmem:[#allocation7 + $0xa0c] sm:$0xff]
    %v649 = vld [vmem:[#allocation7 + $0xa14] sm:$0xff]
    %v650 = vld [vmem:[#allocation7 + $0xa1c] sm:$0xf]
    %v651 = vld [vmem:[#allocation8] sm:$0xff]
    %v652 = vld [vmem:[#allocation8 + $0x8] sm:$0x1]
    %v655 = vperm.slane %v651, 0
    %v656 = vperm.slane %v651, 1
    %v657 = vperm.slane %v651, 2
    %v658 = vperm.slane %v651, 3
    %v659 = vperm.slane %v651, 4
    %v660 = vperm.slane %v651, 5
    %v661 = vperm.slane %v651, 6
    %v662 = vperm.slane %v651, 7
    %v663 = vperm.slane %v652, 0
    %v1033 = vunpack.c.l.b16 %v291
    %v1034 = vunpack.c.h.b16 %v291
    %v1035 = vunpack.c.l.b16 %v292
    %v1036 = vunpack.c.h.b16 %v292
    %v1037 = vunpack.c.l.b16 %v293
    %v1038 = vunpack.c.h.b16 %v293
    %v1039 = vunpack.c.l.b16 %v294
    %v1040 = vunpack.c.h.b16 %v294
    %v1041 = vunpack.c.l.b16 %v295
    %v1042 = vunpack.c.l.b16 %v296
    %v1043 = vunpack.c.h.b16 %v296
    %v1044 = vunpack.c.l.b16 %v297
    %v1045 = vunpack.c.h.b16 %v297
    %v1046 = vunpack.c.l.b16 %v298
    %v1047 = vunpack.c.h.b16 %v298
    %v1048 = vunpack.c.l.b16 %v299
    %v1049 = vunpack.c.h.b16 %v299
    %v1050 = vunpack.c.l.b16 %v300
    %v1051 = vunpack.c.l.b16 %v301
    %v1052 = vunpack.c.h.b16 %v301
    %v1053 = vunpack.c.l.b16 %v302
    %v1054 = vunpack.c.h.b16 %v302
    %v1055 = vunpack.c.l.b16 %v303
    %v1056 = vunpack.c.h.b16 %v303
    %v1057 = vunpack.c.l.b16 %v304
    %v1058 = vunpack.c.h.b16 %v304
    %v1059 = vunpack.c.l.b16 %v305
    %v1060 = vunpack.c.l.b16 %v306
    %v1061 = vunpack.c.h.b16 %v306
    %v1062 = vunpack.c.l.b16 %v307
    %v1063 = vunpack.c.h.b16 %v307
    %v1064 = vunpack.c.l.b16 %v308
    %v1065 = vunpack.c.h.b16 %v308
    %v1066 = vunpack.c.l.b16 %v309
    %v1067 = vunpack.c.h.b16 %v309
    %v1068 = vunpack.c.l.b16 %v310
    %v1069 = vunpack.c.l.b16 %v311
    %v1070 = vunpack.c.h.b16 %v311
    %v1071 = vunpack.c.l.b16 %v312
    %v1072 = vunpack.c.h.b16 %v312
    %v1073 = vunpack.c.l.b16 %v313
    %v1074 = vunpack.c.h.b16 %v313
    %v1075 = vunpack.c.l.b16 %v314
    %v1076 = vunpack.c.h.b16 %v314
    %v1077 = vunpack.c.l.b16 %v315
    %v1078 = vunpack.c.l.b16 %v316
    %v1079 = vunpack.c.h.b16 %v316
    %v1080 = vunpack.c.l.b16 %v317
    %v1081 = vunpack.c.h.b16 %v317
    %v1082 = vunpack.c.l.b16 %v318
    %v1083 = vunpack.c.h.b16 %v318
    %v1084 = vunpack.c.l.b16 %v319
    %v1085 = vunpack.c.h.b16 %v319
    %v1086 = vunpack.c.l.b16 %v320
    %v1087 = vunpack.c.l.b16 %v321
    %v1088 = vunpack.c.h.b16 %v321
    %v1089 = vunpack.c.l.b16 %v322
    %v1090 = vunpack.c.h.b16 %v322
    %v1091 = vunpack.c.l.b16 %v323
    %v1092 = vunpack.c.h.b16 %v323
    %v1093 = vunpack.c.l.b16 %v324
    %v1094 = vunpack.c.h.b16 %v324
    %v1095 = vunpack.c.l.b16 %v325
    %v1096 = vunpack.c.l.b16 %v326
    %v1097 = vunpack.c.h.b16 %v326
    %v1098 = vunpack.c.l.b16 %v327
    %v1099 = vunpack.c.h.b16 %v327
    %v1100 = vunpack.c.l.b16 %v328
    %v1101 = vunpack.c.h.b16 %v328
    %v1102 = vunpack.c.l.b16 %v329
    %v1103 = vunpack.c.h.b16 %v329
    %v1104 = vunpack.c.l.b16 %v330
    %v1105 = vunpack.c.l.b16 %v331
    %v1106 = vunpack.c.h.b16 %v331
    %v1107 = vunpack.c.l.b16 %v332
    %v1108 = vunpack.c.h.b16 %v332
    %v1109 = vunpack.c.l.b16 %v333
    %v1110 = vunpack.c.h.b16 %v333
    %v1111 = vunpack.c.l.b16 %v334
    %v1112 = vunpack.c.h.b16 %v334
    %v1113 = vunpack.c.l.b16 %v335
    %v1114 = vunpack.c.l.b16 %v336
    %v1115 = vunpack.c.h.b16 %v336
    %v1116 = vunpack.c.l.b16 %v337
    %v1117 = vunpack.c.h.b16 %v337
    %v1118 = vunpack.c.l.b16 %v338
    %v1119 = vunpack.c.h.b16 %v338
    %v1120 = vunpack.c.l.b16 %v339
    %v1121 = vunpack.c.h.b16 %v339
    %v1122 = vunpack.c.l.b16 %v340
    %v1123 = vunpack.c.l.b16 %v341
    %v1124 = vunpack.c.h.b16 %v341
    %v1125 = vunpack.c.l.b16 %v342
    %v1126 = vunpack.c.h.b16 %v342
    %v1127 = vunpack.c.l.b16 %v343
    %v1128 = vunpack.c.h.b16 %v343
    %v1129 = vunpack.c.l.b16 %v344
    %v1130 = vunpack.c.h.b16 %v344
    %v1131 = vunpack.c.l.b16 %v345
    %v1132 = vunpack.c.l.b16 %v346
    %v1133 = vunpack.c.h.b16 %v346
    %v1134 = vunpack.c.l.b16 %v347
    %v1135 = vunpack.c.h.b16 %v347
    %v1136 = vunpack.c.l.b16 %v348
    %v1137 = vunpack.c.h.b16 %v348
    %v1138 = vunpack.c.l.b16 %v349
    %v1139 = vunpack.c.h.b16 %v349
    %v1140 = vunpack.c.l.b16 %v350
    %v1141 = vunpack.c.l.b16 %v351
    %v1142 = vunpack.c.h.b16 %v351
    %v1143 = vunpack.c.l.b16 %v352
    %v1144 = vunpack.c.h.b16 %v352
    %v1145 = vunpack.c.l.b16 %v353
    %v1146 = vunpack.c.h.b16 %v353
    %v1147 = vunpack.c.l.b16 %v354
    %v1148 = vunpack.c.h.b16 %v354
    %v1149 = vunpack.c.l.b16 %v355
    %v1150 = vunpack.c.l.b16 %v356
    %v1151 = vunpack.c.h.b16 %v356
    %v1152 = vunpack.c.l.b16 %v357
    %v1153 = vunpack.c.h.b16 %v357
    %v1154 = vunpack.c.l.b16 %v358
    %v1155 = vunpack.c.h.b16 %v358
    %v1156 = vunpack.c.l.b16 %v359
    %v1157 = vunpack.c.h.b16 %v359
    %v1158 = vunpack.c.l.b16 %v360
    %v1159 = vunpack.c.l.b16 %v361
    %v1160 = vunpack.c.h.b16 %v361
    %v1161 = vunpack.c.l.b16 %v362
    %v1162 = vunpack.c.h.b16 %v362
    %v1163 = vunpack.c.l.b16 %v363
    %v1164 = vunpack.c.h.b16 %v363
    %v1165 = vunpack.c.l.b16 %v364
    %v1166 = vunpack.c.h.b16 %v364
    %v1167 = vunpack.c.l.b16 %v365
    %v1168 = vunpack.c.l.b16 %v366
    %v1169 = vunpack.c.h.b16 %v366
    %v1170 = vunpack.c.l.b16 %v367
    %v1171 = vunpack.c.h.b16 %v367
    %v1172 = vunpack.c.l.b16 %v368
    %v1173 = vunpack.c.h.b16 %v368
    %v1174 = vunpack.c.l.b16 %v369
    %v1175 = vunpack.c.h.b16 %v369
    %v1176 = vunpack.c.l.b16 %v370
    %v1177 = vunpack.c.l.b16 %v371
    %v1178 = vunpack.c.h.b16 %v371
    %v1179 = vunpack.c.l.b16 %v372
    %v1180 = vunpack.c.h.b16 %v372
    %v1181 = vunpack.c.l.b16 %v373
    %v1182 = vunpack.c.h.b16 %v373
    %v1183 = vunpack.c.l.b16 %v374
    %v1184 = vunpack.c.h.b16 %v374
    %v1185 = vunpack.c.l.b16 %v375
    %v1186 = vunpack.c.l.b16 %v376
    %v1187 = vunpack.c.h.b16 %v376
    %v1188 = vunpack.c.l.b16 %v377
    %v1189 = vunpack.c.h.b16 %v377
    %v1190 = vunpack.c.l.b16 %v378
    %v1191 = vunpack.c.h.b16 %v378
    %v1192 = vunpack.c.l.b16 %v379
    %v1193 = vunpack.c.h.b16 %v379
    %v1194 = vunpack.c.l.b16 %v380
    %v1195 = vunpack.c.l.b16 %v381
    %v1196 = vunpack.c.h.b16 %v381
    %v1197 = vunpack.c.l.b16 %v382
    %v1198 = vunpack.c.h.b16 %v382
    %v1199 = vunpack.c.l.b16 %v383
    %v1200 = vunpack.c.h.b16 %v383
    %v1201 = vunpack.c.l.b16 %v384
    %v1202 = vunpack.c.h.b16 %v384
    %v1203 = vunpack.c.l.b16 %v385
    %v1204 = vunpack.c.l.b16 %v386
    %v1205 = vunpack.c.h.b16 %v386
    %v1206 = vunpack.c.l.b16 %v387
    %v1207 = vunpack.c.h.b16 %v387
    %v1208 = vunpack.c.l.b16 %v388
    %v1209 = vunpack.c.h.b16 %v388
    %v1210 = vunpack.c.l.b16 %v389
    %v1211 = vunpack.c.h.b16 %v389
    %v1212 = vunpack.c.l.b16 %v390
    %v1213 = vunpack.c.l.b16 %v391
    %v1214 = vunpack.c.h.b16 %v391
    %v1215 = vunpack.c.l.b16 %v392
    %v1216 = vunpack.c.h.b16 %v392
    %v1217 = vunpack.c.l.b16 %v393
    %v1218 = vunpack.c.h.b16 %v393
    %v1219 = vunpack.c.l.b16 %v394
    %v1220 = vunpack.c.h.b16 %v394
    %v1221 = vunpack.c.l.b16 %v395
    %v1222 = vunpack.c.l.b16 %v396
    %v1223 = vunpack.c.h.b16 %v396
    %v1224 = vunpack.c.l.b16 %v397
    %v1225 = vunpack.c.h.b16 %v397
    %v1226 = vunpack.c.l.b16 %v398
    %v1227 = vunpack.c.h.b16 %v398
    %v1228 = vunpack.c.l.b16 %v399
    %v1229 = vunpack.c.h.b16 %v399
    %v1230 = vunpack.c.l.b16 %v400
    %v1231 = vunpack.c.l.b16 %v401
    %v1232 = vunpack.c.h.b16 %v401
    %v1233 = vunpack.c.l.b16 %v402
    %v1234 = vunpack.c.h.b16 %v402
    %v1235 = vunpack.c.l.b16 %v403
    %v1236 = vunpack.c.h.b16 %v403
    %v1237 = vunpack.c.l.b16 %v404
    %v1238 = vunpack.c.h.b16 %v404
    %v1239 = vunpack.c.l.b16 %v405
    %v1240 = vunpack.c.l.b16 %v406
    %v1241 = vunpack.c.h.b16 %v406
    %v1242 = vunpack.c.l.b16 %v407
    %v1243 = vunpack.c.h.b16 %v407
    %v1244 = vunpack.c.l.b16 %v408
    %v1245 = vunpack.c.h.b16 %v408
    %v1246 = vunpack.c.l.b16 %v409
    %v1247 = vunpack.c.h.b16 %v409
    %v1248 = vunpack.c.l.b16 %v410
    %v1249 = vunpack.c.l.b16 %v411
    %v1250 = vunpack.c.h.b16 %v411
    %v1251 = vunpack.c.l.b16 %v412
    %v1252 = vunpack.c.h.b16 %v412
    %v1253 = vunpack.c.l.b16 %v413
    %v1254 = vunpack.c.h.b16 %v413
    %v1255 = vunpack.c.l.b16 %v414
    %v1256 = vunpack.c.h.b16 %v414
    %v1257 = vunpack.c.l.b16 %v415
    %v1258 = vunpack.c.l.b16 %v416
    %v1259 = vunpack.c.h.b16 %v416
    %v1260 = vunpack.c.l.b16 %v417
    %v1261 = vunpack.c.h.b16 %v417
    %v1262 = vunpack.c.l.b16 %v418
    %v1263 = vunpack.c.h.b16 %v418
    %v1264 = vunpack.c.l.b16 %v419
    %v1265 = vunpack.c.h.b16 %v419
    %v1266 = vunpack.c.l.b16 %v420
    %v1267 = vunpack.c.l.b16 %v421
    %v1268 = vunpack.c.h.b16 %v421
    %v1269 = vunpack.c.l.b16 %v422
    %v1270 = vunpack.c.h.b16 %v422
    %v1271 = vunpack.c.l.b16 %v423
    %v1272 = vunpack.c.h.b16 %v423
    %v1273 = vunpack.c.l.b16 %v424
    %v1274 = vunpack.c.h.b16 %v424
    %v1275 = vunpack.c.l.b16 %v425
    %v1276 = vunpack.c.l.b16 %v426
    %v1277 = vunpack.c.h.b16 %v426
    %v1278 = vunpack.c.l.b16 %v427
    %v1279 = vunpack.c.h.b16 %v427
    %v1280 = vunpack.c.l.b16 %v428
    %v1281 = vunpack.c.h.b16 %v428
    %v1282 = vunpack.c.l.b16 %v429
    %v1283 = vunpack.c.h.b16 %v429
    %v1284 = vunpack.c.l.b16 %v430
    %v1285 = vunpack.c.l.b16 %v431
    %v1286 = vunpack.c.h.b16 %v431
    %v1287 = vunpack.c.l.b16 %v432
    %v1288 = vunpack.c.h.b16 %v432
    %v1289 = vunpack.c.l.b16 %v433
    %v1290 = vunpack.c.h.b16 %v433
    %v1291 = vunpack.c.l.b16 %v434
    %v1292 = vunpack.c.h.b16 %v434
    %v1293 = vunpack.c.l.b16 %v435
    %v1294 = vunpack.c.l.b16 %v436
    %v1295 = vunpack.c.h.b16 %v436
    %v1296 = vunpack.c.l.b16 %v437
    %v1297 = vunpack.c.h.b16 %v437
    %v1298 = vunpack.c.l.b16 %v438
    %v1299 = vunpack.c.h.b16 %v438
    %v1300 = vunpack.c.l.b16 %v439
    %v1301 = vunpack.c.h.b16 %v439
    %v1302 = vunpack.c.l.b16 %v440
    %v1303 = vunpack.c.l.b16 %v441
    %v1304 = vunpack.c.h.b16 %v441
    %v1305 = vunpack.c.l.b16 %v442
    %v1306 = vunpack.c.h.b16 %v442
    %v1307 = vunpack.c.l.b16 %v443
    %v1308 = vunpack.c.h.b16 %v443
    %v1309 = vunpack.c.l.b16 %v444
    %v1310 = vunpack.c.h.b16 %v444
    %v1311 = vunpack.c.l.b16 %v445
    %v1312 = vunpack.c.l.b16 %v446
    %v1313 = vunpack.c.h.b16 %v446
    %v1314 = vunpack.c.l.b16 %v447
    %v1315 = vunpack.c.h.b16 %v447
    %v1316 = vunpack.c.l.b16 %v448
    %v1317 = vunpack.c.h.b16 %v448
    %v1318 = vunpack.c.l.b16 %v449
    %v1319 = vunpack.c.h.b16 %v449
    %v1320 = vunpack.c.l.b16 %v450
    %v1321 = vunpack.c.l.b16 %v451
    %v1322 = vunpack.c.h.b16 %v451
    %v1323 = vunpack.c.l.b16 %v452
    %v1324 = vunpack.c.h.b16 %v452
    %v1325 = vunpack.c.l.b16 %v453
    %v1326 = vunpack.c.h.b16 %v453
    %v1327 = vunpack.c.l.b16 %v454
    %v1328 = vunpack.c.h.b16 %v454
    %v1329 = vunpack.c.l.b16 %v455
    %v1330 = vunpack.c.l.b16 %v456
    %v1331 = vunpack.c.h.b16 %v456
    %v1332 = vunpack.c.l.b16 %v457
    %v1333 = vunpack.c.h.b16 %v457
    %v1334 = vunpack.c.l.b16 %v458
    %v1335 = vunpack.c.h.b16 %v458
    %v1336 = vunpack.c.l.b16 %v459
    %v1337 = vunpack.c.h.b16 %v459
    %v1338 = vunpack.c.l.b16 %v460
    %v1339 = vunpack.c.l.b16 %v461
    %v1340 = vunpack.c.h.b16 %v461
    %v1341 = vunpack.c.l.b16 %v462
    %v1342 = vunpack.c.h.b16 %v462
    %v1343 = vunpack.c.l.b16 %v463
    %v1344 = vunpack.c.h.b16 %v463
    %v1345 = vunpack.c.l.b16 %v464
    %v1346 = vunpack.c.h.b16 %v464
    %v1347 = vunpack.c.l.b16 %v465
    %v1348 = vunpack.c.l.b16 %v466
    %v1349 = vunpack.c.h.b16 %v466
    %v1350 = vunpack.c.l.b16 %v467
    %v1351 = vunpack.c.h.b16 %v467
    %v1352 = vunpack.c.l.b16 %v468
    %v1353 = vunpack.c.h.b16 %v468
    %v1354 = vunpack.c.l.b16 %v469
    %v1355 = vunpack.c.h.b16 %v469
    %v1356 = vunpack.c.l.b16 %v470
    %v1357 = vunpack.c.l.b16 %v471
    %v1358 = vunpack.c.h.b16 %v471
    %v1359 = vunpack.c.l.b16 %v472
    %v1360 = vunpack.c.h.b16 %v472
    %v1361 = vunpack.c.l.b16 %v473
    %v1362 = vunpack.c.h.b16 %v473
    %v1363 = vunpack.c.l.b16 %v474
    %v1364 = vunpack.c.h.b16 %v474
    %v1365 = vunpack.c.l.b16 %v475
    %v1366 = vunpack.c.l.b16 %v476
    %v1367 = vunpack.c.h.b16 %v476
    %v1368 = vunpack.c.l.b16 %v477
    %v1369 = vunpack.c.h.b16 %v477
    %v1370 = vunpack.c.l.b16 %v478
    %v1371 = vunpack.c.h.b16 %v478
    %v1372 = vunpack.c.l.b16 %v479
    %v1373 = vunpack.c.h.b16 %v479
    %v1374 = vunpack.c.l.b16 %v480
    %v1375 = vunpack.c.l.b16 %v481
    %v1376 = vunpack.c.h.b16 %v481
    %v1377 = vunpack.c.l.b16 %v482
    %v1378 = vunpack.c.h.b16 %v482
    %v1379 = vunpack.c.l.b16 %v483
    %v1380 = vunpack.c.h.b16 %v483
    %v1381 = vunpack.c.l.b16 %v484
    %v1382 = vunpack.c.h.b16 %v484
    %v1383 = vunpack.c.l.b16 %v485
    %v1384 = vunpack.c.l.b16 %v486
    %v1385 = vunpack.c.h.b16 %v486
    %v1386 = vunpack.c.l.b16 %v487
    %v1387 = vunpack.c.h.b16 %v487
    %v1388 = vunpack.c.l.b16 %v488
    %v1389 = vunpack.c.h.b16 %v488
    %v1390 = vunpack.c.l.b16 %v489
    %v1391 = vunpack.c.h.b16 %v489
    %v1392 = vunpack.c.l.b16 %v490
    %v1393 = vunpack.c.l.b16 %v491
    %v1394 = vunpack.c.h.b16 %v491
    %v1395 = vunpack.c.l.b16 %v492
    %v1396 = vunpack.c.h.b16 %v492
    %v1397 = vunpack.c.l.b16 %v493
    %v1398 = vunpack.c.h.b16 %v493
    %v1399 = vunpack.c.l.b16 %v494
    %v1400 = vunpack.c.h.b16 %v494
    %v1401 = vunpack.c.l.b16 %v495
    %v1402 = vunpack.c.l.b16 %v496
    %v1403 = vunpack.c.h.b16 %v496
    %v1404 = vunpack.c.l.b16 %v497
    %v1405 = vunpack.c.h.b16 %v497
    %v1406 = vunpack.c.l.b16 %v498
    %v1407 = vunpack.c.h.b16 %v498
    %v1408 = vunpack.c.l.b16 %v499
    %v1409 = vunpack.c.h.b16 %v499
    %v1410 = vunpack.c.l.b16 %v500
    %v1411 = vunpack.c.l.b16 %v501
    %v1412 = vunpack.c.h.b16 %v501
    %v1413 = vunpack.c.l.b16 %v502
    %v1414 = vunpack.c.h.b16 %v502
    %v1415 = vunpack.c.l.b16 %v503
    %v1416 = vunpack.c.h.b16 %v503
    %v1417 = vunpack.c.l.b16 %v504
    %v1418 = vunpack.c.h.b16 %v504
    %v1419 = vunpack.c.l.b16 %v505
    %v1420 = vunpack.c.l.b16 %v506
    %v1421 = vunpack.c.h.b16 %v506
    %v1422 = vunpack.c.l.b16 %v507
    %v1423 = vunpack.c.h.b16 %v507
    %v1424 = vunpack.c.l.b16 %v508
    %v1425 = vunpack.c.h.b16 %v508
    %v1426 = vunpack.c.l.b16 %v509
    %v1427 = vunpack.c.h.b16 %v509
    %v1428 = vunpack.c.l.b16 %v510
    %v1429 = vunpack.c.l.b16 %v511
    %v1430 = vunpack.c.h.b16 %v511
    %v1431 = vunpack.c.l.b16 %v512
    %v1432 = vunpack.c.h.b16 %v512
    %v1433 = vunpack.c.l.b16 %v513
    %v1434 = vunpack.c.h.b16 %v513
    %v1435 = vunpack.c.l.b16 %v514
    %v1436 = vunpack.c.h.b16 %v514
    %v1437 = vunpack.c.l.b16 %v515
    %v1438 = vunpack.c.l.b16 %v516
    %v1439 = vunpack.c.h.b16 %v516
    %v1440 = vunpack.c.l.b16 %v517
    %v1441 = vunpack.c.h.b16 %v517
    %v1442 = vunpack.c.l.b16 %v518
    %v1443 = vunpack.c.h.b16 %v518
    %v1444 = vunpack.c.l.b16 %v519
    %v1445 = vunpack.c.h.b16 %v519
    %v1446 = vunpack.c.l.b16 %v520
    %v1447 = vunpack.c.l.b16 %v521
    %v1448 = vunpack.c.h.b16 %v521
    %v1449 = vunpack.c.l.b16 %v522
    %v1450 = vunpack.c.h.b16 %v522
    %v1451 = vunpack.c.l.b16 %v523
    %v1452 = vunpack.c.h.b16 %v523
    %v1453 = vunpack.c.l.b16 %v524
    %v1454 = vunpack.c.h.b16 %v524
    %v1455 = vunpack.c.l.b16 %v525
    %v1456 = vunpack.c.l.b16 %v526
    %v1457 = vunpack.c.h.b16 %v526
    %v1458 = vunpack.c.l.b16 %v527
    %v1459 = vunpack.c.h.b16 %v527
    %v1460 = vunpack.c.l.b16 %v528
    %v1461 = vunpack.c.h.b16 %v528
    %v1462 = vunpack.c.l.b16 %v529
    %v1463 = vunpack.c.h.b16 %v529
    %v1464 = vunpack.c.l.b16 %v530
    %v1465 = vunpack.c.l.b16 %v531
    %v1466 = vunpack.c.h.b16 %v531
    %v1467 = vunpack.c.l.b16 %v532
    %v1468 = vunpack.c.h.b16 %v532
    %v1469 = vunpack.c.l.b16 %v533
    %v1470 = vunpack.c.h.b16 %v533
    %v1471 = vunpack.c.l.b16 %v534
    %v1472 = vunpack.c.h.b16 %v534
    %v1473 = vunpack.c.l.b16 %v535
    %v1474 = vunpack.c.l.b16 %v536
    %v1475 = vunpack.c.h.b16 %v536
    %v1476 = vunpack.c.l.b16 %v537
    %v1477 = vunpack.c.h.b16 %v537
    %v1478 = vunpack.c.l.b16 %v538
    %v1479 = vunpack.c.h.b16 %v538
    %v1480 = vunpack.c.l.b16 %v539
    %v1481 = vunpack.c.h.b16 %v539
    %v1482 = vunpack.c.l.b16 %v540
    %v1483 = vunpack.c.l.b16 %v541
    %v1484 = vunpack.c.h.b16 %v541
    %v1485 = vunpack.c.l.b16 %v542
    %v1486 = vunpack.c.h.b16 %v542
    %v1487 = vunpack.c.l.b16 %v543
    %v1488 = vunpack.c.h.b16 %v543
    %v1489 = vunpack.c.l.b16 %v544
    %v1490 = vunpack.c.h.b16 %v544
    %v1491 = vunpack.c.l.b16 %v545
    %v1492 = vunpack.c.l.b16 %v546
    %v1493 = vunpack.c.h.b16 %v546
    %v1494 = vunpack.c.l.b16 %v547
    %v1495 = vunpack.c.h.b16 %v547
    %v1496 = vunpack.c.l.b16 %v548
    %v1497 = vunpack.c.h.b16 %v548
    %v1498 = vunpack.c.l.b16 %v549
    %v1499 = vunpack.c.h.b16 %v549
    %v1500 = vunpack.c.l.b16 %v550
    %v1501 = vunpack.c.l.b16 %v551
    %v1502 = vunpack.c.h.b16 %v551
    %v1503 = vunpack.c.l.b16 %v552
    %v1504 = vunpack.c.h.b16 %v552
    %v1505 = vunpack.c.l.b16 %v553
    %v1506 = vunpack.c.h.b16 %v553
    %v1507 = vunpack.c.l.b16 %v554
    %v1508 = vunpack.c.h.b16 %v554
    %v1509 = vunpack.c.l.b16 %v555
    %v1510 = vunpack.c.l.b16 %v556
    %v1511 = vunpack.c.h.b16 %v556
    %v1512 = vunpack.c.l.b16 %v557
    %v1513 = vunpack.c.h.b16 %v557
    %v1514 = vunpack.c.l.b16 %v558
    %v1515 = vunpack.c.h.b16 %v558
    %v1516 = vunpack.c.l.b16 %v559
    %v1517 = vunpack.c.h.b16 %v559
    %v1518 = vunpack.c.l.b16 %v560
    %v1519 = vunpack.c.l.b16 %v561
    %v1520 = vunpack.c.h.b16 %v561
    %v1521 = vunpack.c.l.b16 %v562
    %v1522 = vunpack.c.h.b16 %v562
    %v1523 = vunpack.c.l.b16 %v563
    %v1524 = vunpack.c.h.b16 %v563
    %v1525 = vunpack.c.l.b16 %v564
    %v1526 = vunpack.c.h.b16 %v564
    %v1527 = vunpack.c.l.b16 %v565
    %v1528 = vunpack.c.l.b16 %v566
    %v1529 = vunpack.c.h.b16 %v566
    %v1530 = vunpack.c.l.b16 %v567
    %v1531 = vunpack.c.h.b16 %v567
    %v1532 = vunpack.c.l.b16 %v568
    %v1533 = vunpack.c.h.b16 %v568
    %v1534 = vunpack.c.l.b16 %v569
    %v1535 = vunpack.c.h.b16 %v569
    %v1536 = vunpack.c.l.b16 %v570
    %v1537 = vunpack.c.l.b16 %v571
    %v1538 = vunpack.c.h.b16 %v571
    %v1539 = vunpack.c.l.b16 %v572
    %v1540 = vunpack.c.h.b16 %v572
    %v1541 = vunpack.c.l.b16 %v573
    %v1542 = vunpack.c.h.b16 %v573
    %v1543 = vunpack.c.l.b16 %v574
    %v1544 = vunpack.c.h.b16 %v574
    %v1545 = vunpack.c.l.b16 %v575
    %v1546 = vunpack.c.l.b16 %v576
    %v1547 = vunpack.c.h.b16 %v576
    %v1548 = vunpack.c.l.b16 %v577
    %v1549 = vunpack.c.h.b16 %v577
    %v1550 = vunpack.c.l.b16 %v578
    %v1551 = vunpack.c.h.b16 %v578
    %v1552 = vunpack.c.l.b16 %v579
    %v1553 = vunpack.c.h.b16 %v579
    %v1554 = vunpack.c.l.b16 %v580
    %v1555 = vunpack.c.l.b16 %v581
    %v1556 = vunpack.c.h.b16 %v581
    %v1557 = vunpack.c.l.b16 %v582
    %v1558 = vunpack.c.h.b16 %v582
    %v1559 = vunpack.c.l.b16 %v583
    %v1560 = vunpack.c.h.b16 %v583
    %v1561 = vunpack.c.l.b16 %v584
    %v1562 = vunpack.c.h.b16 %v584
    %v1563 = vunpack.c.l.b16 %v585
    %v1564 = vunpack.c.l.b16 %v586
    %v1565 = vunpack.c.h.b16 %v586
    %v1566 = vunpack.c.l.b16 %v587
    %v1567 = vunpack.c.h.b16 %v587
    %v1568 = vunpack.c.l.b16 %v588
    %v1569 = vunpack.c.h.b16 %v588
    %v1570 = vunpack.c.l.b16 %v589
    %v1571 = vunpack.c.h.b16 %v589
    %v1572 = vunpack.c.l.b16 %v590
    %v1573 = vunpack.c.l.b16 %v591
    %v1574 = vunpack.c.h.b16 %v591
    %v1575 = vunpack.c.l.b16 %v592
    %v1576 = vunpack.c.h.b16 %v592
    %v1577 = vunpack.c.l.b16 %v593
    %v1578 = vunpack.c.h.b16 %v593
    %v1579 = vunpack.c.l.b16 %v594
    %v1580 = vunpack.c.h.b16 %v594
    %v1581 = vunpack.c.l.b16 %v595
    %v1582 = vunpack.c.l.b16 %v596
    %v1583 = vunpack.c.h.b16 %v596
    %v1584 = vunpack.c.l.b16 %v597
    %v1585 = vunpack.c.h.b16 %v597
    %v1586 = vunpack.c.l.b16 %v598
    %v1587 = vunpack.c.h.b16 %v598
    %v1588 = vunpack.c.l.b16 %v599
    %v1589 = vunpack.c.h.b16 %v599
    %v1590 = vunpack.c.l.b16 %v600
    %v1591 = vunpack.c.l.b16 %v601
    %v1592 = vunpack.c.h.b16 %v601
    %v1593 = vunpack.c.l.b16 %v602
    %v1594 = vunpack.c.h.b16 %v602
    %v1595 = vunpack.c.l.b16 %v603
    %v1596 = vunpack.c.h.b16 %v603
    %v1597 = vunpack.c.l.b16 %v604
    %v1598 = vunpack.c.h.b16 %v604
    %v1599 = vunpack.c.l.b16 %v605
    %v1600 = vunpack.c.l.b16 %v606
    %v1601 = vunpack.c.h.b16 %v606
    %v1602 = vunpack.c.l.b16 %v607
    %v1603 = vunpack.c.h.b16 %v607
    %v1604 = vunpack.c.l.b16 %v608
    %v1605 = vunpack.c.h.b16 %v608
    %v1606 = vunpack.c.l.b16 %v609
    %v1607 = vunpack.c.h.b16 %v609
    %v1608 = vunpack.c.l.b16 %v610
    %v1609 = vunpack.c.l.b16 %v611
    %v1610 = vunpack.c.h.b16 %v611
    %v1611 = vunpack.c.l.b16 %v612
    %v1612 = vunpack.c.h.b16 %v612
    %v1613 = vunpack.c.l.b16 %v613
    %v1614 = vunpack.c.h.b16 %v613
    %v1615 = vunpack.c.l.b16 %v614
    %v1616 = vunpack.c.h.b16 %v614
    %v1617 = vunpack.c.l.b16 %v615
    %v1618 = vunpack.c.l.b16 %v616
    %v1619 = vunpack.c.h.b16 %v616
    %v1620 = vunpack.c.l.b16 %v617
    %v1621 = vunpack.c.h.b16 %v617
    %v1622 = vunpack.c.l.b16 %v618
    %v1623 = vunpack.c.h.b16 %v618
    %v1624 = vunpack.c.l.b16 %v619
    %v1625 = vunpack.c.h.b16 %v619
    %v1626 = vunpack.c.l.b16 %v620
    %v1627 = vunpack.c.l.b16 %v621
    %v1628 = vunpack.c.h.b16 %v621
    %v1629 = vunpack.c.l.b16 %v622
    %v1630 = vunpack.c.h.b16 %v622
    %v1631 = vunpack.c.l.b16 %v623
    %v1632 = vunpack.c.h.b16 %v623
    %v1633 = vunpack.c.l.b16 %v624
    %v1634 = vunpack.c.h.b16 %v624
    %v1635 = vunpack.c.l.b16 %v625
    %v1636 = vunpack.c.l.b16 %v626
    %v1637 = vunpack.c.h.b16 %v626
    %v1638 = vunpack.c.l.b16 %v627
    %v1639 = vunpack.c.h.b16 %v627
    %v1640 = vunpack.c.l.b16 %v628
    %v1641 = vunpack.c.h.b16 %v628
    %v1642 = vunpack.c.l.b16 %v629
    %v1643 = vunpack.c.h.b16 %v629
    %v1644 = vunpack.c.l.b16 %v630
    %v1645 = vunpack.c.l.b16 %v631
    %v1646 = vunpack.c.h.b16 %v631
    %v1647 = vunpack.c.l.b16 %v632
    %v1648 = vunpack.c.h.b16 %v632
    %v1649 = vunpack.c.l.b16 %v633
    %v1650 = vunpack.c.h.b16 %v633
    %v1651 = vunpack.c.l.b16 %v634
    %v1652 = vunpack.c.h.b16 %v634
    %v1653 = vunpack.c.l.b16 %v635
    %v1654 = vunpack.c.l.b16 %v636
    %v1655 = vunpack.c.h.b16 %v636
    %v1656 = vunpack.c.l.b16 %v637
    %v1657 = vunpack.c.h.b16 %v637
    %v1658 = vunpack.c.l.b16 %v638
    %v1659 = vunpack.c.h.b16 %v638
    %v1660 = vunpack.c.l.b16 %v639
    %v1661 = vunpack.c.h.b16 %v639
    %v1662 = vunpack.c.l.b16 %v640
    %v1663 = vunpack.c.l.b16 %v641
    %v1664 = vunpack.c.h.b16 %v641
    %v1665 = vunpack.c.l.b16 %v642
    %v1666 = vunpack.c.h.b16 %v642
    %v1667 = vunpack.c.l.b16 %v643
    %v1668 = vunpack.c.h.b16 %v643
    %v1669 = vunpack.c.l.b16 %v644
    %v1670 = vunpack.c.h.b16 %v644
    %v1671 = vunpack.c.l.b16 %v645
    %v1672 = vunpack.c.l.b16 %v646
    %v1673 = vunpack.c.h.b16 %v646
    %v1674 = vunpack.c.l.b16 %v647
    %v1675 = vunpack.c.h.b16 %v647
    %v1676 = vunpack.c.l.b16 %v648
    %v1677 = vunpack.c.h.b16 %v648
    %v1678 = vunpack.c.l.b16 %v649
    %v1679 = vunpack.c.h.b16 %v649
    %v1680 = vunpack.c.l.b16 %v650
    %v1681 = vpack.c.b16 %v1042, %v1033
    %v1682 = vpack.c.b16 %v1043, %v1034
    %v1683 = vpack.c.b16 %v1044, %v1035
    %v1684 = vpack.c.b16 %v1045, %v1036
    %v1685 = vpack.c.b16 %v1046, %v1037
    %v1686 = vpack.c.b16 %v1047, %v1038
    %v1687 = vpack.c.b16 %v1048, %v1039
    %v1688 = vpack.c.b16 %v1049, %v1040
    %v1689 = vpack.c.b16 %v1050, %v1041
    %v1690 = vpack.c.b16 %v1060, %v1051
    %v1691 = vpack.c.b16 %v1061, %v1052
    %v1692 = vpack.c.b16 %v1062, %v1053
    %v1693 = vpack.c.b16 %v1063, %v1054
    %v1694 = vpack.c.b16 %v1064, %v1055
    %v1695 = vpack.c.b16 %v1065, %v1056
    %v1696 = vpack.c.b16 %v1066, %v1057
    %v1697 = vpack.c.b16 %v1067, %v1058
    %v1698 = vpack.c.b16 %v1068, %v1059
    %v1699 = vpack.c.b16 %v1078, %v1069
    %v1700 = vpack.c.b16 %v1079, %v1070
    %v1701 = vpack.c.b16 %v1080, %v1071
    %v1702 = vpack.c.b16 %v1081, %v1072
    %v1703 = vpack.c.b16 %v1082, %v1073
    %v1704 = vpack.c.b16 %v1083, %v1074
    %v1705 = vpack.c.b16 %v1084, %v1075
    %v1706 = vpack.c.b16 %v1085, %v1076
    %v1707 = vpack.c.b16 %v1086, %v1077
    %v1708 = vpack.c.b16 %v1096, %v1087
    %v1709 = vpack.c.b16 %v1097, %v1088
    %v1710 = vpack.c.b16 %v1098, %v1089
    %v1711 = vpack.c.b16 %v1099, %v1090
    %v1712 = vpack.c.b16 %v1100, %v1091
    %v1713 = vpack.c.b16 %v1101, %v1092
    %v1714 = vpack.c.b16 %v1102, %v1093
    %v1715 = vpack.c.b16 %v1103, %v1094
    %v1716 = vpack.c.b16 %v1104, %v1095
    %v1717 = vpack.c.b16 %v1114, %v1105
    %v1718 = vpack.c.b16 %v1115, %v1106
    %v1719 = vpack.c.b16 %v1116, %v1107
    %v1720 = vpack.c.b16 %v1117, %v1108
    %v1721 = vpack.c.b16 %v1118, %v1109
    %v1722 = vpack.c.b16 %v1119, %v1110
    %v1723 = vpack.c.b16 %v1120, %v1111
    %v1724 = vpack.c.b16 %v1121, %v1112
    %v1725 = vpack.c.b16 %v1122, %v1113
    %v1726 = vpack.c.b16 %v1132, %v1123
    %v1727 = vpack.c.b16 %v1133, %v1124
    %v1728 = vpack.c.b16 %v1134, %v1125
    %v1729 = vpack.c.b16 %v1135, %v1126
    %v1730 = vpack.c.b16 %v1136, %v1127
    %v1731 = vpack.c.b16 %v1137, %v1128
    %v1732 = vpack.c.b16 %v1138, %v1129
    %v1733 = vpack.c.b16 %v1139, %v1130
    %v1734 = vpack.c.b16 %v1140, %v1131
    %v1735 = vpack.c.b16 %v1150, %v1141
    %v1736 = vpack.c.b16 %v1151, %v1142
    %v1737 = vpack.c.b16 %v1152, %v1143
    %v1738 = vpack.c.b16 %v1153, %v1144
    %v1739 = vpack.c.b16 %v1154, %v1145
    %v1740 = vpack.c.b16 %v1155, %v1146
    %v1741 = vpack.c.b16 %v1156, %v1147
    %v1742 = vpack.c.b16 %v1157, %v1148
    %v1743 = vpack.c.b16 %v1158, %v1149
    %v1744 = vpack.c.b16 %v1168, %v1159
    %v1745 = vpack.c.b16 %v1169, %v1160
    %v1746 = vpack.c.b16 %v1170, %v1161
    %v1747 = vpack.c.b16 %v1171, %v1162
    %v1748 = vpack.c.b16 %v1172, %v1163
    %v1749 = vpack.c.b16 %v1173, %v1164
    %v1750 = vpack.c.b16 %v1174, %v1165
    %v1751 = vpack.c.b16 %v1175, %v1166
    %v1752 = vpack.c.b16 %v1176, %v1167
    %v1753 = vpack.c.b16 %v1186, %v1177
    %v1754 = vpack.c.b16 %v1187, %v1178
    %v1755 = vpack.c.b16 %v1188, %v1179
    %v1756 = vpack.c.b16 %v1189, %v1180
    %v1757 = vpack.c.b16 %v1190, %v1181
    %v1758 = vpack.c.b16 %v1191, %v1182
    %v1759 = vpack.c.b16 %v1192, %v1183
    %v1760 = vpack.c.b16 %v1193, %v1184
    %v1761 = vpack.c.b16 %v1194, %v1185
    %v1762 = vpack.c.b16 %v1204, %v1195
    %v1763 = vpack.c.b16 %v1205, %v1196
    %v1764 = vpack.c.b16 %v1206, %v1197
    %v1765 = vpack.c.b16 %v1207, %v1198
    %v1766 = vpack.c.b16 %v1208, %v1199
    %v1767 = vpack.c.b16 %v1209, %v1200
    %v1768 = vpack.c.b16 %v1210, %v1201
    %v1769 = vpack.c.b16 %v1211, %v1202
    %v1770 = vpack.c.b16 %v1212, %v1203
    %v1771 = vpack.c.b16 %v1222, %v1213
    %v1772 = vpack.c.b16 %v1223, %v1214
    %v1773 = vpack.c.b16 %v1224, %v1215
    %v1774 = vpack.c.b16 %v1225, %v1216
    %v1775 = vpack.c.b16 %v1226, %v1217
    %v1776 = vpack.c.b16 %v1227, %v1218
    %v1777 = vpack.c.b16 %v1228, %v1219
    %v1778 = vpack.c.b16 %v1229, %v1220
    %v1779 = vpack.c.b16 %v1230, %v1221
    %v1780 = vpack.c.b16 %v1240, %v1231
    %v1781 = vpack.c.b16 %v1241, %v1232
    %v1782 = vpack.c.b16 %v1242, %v1233
    %v1783 = vpack.c.b16 %v1243, %v1234
    %v1784 = vpack.c.b16 %v1244, %v1235
    %v1785 = vpack.c.b16 %v1245, %v1236
    %v1786 = vpack.c.b16 %v1246, %v1237
    %v1787 = vpack.c.b16 %v1247, %v1238
    %v1788 = vpack.c.b16 %v1248, %v1239
    %v1789 = vpack.c.b16 %v1258, %v1249
    %v1790 = vpack.c.b16 %v1259, %v1250
    %v1791 = vpack.c.b16 %v1260, %v1251
    %v1792 = vpack.c.b16 %v1261, %v1252
    %v1793 = vpack.c.b16 %v1262, %v1253
    %v1794 = vpack.c.b16 %v1263, %v1254
    %v1795 = vpack.c.b16 %v1264, %v1255
    %v1796 = vpack.c.b16 %v1265, %v1256
    %v1797 = vpack.c.b16 %v1266, %v1257
    %v1798 = vpack.c.b16 %v1276, %v1267
    %v1799 = vpack.c.b16 %v1277, %v1268
    %v1800 = vpack.c.b16 %v1278, %v1269
    %v1801 = vpack.c.b16 %v1279, %v1270
    %v1802 = vpack.c.b16 %v1280, %v1271
    %v1803 = vpack.c.b16 %v1281, %v1272
    %v1804 = vpack.c.b16 %v1282, %v1273
    %v1805 = vpack.c.b16 %v1283, %v1274
    %v1806 = vpack.c.b16 %v1284, %v1275
    %v1807 = vpack.c.b16 %v1294, %v1285
    %v1808 = vpack.c.b16 %v1295, %v1286
    %v1809 = vpack.c.b16 %v1296, %v1287
    %v1810 = vpack.c.b16 %v1297, %v1288
    %v1811 = vpack.c.b16 %v1298, %v1289
    %v1812 = vpack.c.b16 %v1299, %v1290
    %v1813 = vpack.c.b16 %v1300, %v1291
    %v1814 = vpack.c.b16 %v1301, %v1292
    %v1815 = vpack.c.b16 %v1302, %v1293
    %v1816 = vpack.c.b16 %v1312, %v1303
    %v1817 = vpack.c.b16 %v1313, %v1304
    %v1818 = vpack.c.b16 %v1314, %v1305
    %v1819 = vpack.c.b16 %v1315, %v1306
    %v1820 = vpack.c.b16 %v1316, %v1307
    %v1821 = vpack.c.b16 %v1317, %v1308
    %v1822 = vpack.c.b16 %v1318, %v1309
    %v1823 = vpack.c.b16 %v1319, %v1310
    %v1824 = vpack.c.b16 %v1320, %v1311
    %v1825 = vpack.c.b16 %v1330, %v1321
    %v1826 = vpack.c.b16 %v1331, %v1322
    %v1827 = vpack.c.b16 %v1332, %v1323
    %v1828 = vpack.c.b16 %v1333, %v1324
    %v1829 = vpack.c.b16 %v1334, %v1325
    %v1830 = vpack.c.b16 %v1335, %v1326
    %v1831 = vpack.c.b16 %v1336, %v1327
    %v1832 = vpack.c.b16 %v1337, %v1328
    %v1833 = vpack.c.b16 %v1338, %v1329
    %v1834 = vpack.c.b16 %v1348, %v1339
    %v1835 = vpack.c.b16 %v1349, %v1340
    %v1836 = vpack.c.b16 %v1350, %v1341
    %v1837 = vpack.c.b16 %v1351, %v1342
    %v1838 = vpack.c.b16 %v1352, %v1343
    %v1839 = vpack.c.b16 %v1353, %v1344
    %v1840 = vpack.c.b16 %v1354, %v1345
    %v1841 = vpack.c.b16 %v1355, %v1346
    %v1842 = vpack.c.b16 %v1356, %v1347
    %v1843 = vpack.c.b16 %v1366, %v1357
    %v1844 = vpack.c.b16 %v1367, %v1358
    %v1845 = vpack.c.b16 %v1368, %v1359
    %v1846 = vpack.c.b16 %v1369, %v1360
    %v1847 = vpack.c.b16 %v1370, %v1361
    %v1848 = vpack.c.b16 %v1371, %v1362
    %v1849 = vpack.c.b16 %v1372, %v1363
    %v1850 = vpack.c.b16 %v1373, %v1364
    %v1851 = vpack.c.b16 %v1374, %v1365
    %v1852 = vpack.c.b16 %v1384, %v1375
    %v1853 = vpack.c.b16 %v1385, %v1376
    %v1854 = vpack.c.b16 %v1386, %v1377
    %v1855 = vpack.c.b16 %v1387, %v1378
    %v1856 = vpack.c.b16 %v1388, %v1379
    %v1857 = vpack.c.b16 %v1389, %v1380
    %v1858 = vpack.c.b16 %v1390, %v1381
    %v1859 = vpack.c.b16 %v1391, %v1382
    %v1860 = vpack.c.b16 %v1392, %v1383
    %v1861 = vpack.c.b16 %v1402, %v1393
    %v1862 = vpack.c.b16 %v1403, %v1394
    %v1863 = vpack.c.b16 %v1404, %v1395
    %v1864 = vpack.c.b16 %v1405, %v1396
    %v1865 = vpack.c.b16 %v1406, %v1397
    %v1866 = vpack.c.b16 %v1407, %v1398
    %v1867 = vpack.c.b16 %v1408, %v1399
    %v1868 = vpack.c.b16 %v1409, %v1400
    %v1869 = vpack.c.b16 %v1410, %v1401
    %v1870 = vpack.c.b16 %v1420, %v1411
    %v1871 = vpack.c.b16 %v1421, %v1412
    %v1872 = vpack.c.b16 %v1422, %v1413
    %v1873 = vpack.c.b16 %v1423, %v1414
    %v1874 = vpack.c.b16 %v1424, %v1415
    %v1875 = vpack.c.b16 %v1425, %v1416
    %v1876 = vpack.c.b16 %v1426, %v1417
    %v1877 = vpack.c.b16 %v1427, %v1418
    %v1878 = vpack.c.b16 %v1428, %v1419
    %v1879 = vpack.c.b16 %v1438, %v1429
    %v1880 = vpack.c.b16 %v1439, %v1430
    %v1881 = vpack.c.b16 %v1440, %v1431
    %v1882 = vpack.c.b16 %v1441, %v1432
    %v1883 = vpack.c.b16 %v1442, %v1433
    %v1884 = vpack.c.b16 %v1443, %v1434
    %v1885 = vpack.c.b16 %v1444, %v1435
    %v1886 = vpack.c.b16 %v1445, %v1436
    %v1887 = vpack.c.b16 %v1446, %v1437
    %v1888 = vpack.c.b16 %v1456, %v1447
    %v1889 = vpack.c.b16 %v1457, %v1448
    %v1890 = vpack.c.b16 %v1458, %v1449
    %v1891 = vpack.c.b16 %v1459, %v1450
    %v1892 = vpack.c.b16 %v1460, %v1451
    %v1893 = vpack.c.b16 %v1461, %v1452
    %v1894 = vpack.c.b16 %v1462, %v1453
    %v1895 = vpack.c.b16 %v1463, %v1454
    %v1896 = vpack.c.b16 %v1464, %v1455
    %v1897 = vpack.c.b16 %v1474, %v1465
    %v1898 = vpack.c.b16 %v1475, %v1466
    %v1899 = vpack.c.b16 %v1476, %v1467
    %v1900 = vpack.c.b16 %v1477, %v1468
    %v1901 = vpack.c.b16 %v1478, %v1469
    %v1902 = vpack.c.b16 %v1479, %v1470
    %v1903 = vpack.c.b16 %v1480, %v1471
    %v1904 = vpack.c.b16 %v1481, %v1472
    %v1905 = vpack.c.b16 %v1482, %v1473
    %v1906 = vpack.c.b16 %v1492, %v1483
    %v1907 = vpack.c.b16 %v1493, %v1484
    %v1908 = vpack.c.b16 %v1494, %v1485
    %v1909 = vpack.c.b16 %v1495, %v1486
    %v1910 = vpack.c.b16 %v1496, %v1487
    %v1911 = vpack.c.b16 %v1497, %v1488
    %v1912 = vpack.c.b16 %v1498, %v1489
    %v1913 = vpack.c.b16 %v1499, %v1490
    %v1914 = vpack.c.b16 %v1500, %v1491
    %v1915 = vpack.c.b16 %v1510, %v1501
    %v1916 = vpack.c.b16 %v1511, %v1502
    %v1917 = vpack.c.b16 %v1512, %v1503
    %v1918 = vpack.c.b16 %v1513, %v1504
    %v1919 = vpack.c.b16 %v1514, %v1505
    %v1920 = vpack.c.b16 %v1515, %v1506
    %v1921 = vpack.c.b16 %v1516, %v1507
    %v1922 = vpack.c.b16 %v1517, %v1508
    %v1923 = vpack.c.b16 %v1518, %v1509
    %v1924 = vpack.c.b16 %v1528, %v1519
    %v1925 = vpack.c.b16 %v1529, %v1520
    %v1926 = vpack.c.b16 %v1530, %v1521
    %v1927 = vpack.c.b16 %v1531, %v1522
    %v1928 = vpack.c.b16 %v1532, %v1523
    %v1929 = vpack.c.b16 %v1533, %v1524
    %v1930 = vpack.c.b16 %v1534, %v1525
    %v1931 = vpack.c.b16 %v1535, %v1526
    %v1932 = vpack.c.b16 %v1536, %v1527
    %v1933 = vpack.c.b16 %v1546, %v1537
    %v1934 = vpack.c.b16 %v1547, %v1538
    %v1935 = vpack.c.b16 %v1548, %v1539
    %v1936 = vpack.c.b16 %v1549, %v1540
    %v1937 = vpack.c.b16 %v1550, %v1541
    %v1938 = vpack.c.b16 %v1551, %v1542
    %v1939 = vpack.c.b16 %v1552, %v1543
    %v1940 = vpack.c.b16 %v1553, %v1544
    %v1941 = vpack.c.b16 %v1554, %v1545
    %v1942 = vpack.c.b16 %v1564, %v1555
    %v1943 = vpack.c.b16 %v1565, %v1556
    %v1944 = vpack.c.b16 %v1566, %v1557
    %v1945 = vpack.c.b16 %v1567, %v1558
    %v1946 = vpack.c.b16 %v1568, %v1559
    %v1947 = vpack.c.b16 %v1569, %v1560
    %v1948 = vpack.c.b16 %v1570, %v1561
    %v1949 = vpack.c.b16 %v1571, %v1562
    %v1950 = vpack.c.b16 %v1572, %v1563
    %v1951 = vpack.c.b16 %v1582, %v1573
    %v1952 = vpack.c.b16 %v1583, %v1574
    %v1953 = vpack.c.b16 %v1584, %v1575
    %v1954 = vpack.c.b16 %v1585, %v1576
    %v1955 = vpack.c.b16 %v1586, %v1577
    %v1956 = vpack.c.b16 %v1587, %v1578
    %v1957 = vpack.c.b16 %v1588, %v1579
    %v1958 = vpack.c.b16 %v1589, %v1580
    %v1959 = vpack.c.b16 %v1590, %v1581
    %v1960 = vpack.c.b16 %v1600, %v1591
    %v1961 = vpack.c.b16 %v1601, %v1592
    %v1962 = vpack.c.b16 %v1602, %v1593
    %v1963 = vpack.c.b16 %v1603, %v1594
    %v1964 = vpack.c.b16 %v1604, %v1595
    %v1965 = vpack.c.b16 %v1605, %v1596
    %v1966 = vpack.c.b16 %v1606, %v1597
    %v1967 = vpack.c.b16 %v1607, %v1598
    %v1968 = vpack.c.b16 %v1608, %v1599
    %v1969 = vpack.c.b16 %v1618, %v1609
    %v1970 = vpack.c.b16 %v1619, %v1610
    %v1971 = vpack.c.b16 %v1620, %v1611
    %v1972 = vpack.c.b16 %v1621, %v1612
    %v1973 = vpack.c.b16 %v1622, %v1613
    %v1974 = vpack.c.b16 %v1623, %v1614
    %v1975 = vpack.c.b16 %v1624, %v1615
    %v1976 = vpack.c.b16 %v1625, %v1616
    %v1977 = vpack.c.b16 %v1626, %v1617
    %v1978 = vpack.c.b16 %v1636, %v1627
    %v1979 = vpack.c.b16 %v1637, %v1628
    %v1980 = vpack.c.b16 %v1638, %v1629
    %v1981 = vpack.c.b16 %v1639, %v1630
    %v1982 = vpack.c.b16 %v1640, %v1631
    %v1983 = vpack.c.b16 %v1641, %v1632
    %v1984 = vpack.c.b16 %v1642, %v1633
    %v1985 = vpack.c.b16 %v1643, %v1634
    %v1986 = vpack.c.b16 %v1644, %v1635
    %v1987 = vpack.c.b16 %v1654, %v1645
    %v1988 = vpack.c.b16 %v1655, %v1646
    %v1989 = vpack.c.b16 %v1656, %v1647
    %v1990 = vpack.c.b16 %v1657, %v1648
    %v1991 = vpack.c.b16 %v1658, %v1649
    %v1992 = vpack.c.b16 %v1659, %v1650
    %v1993 = vpack.c.b16 %v1660, %v1651
    %v1994 = vpack.c.b16 %v1661, %v1652
    %v1995 = vpack.c.b16 %v1662, %v1653
    %v1996 = vpack.c.b16 %v1672, %v1663
    %v1997 = vpack.c.b16 %v1673, %v1664
    %v1998 = vpack.c.b16 %v1674, %v1665
    %v1999 = vpack.c.b16 %v1675, %v1666
    %v2000 = vpack.c.b16 %v1676, %v1667
    %v2001 = vpack.c.b16 %v1677, %v1668
    %v2002 = vpack.c.b16 %v1678, %v1669
    %v2003 = vpack.c.b16 %v1679, %v1670
    %v2004 = vpack.c.b16 %v1680, %v1671
    %vm2329 = vcmask 523264
    %v2331 = vsel %vm2329, %v290, 0
    %2333 = vmatpush.bf16.msra.mxu0 %v1744
    %2334 = vmatpush.bf16.msra.mxu0 %v1735
    %2335 = vmatpush.bf16.msra.mxu0 %v1726
    %2336 = vmatpush.bf16.msra.mxu0 %v1717
    %2337 = vmatpush.bf16.msra.mxu0 %v1708
    %2338 = vmatpush.bf16.msra.mxu0 %v1699
    %2339 = vmatpush.bf16.msra.mxu0 %v1690
    %2340 = vmatpush.bf16.msra.mxu0 %v1681
    %2341 = vmatmul.bf16.gmra.mxu0 %v286
    %v2342 = vpop.f32.mrf.mxu0
    %v2343 = vadd.f32 %v655, %v2342
    %v2344 = vpop.f32.mrf.mxu0
    %2345 = vdwg.mxu0
    %2346 = vmatpush.bf16.msra.mxu0 %v1816
    %2347 = vmatpush.bf16.msra.mxu0 %v1807
    %2348 = vmatpush.bf16.msra.mxu0 %v1798
    %2349 = vmatpush.bf16.msra.mxu0 %v1789
    %2350 = vmatpush.bf16.msra.mxu0 %v1780
    %2351 = vmatpush.bf16.msra.mxu0 %v1771
    %2352 = vmatpush.bf16.msra.mxu0 %v1762
    %2353 = vmatpush.bf16.msra.mxu0 %v1753
    %2354 = vmatmul.bf16.gmra.mxu0 %v287
    %v2355 = vpop.f32.mrf.mxu0
    %v2356 = vadd.f32 %v2343, %v2355
    %v2357 = vpop.f32.mrf.mxu0
    %2358 = vdwg.mxu0
    %2359 = vmatpush.bf16.msra.mxu0 %v1888
    %2360 = vmatpush.bf16.msra.mxu0 %v1879
    %2361 = vmatpush.bf16.msra.mxu0 %v1870
    %2362 = vmatpush.bf16.msra.mxu0 %v1861
    %2363 = vmatpush.bf16.msra.mxu0 %v1852
    %2364 = vmatpush.bf16.msra.mxu0 %v1843
    %2365 = vmatpush.bf16.msra.mxu0 %v1834
    %2366 = vmatpush.bf16.msra.mxu0 %v1825
    %2367 = vmatmul.bf16.gmra.mxu0 %v288
    %v2368 = vpop.f32.mrf.mxu0
    %v2369 = vadd.f32 %v2356, %v2368
    %v2370 = vpop.f32.mrf.mxu0
    %2371 = vdwg.mxu0
    %2372 = vmatpush.bf16.msra.mxu0 %v1960
    %2373 = vmatpush.bf16.msra.mxu0 %v1951
    %2374 = vmatpush.bf16.msra.mxu0 %v1942
    %2375 = vmatpush.bf16.msra.mxu0 %v1933
    %2376 = vmatpush.bf16.msra.mxu0 %v1924
    %2377 = vmatpush.bf16.msra.mxu0 %v1915
    %2378 = vmatpush.bf16.msra.mxu0 %v1906
    %2379 = vmatpush.bf16.msra.mxu0 %v1897
    %2380 = vmatmul.bf16.gmra.mxu0 %v289
    %v2381 = vpop.f32.mrf.mxu0
    %v2382 = vadd.f32 %v2369, %v2381
    %v2383 = vpop.f32.mrf.mxu0
    %2384 = vdwg.mxu0
    %2385 = vmatpush.bf16.msra.mxu0 0
    %2386 = vmatpush.bf16.msra.mxu0 0
    %2387 = vmatpush.bf16.msra.mxu0 0
    %2388 = vmatpush.bf16.msra.mxu0 0
    %2389 = vmatpush.bf16.msra.mxu0 %v1996
    %2390 = vmatpush.bf16.msra.mxu0 %v1987
    %2391 = vmatpush.bf16.msra.mxu0 %v1978
    %2392 = vmatpush.bf16.msra.mxu0 %v1969
    %2393 = vmatmul.bf16.gmra.mxu0 %v2331
    %v2394 = vpop.f32.mrf.mxu0
    %v2395 = vadd.f32 %v2382, %v2394
    %v2396 = vpop.f32.mrf.mxu0
    %2397 = vdwg.mxu0
    %2398 = vmatpush.bf16.msra.mxu0 %v1745
    %2399 = vmatpush.bf16.msra.mxu0 %v1736
    %2400 = vmatpush.bf16.msra.mxu0 %v1727
    %2401 = vmatpush.bf16.msra.mxu0 %v1718
    %2402 = vmatpush.bf16.msra.mxu0 %v1709
    %2403 = vmatpush.bf16.msra.mxu0 %v1700
    %2404 = vmatpush.bf16.msra.mxu0 %v1691
    %2405 = vmatpush.bf16.msra.mxu0 %v1682
    %2406 = vmatmul.bf16.gmra.mxu0 %v286
    %v2407 = vpop.f32.mrf.mxu0
    %v2408 = vadd.f32 %v656, %v2407
    %v2409 = vpop.f32.mrf.mxu0
    %2410 = vdwg.mxu0
    %2411 = vmatpush.bf16.msra.mxu0 %v1817
    %2412 = vmatpush.bf16.msra.mxu0 %v1808
    %2413 = vmatpush.bf16.msra.mxu0 %v1799
    %2414 = vmatpush.bf16.msra.mxu0 %v1790
    %2415 = vmatpush.bf16.msra.mxu0 %v1781
    %2416 = vmatpush.bf16.msra.mxu0 %v1772
    %2417 = vmatpush.bf16.msra.mxu0 %v1763
    %2418 = vmatpush.bf16.msra.mxu0 %v1754
    %2419 = vmatmul.bf16.gmra.mxu0 %v287
    %v2420 = vpop.f32.mrf.mxu0
    %v2421 = vadd.f32 %v2408, %v2420
    %v2422 = vpop.f32.mrf.mxu0
    %2423 = vdwg.mxu0
    %2424 = vmatpush.bf16.msra.mxu0 %v1889
    %2425 = vmatpush.bf16.msra.mxu0 %v1880
    %2426 = vmatpush.bf16.msra.mxu0 %v1871
    %2427 = vmatpush.bf16.msra.mxu0 %v1862
    %2428 = vmatpush.bf16.msra.mxu0 %v1853
    %2429 = vmatpush.bf16.msra.mxu0 %v1844
    %2430 = vmatpush.bf16.msra.mxu0 %v1835
    %2431 = vmatpush.bf16.msra.mxu0 %v1826
    %2432 = vmatmul.bf16.gmra.mxu0 %v288
    %v2433 = vpop.f32.mrf.mxu0
    %v2434 = vadd.f32 %v2421, %v2433
    %v2435 = vpop.f32.mrf.mxu0
    %2436 = vdwg.mxu0
    %2437 = vmatpush.bf16.msra.mxu0 %v1961
    %2438 = vmatpush.bf16.msra.mxu0 %v1952
    %2439 = vmatpush.bf16.msra.mxu0 %v1943
    %2440 = vmatpush.bf16.msra.mxu0 %v1934
    %2441 = vmatpush.bf16.msra.mxu0 %v1925
    %2442 = vmatpush.bf16.msra.mxu0 %v1916
    %2443 = vmatpush.bf16.msra.mxu0 %v1907
    %2444 = vmatpush.bf16.msra.mxu0 %v1898
    %2445 = vmatmul.bf16.gmra.mxu0 %v289
    %v2446 = vpop.f32.mrf.mxu0
    %v2447 = vadd.f32 %v2434, %v2446
    %v2448 = vpop.f32.mrf.mxu0
    %2449 = vdwg.mxu0
    %2450 = vmatpush.bf16.msra.mxu0 0
    %2451 = vmatpush.bf16.msra.mxu0 0
    %2452 = vmatpush.bf16.msra.mxu0 0
    %2453 = vmatpush.bf16.msra.mxu0 0
    %2454 = vmatpush.bf16.msra.mxu0 %v1997
    %2455 = vmatpush.bf16.msra.mxu0 %v1988
    %2456 = vmatpush.bf16.msra.mxu0 %v1979
    %2457 = vmatpush.bf16.msra.mxu0 %v1970
    %2458 = vmatmul.bf16.gmra.mxu0 %v2331
    %v2459 = vpop.f32.mrf.mxu0
    %v2460 = vadd.f32 %v2447, %v2459
    %v2461 = vpop.f32.mrf.mxu0
    %2462 = vdwg.mxu0
    %2463 = vmatpush.bf16.msra.mxu0 %v1746
    %2464 = vmatpush.bf16.msra.mxu0 %v1737
    %2465 = vmatpush.bf16.msra.mxu0 %v1728
    %2466 = vmatpush.bf16.msra.mxu0 %v1719
    %2467 = vmatpush.bf16.msra.mxu0 %v1710
    %2468 = vmatpush.bf16.msra.mxu0 %v1701
    %2469 = vmatpush.bf16.msra.mxu0 %v1692
    %2470 = vmatpush.bf16.msra.mxu0 %v1683
    %2471 = vmatmul.bf16.gmra.mxu0 %v286
    %v2472 = vpop.f32.mrf.mxu0
    %v2473 = vadd.f32 %v657, %v2472
    %v2474 = vpop.f32.mrf.mxu0
    %2475 = vdwg.mxu0
    %2476 = vmatpush.bf16.msra.mxu0 %v1818
    %2477 = vmatpush.bf16.msra.mxu0 %v1809
    %2478 = vmatpush.bf16.msra.mxu0 %v1800
    %2479 = vmatpush.bf16.msra.mxu0 %v1791
    %2480 = vmatpush.bf16.msra.mxu0 %v1782
    %2481 = vmatpush.bf16.msra.mxu0 %v1773
    %2482 = vmatpush.bf16.msra.mxu0 %v1764
    %2483 = vmatpush.bf16.msra.mxu0 %v1755
    %2484 = vmatmul.bf16.gmra.mxu0 %v287
    %v2485 = vpop.f32.mrf.mxu0
    %v2486 = vadd.f32 %v2473, %v2485
    %v2487 = vpop.f32.mrf.mxu0
    %2488 = vdwg.mxu0
    %2489 = vmatpush.bf16.msra.mxu0 %v1890
    %2490 = vmatpush.bf16.msra.mxu0 %v1881
    %2491 = vmatpush.bf16.msra.mxu0 %v1872
    %2492 = vmatpush.bf16.msra.mxu0 %v1863
    %2493 = vmatpush.bf16.msra.mxu0 %v1854
    %2494 = vmatpush.bf16.msra.mxu0 %v1845
    %2495 = vmatpush.bf16.msra.mxu0 %v1836
    %2496 = vmatpush.bf16.msra.mxu0 %v1827
    %2497 = vmatmul.bf16.gmra.mxu0 %v288
    %v2498 = vpop.f32.mrf.mxu0
    %v2499 = vadd.f32 %v2486, %v2498
    %v2500 = vpop.f32.mrf.mxu0
    %2501 = vdwg.mxu0
    %2502 = vmatpush.bf16.msra.mxu0 %v1962
    %2503 = vmatpush.bf16.msra.mxu0 %v1953
    %2504 = vmatpush.bf16.msra.mxu0 %v1944
    %2505 = vmatpush.bf16.msra.mxu0 %v1935
    %2506 = vmatpush.bf16.msra.mxu0 %v1926
    %2507 = vmatpush.bf16.msra.mxu0 %v1917
    %2508 = vmatpush.bf16.msra.mxu0 %v1908
    %2509 = vmatpush.bf16.msra.mxu0 %v1899
    %2510 = vmatmul.bf16.gmra.mxu0 %v289
    %v2511 = vpop.f32.mrf.mxu0
    %v2512 = vadd.f32 %v2499, %v2511
    %v2513 = vpop.f32.mrf.mxu0
    %2514 = vdwg.mxu0
    %2515 = vmatpush.bf16.msra.mxu0 0
    %2516 = vmatpush.bf16.msra.mxu0 0
    %2517 = vmatpush.bf16.msra.mxu0 0
    %2518 = vmatpush.bf16.msra.mxu0 0
    %2519 = vmatpush.bf16.msra.mxu0 %v1998
    %2520 = vmatpush.bf16.msra.mxu0 %v1989
    %2521 = vmatpush.bf16.msra.mxu0 %v1980
    %2522 = vmatpush.bf16.msra.mxu0 %v1971
    %2523 = vmatmul.bf16.gmra.mxu0 %v2331
    %v2524 = vpop.f32.mrf.mxu0
    %v2525 = vadd.f32 %v2512, %v2524
    %v2526 = vpop.f32.mrf.mxu0
    %2527 = vdwg.mxu0
    %2528 = vmatpush.bf16.msra.mxu0 %v1747
    %2529 = vmatpush.bf16.msra.mxu0 %v1738
    %2530 = vmatpush.bf16.msra.mxu0 %v1729
    %2531 = vmatpush.bf16.msra.mxu0 %v1720
    %2532 = vmatpush.bf16.msra.mxu0 %v1711
    %2533 = vmatpush.bf16.msra.mxu0 %v1702
    %2534 = vmatpush.bf16.msra.mxu0 %v1693
    %2535 = vmatpush.bf16.msra.mxu0 %v1684
    %2536 = vmatmul.bf16.gmra.mxu0 %v286
    %v2537 = vpop.f32.mrf.mxu0
    %v2538 = vadd.f32 %v658, %v2537
    %v2539 = vpop.f32.mrf.mxu0
    %2540 = vdwg.mxu0
    %2541 = vmatpush.bf16.msra.mxu0 %v1819
    %2542 = vmatpush.bf16.msra.mxu0 %v1810
    %2543 = vmatpush.bf16.msra.mxu0 %v1801
    %2544 = vmatpush.bf16.msra.mxu0 %v1792
    %2545 = vmatpush.bf16.msra.mxu0 %v1783
    %2546 = vmatpush.bf16.msra.mxu0 %v1774
    %2547 = vmatpush.bf16.msra.mxu0 %v1765
    %2548 = vmatpush.bf16.msra.mxu0 %v1756
    %2549 = vmatmul.bf16.gmra.mxu0 %v287
    %v2550 = vpop.f32.mrf.mxu0
    %v2551 = vadd.f32 %v2538, %v2550
    %v2552 = vpop.f32.mrf.mxu0
    %2553 = vdwg.mxu0
    %2554 = vmatpush.bf16.msra.mxu0 %v1891
    %2555 = vmatpush.bf16.msra.mxu0 %v1882
    %2556 = vmatpush.bf16.msra.mxu0 %v1873
    %2557 = vmatpush.bf16.msra.mxu0 %v1864
    %2558 = vmatpush.bf16.msra.mxu0 %v1855
    %2559 = vmatpush.bf16.msra.mxu0 %v1846
    %2560 = vmatpush.bf16.msra.mxu0 %v1837
    %2561 = vmatpush.bf16.msra.mxu0 %v1828
    %2562 = vmatmul.bf16.gmra.mxu0 %v288
    %v2563 = vpop.f32.mrf.mxu0
    %v2564 = vadd.f32 %v2551, %v2563
    %v2565 = vpop.f32.mrf.mxu0
    %2566 = vdwg.mxu0
    %2567 = vmatpush.bf16.msra.mxu0 %v1963
    %2568 = vmatpush.bf16.msra.mxu0 %v1954
    %2569 = vmatpush.bf16.msra.mxu0 %v1945
    %2570 = vmatpush.bf16.msra.mxu0 %v1936
    %2571 = vmatpush.bf16.msra.mxu0 %v1927
    %2572 = vmatpush.bf16.msra.mxu0 %v1918
    %2573 = vmatpush.bf16.msra.mxu0 %v1909
    %2574 = vmatpush.bf16.msra.mxu0 %v1900
    %2575 = vmatmul.bf16.gmra.mxu0 %v289
    %v2576 = vpop.f32.mrf.mxu0
    %v2577 = vadd.f32 %v2564, %v2576
    %v2578 = vpop.f32.mrf.mxu0
    %2579 = vdwg.mxu0
    %2580 = vmatpush.bf16.msra.mxu0 0
    %2581 = vmatpush.bf16.msra.mxu0 0
    %2582 = vmatpush.bf16.msra.mxu0 0
    %2583 = vmatpush.bf16.msra.mxu0 0
    %2584 = vmatpush.bf16.msra.mxu0 %v1999
    %2585 = vmatpush.bf16.msra.mxu0 %v1990
    %2586 = vmatpush.bf16.msra.mxu0 %v1981
    %2587 = vmatpush.bf16.msra.mxu0 %v1972
    %2588 = vmatmul.bf16.gmra.mxu0 %v2331
    %v2589 = vpop.f32.mrf.mxu0
    %v2590 = vadd.f32 %v2577, %v2589
    %v2591 = vpop.f32.mrf.mxu0
    %2592 = vdwg.mxu0
    %2593 = vmatpush.bf16.msra.mxu0 %v1748
    %2594 = vmatpush.bf16.msra.mxu0 %v1739
    %2595 = vmatpush.bf16.msra.mxu0 %v1730
    %2596 = vmatpush.bf16.msra.mxu0 %v1721
    %2597 = vmatpush.bf16.msra.mxu0 %v1712
    %2598 = vmatpush.bf16.msra.mxu0 %v1703
    %2599 = vmatpush.bf16.msra.mxu0 %v1694
    %2600 = vmatpush.bf16.msra.mxu0 %v1685
    %2601 = vmatmul.bf16.gmra.mxu0 %v286
    %v2602 = vpop.f32.mrf.mxu0
    %v2603 = vadd.f32 %v659, %v2602
    %v2604 = vpop.f32.mrf.mxu0
    %2605 = vdwg.mxu0
    %2606 = vmatpush.bf16.msra.mxu0 %v1820
    %2607 = vmatpush.bf16.msra.mxu0 %v1811
    %2608 = vmatpush.bf16.msra.mxu0 %v1802
    %2609 = vmatpush.bf16.msra.mxu0 %v1793
    %2610 = vmatpush.bf16.msra.mxu0 %v1784
    %2611 = vmatpush.bf16.msra.mxu0 %v1775
    %2612 = vmatpush.bf16.msra.mxu0 %v1766
    %2613 = vmatpush.bf16.msra.mxu0 %v1757
    %2614 = vmatmul.bf16.gmra.mxu0 %v287
    %v2615 = vpop.f32.mrf.mxu0
    %v2616 = vadd.f32 %v2603, %v2615
    %v2617 = vpop.f32.mrf.mxu0
    %2618 = vdwg.mxu0
    %2619 = vmatpush.bf16.msra.mxu0 %v1892
    %2620 = vmatpush.bf16.msra.mxu0 %v1883
    %2621 = vmatpush.bf16.msra.mxu0 %v1874
    %2622 = vmatpush.bf16.msra.mxu0 %v1865
    %2623 = vmatpush.bf16.msra.mxu0 %v1856
    %2624 = vmatpush.bf16.msra.mxu0 %v1847
    %2625 = vmatpush.bf16.msra.mxu0 %v1838
    %2626 = vmatpush.bf16.msra.mxu0 %v1829
    %2627 = vmatmul.bf16.gmra.mxu0 %v288
    %v2628 = vpop.f32.mrf.mxu0
    %v2629 = vadd.f32 %v2616, %v2628
    %v2630 = vpop.f32.mrf.mxu0
    %2631 = vdwg.mxu0
    %2632 = vmatpush.bf16.msra.mxu0 %v1964
    %2633 = vmatpush.bf16.msra.mxu0 %v1955
    %2634 = vmatpush.bf16.msra.mxu0 %v1946
    %2635 = vmatpush.bf16.msra.mxu0 %v1937
    %2636 = vmatpush.bf16.msra.mxu0 %v1928
    %2637 = vmatpush.bf16.msra.mxu0 %v1919
    %2638 = vmatpush.bf16.msra.mxu0 %v1910
    %2639 = vmatpush.bf16.msra.mxu0 %v1901
    %2640 = vmatmul.bf16.gmra.mxu0 %v289
    %v2641 = vpop.f32.mrf.mxu0
    %v2642 = vadd.f32 %v2629, %v2641
    %v2643 = vpop.f32.mrf.mxu0
    %2644 = vdwg.mxu0
    %2645 = vmatpush.bf16.msra.mxu0 0
    %2646 = vmatpush.bf16.msra.mxu0 0
    %2647 = vmatpush.bf16.msra.mxu0 0
    %2648 = vmatpush.bf16.msra.mxu0 0
    %2649 = vmatpush.bf16.msra.mxu0 %v2000
    %2650 = vmatpush.bf16.msra.mxu0 %v1991
    %2651 = vmatpush.bf16.msra.mxu0 %v1982
    %2652 = vmatpush.bf16.msra.mxu0 %v1973
    %2653 = vmatmul.bf16.gmra.mxu0 %v2331
    %v2654 = vpop.f32.mrf.mxu0
    %v2655 = vadd.f32 %v2642, %v2654
    %v2656 = vpop.f32.mrf.mxu0
    %2657 = vdwg.mxu0
    %2658 = vmatpush.bf16.msra.mxu0 %v1749
    %2659 = vmatpush.bf16.msra.mxu0 %v1740
    %2660 = vmatpush.bf16.msra.mxu0 %v1731
    %2661 = vmatpush.bf16.msra.mxu0 %v1722
    %2662 = vmatpush.bf16.msra.mxu0 %v1713
    %2663 = vmatpush.bf16.msra.mxu0 %v1704
    %2664 = vmatpush.bf16.msra.mxu0 %v1695
    %2665 = vmatpush.bf16.msra.mxu0 %v1686
    %2666 = vmatmul.bf16.gmra.mxu0 %v286
    %v2667 = vpop.f32.mrf.mxu0
    %v2668 = vadd.f32 %v660, %v2667
    %v2669 = vpop.f32.mrf.mxu0
    %2670 = vdwg.mxu0
    %2671 = vmatpush.bf16.msra.mxu0 %v1821
    %2672 = vmatpush.bf16.msra.mxu0 %v1812
    %2673 = vmatpush.bf16.msra.mxu0 %v1803
    %2674 = vmatpush.bf16.msra.mxu0 %v1794
    %2675 = vmatpush.bf16.msra.mxu0 %v1785
    %2676 = vmatpush.bf16.msra.mxu0 %v1776
    %2677 = vmatpush.bf16.msra.mxu0 %v1767
    %2678 = vmatpush.bf16.msra.mxu0 %v1758
    %2679 = vmatmul.bf16.gmra.mxu0 %v287
    %v2680 = vpop.f32.mrf.mxu0
    %v2681 = vadd.f32 %v2668, %v2680
    %v2682 = vpop.f32.mrf.mxu0
    %2683 = vdwg.mxu0
    %2684 = vmatpush.bf16.msra.mxu0 %v1893
    %2685 = vmatpush.bf16.msra.mxu0 %v1884
    %2686 = vmatpush.bf16.msra.mxu0 %v1875
    %2687 = vmatpush.bf16.msra.mxu0 %v1866
    %2688 = vmatpush.bf16.msra.mxu0 %v1857
    %2689 = vmatpush.bf16.msra.mxu0 %v1848
    %2690 = vmatpush.bf16.msra.mxu0 %v1839
    %2691 = vmatpush.bf16.msra.mxu0 %v1830
    %2692 = vmatmul.bf16.gmra.mxu0 %v288
    %v2693 = vpop.f32.mrf.mxu0
    %v2694 = vadd.f32 %v2681, %v2693
    %v2695 = vpop.f32.mrf.mxu0
    %2696 = vdwg.mxu0
    %2697 = vmatpush.bf16.msra.mxu0 %v1965
    %2698 = vmatpush.bf16.msra.mxu0 %v1956
    %2699 = vmatpush.bf16.msra.mxu0 %v1947
    %2700 = vmatpush.bf16.msra.mxu0 %v1938
    %2701 = vmatpush.bf16.msra.mxu0 %v1929
    %2702 = vmatpush.bf16.msra.mxu0 %v1920
    %2703 = vmatpush.bf16.msra.mxu0 %v1911
    %2704 = vmatpush.bf16.msra.mxu0 %v1902
    %2705 = vmatmul.bf16.gmra.mxu0 %v289
    %v2706 = vpop.f32.mrf.mxu0
    %v2707 = vadd.f32 %v2694, %v2706
    %v2708 = vpop.f32.mrf.mxu0
    %2709 = vdwg.mxu0
    %2710 = vmatpush.bf16.msra.mxu0 0
    %2711 = vmatpush.bf16.msra.mxu0 0
    %2712 = vmatpush.bf16.msra.mxu0 0
    %2713 = vmatpush.bf16.msra.mxu0 0
    %2714 = vmatpush.bf16.msra.mxu0 %v2001
    %2715 = vmatpush.bf16.msra.mxu0 %v1992
    %2716 = vmatpush.bf16.msra.mxu0 %v1983
    %2717 = vmatpush.bf16.msra.mxu0 %v1974
    %2718 = vmatmul.bf16.gmra.mxu0 %v2331
    %v2719 = vpop.f32.mrf.mxu0
    %v2720 = vadd.f32 %v2707, %v2719
    %v2721 = vpop.f32.mrf.mxu0
    %2722 = vdwg.mxu0
    %2723 = vmatpush.bf16.msra.mxu0 %v1750
    %2724 = vmatpush.bf16.msra.mxu0 %v1741
    %2725 = vmatpush.bf16.msra.mxu0 %v1732
    %2726 = vmatpush.bf16.msra.mxu0 %v1723
    %2727 = vmatpush.bf16.msra.mxu0 %v1714
    %2728 = vmatpush.bf16.msra.mxu0 %v1705
    %2729 = vmatpush.bf16.msra.mxu0 %v1696
    %2730 = vmatpush.bf16.msra.mxu0 %v1687
    %2731 = vmatmul.bf16.gmra.mxu0 %v286
    %v2732 = vpop.f32.mrf.mxu0
    %v2733 = vadd.f32 %v661, %v2732
    %v2734 = vpop.f32.mrf.mxu0
    %2735 = vdwg.mxu0
    %2736 = vmatpush.bf16.msra.mxu0 %v1822
    %2737 = vmatpush.bf16.msra.mxu0 %v1813
    %2738 = vmatpush.bf16.msra.mxu0 %v1804
    %2739 = vmatpush.bf16.msra.mxu0 %v1795
    %2740 = vmatpush.bf16.msra.mxu0 %v1786
    %2741 = vmatpush.bf16.msra.mxu0 %v1777
    %2742 = vmatpush.bf16.msra.mxu0 %v1768
    %2743 = vmatpush.bf16.msra.mxu0 %v1759
    %2744 = vmatmul.bf16.gmra.mxu0 %v287
    %v2745 = vpop.f32.mrf.mxu0
    %v2746 = vadd.f32 %v2733, %v2745
    %v2747 = vpop.f32.mrf.mxu0
    %2748 = vdwg.mxu0
    %2749 = vmatpush.bf16.msra.mxu0 %v1894
    %2750 = vmatpush.bf16.msra.mxu0 %v1885
    %2751 = vmatpush.bf16.msra.mxu0 %v1876
    %2752 = vmatpush.bf16.msra.mxu0 %v1867
    %2753 = vmatpush.bf16.msra.mxu0 %v1858
    %2754 = vmatpush.bf16.msra.mxu0 %v1849
    %2755 = vmatpush.bf16.msra.mxu0 %v1840
    %2756 = vmatpush.bf16.msra.mxu0 %v1831
    %2757 = vmatmul.bf16.gmra.mxu0 %v288
    %v2758 = vpop.f32.mrf.mxu0
    %v2759 = vadd.f32 %v2746, %v2758
    %v2760 = vpop.f32.mrf.mxu0
    %2761 = vdwg.mxu0
    %2762 = vmatpush.bf16.msra.mxu0 %v1966
    %2763 = vmatpush.bf16.msra.mxu0 %v1957
    %2764 = vmatpush.bf16.msra.mxu0 %v1948
    %2765 = vmatpush.bf16.msra.mxu0 %v1939
    %2766 = vmatpush.bf16.msra.mxu0 %v1930
    %2767 = vmatpush.bf16.msra.mxu0 %v1921
    %2768 = vmatpush.bf16.msra.mxu0 %v1912
    %2769 = vmatpush.bf16.msra.mxu0 %v1903
    %2770 = vmatmul.bf16.gmra.mxu0 %v289
    %v2771 = vpop.f32.mrf.mxu0
    %v2772 = vadd.f32 %v2759, %v2771
    %v2773 = vpop.f32.mrf.mxu0
    %2774 = vdwg.mxu0
    %2775 = vmatpush.bf16.msra.mxu0 0
    %2776 = vmatpush.bf16.msra.mxu0 0
    %2777 = vmatpush.bf16.msra.mxu0 0
    %2778 = vmatpush.bf16.msra.mxu0 0
    %2779 = vmatpush.bf16.msra.mxu0 %v2002
    %2780 = vmatpush.bf16.msra.mxu0 %v1993
    %2781 = vmatpush.bf16.msra.mxu0 %v1984
    %2782 = vmatpush.bf16.msra.mxu0 %v1975
    %2783 = vmatmul.bf16.gmra.mxu0 %v2331
    %v2784 = vpop.f32.mrf.mxu0
    %v2785 = vadd.f32 %v2772, %v2784
    %v2786 = vpop.f32.mrf.mxu0
    %2787 = vdwg.mxu0
    %2788 = vmatpush.bf16.msra.mxu0 %v1751
    %2789 = vmatpush.bf16.msra.mxu0 %v1742
    %2790 = vmatpush.bf16.msra.mxu0 %v1733
    %2791 = vmatpush.bf16.msra.mxu0 %v1724
    %2792 = vmatpush.bf16.msra.mxu0 %v1715
    %2793 = vmatpush.bf16.msra.mxu0 %v1706
    %2794 = vmatpush.bf16.msra.mxu0 %v1697
    %2795 = vmatpush.bf16.msra.mxu0 %v1688
    %2796 = vmatmul.bf16.gmra.mxu0 %v286
    %v2797 = vpop.f32.mrf.mxu0
    %v2798 = vadd.f32 %v662, %v2797
    %v2799 = vpop.f32.mrf.mxu0
    %2800 = vdwg.mxu0
    %2801 = vmatpush.bf16.msra.mxu0 %v1823
    %2802 = vmatpush.bf16.msra.mxu0 %v1814
    %2803 = vmatpush.bf16.msra.mxu0 %v1805
    %2804 = vmatpush.bf16.msra.mxu0 %v1796
    %2805 = vmatpush.bf16.msra.mxu0 %v1787
    %2806 = vmatpush.bf16.msra.mxu0 %v1778
    %2807 = vmatpush.bf16.msra.mxu0 %v1769
    %2808 = vmatpush.bf16.msra.mxu0 %v1760
    %2809 = vmatmul.bf16.gmra.mxu0 %v287
    %v2810 = vpop.f32.mrf.mxu0
    %v2811 = vadd.f32 %v2798, %v2810
    %v2812 = vpop.f32.mrf.mxu0
    %2813 = vdwg.mxu0
    %2814 = vmatpush.bf16.msra.mxu0 %v1895
    %2815 = vmatpush.bf16.msra.mxu0 %v1886
    %2816 = vmatpush.bf16.msra.mxu0 %v1877
    %2817 = vmatpush.bf16.msra.mxu0 %v1868
    %2818 = vmatpush.bf16.msra.mxu0 %v1859
    %2819 = vmatpush.bf16.msra.mxu0 %v1850
    %2820 = vmatpush.bf16.msra.mxu0 %v1841
    %2821 = vmatpush.bf16.msra.mxu0 %v1832
    %2822 = vmatmul.bf16.gmra.mxu0 %v288
    %v2823 = vpop.f32.mrf.mxu0
    %v2824 = vadd.f32 %v2811, %v2823
    %v2825 = vpop.f32.mrf.mxu0
    %2826 = vdwg.mxu0
    %2827 = vmatpush.bf16.msra.mxu0 %v1967
    %2828 = vmatpush.bf16.msra.mxu0 %v1958
    %2829 = vmatpush.bf16.msra.mxu0 %v1949
    %2830 = vmatpush.bf16.msra.mxu0 %v1940
    %2831 = vmatpush.bf16.msra.mxu0 %v1931
    %2832 = vmatpush.bf16.msra.mxu0 %v1922
    %2833 = vmatpush.bf16.msra.mxu0 %v1913
    %2834 = vmatpush.bf16.msra.mxu0 %v1904
    %2835 = vmatmul.bf16.gmra.mxu0 %v289
    %v2836 = vpop.f32.mrf.mxu0
    %v2837 = vadd.f32 %v2824, %v2836
    %v2838 = vpop.f32.mrf.mxu0
    %2839 = vdwg.mxu0
    %2840 = vmatpush.bf16.msra.mxu0 0
    %2841 = vmatpush.bf16.msra.mxu0 0
    %2842 = vmatpush.bf16.msra.mxu0 0
    %2843 = vmatpush.bf16.msra.mxu0 0
    %2844 = vmatpush.bf16.msra.mxu0 %v2003
    %2845 = vmatpush.bf16.msra.mxu0 %v1994
    %2846 = vmatpush.bf16.msra.mxu0 %v1985
    %2847 = vmatpush.bf16.msra.mxu0 %v1976
    %2848 = vmatmul.bf16.gmra.mxu0 %v2331
    %v2849 = vpop.f32.mrf.mxu0
    %v2850 = vadd.f32 %v2837, %v2849
    %v2851 = vpop.f32.mrf.mxu0
    %2852 = vdwg.mxu0
    %2853 = vmatpush.bf16.msra.mxu0 %v1752
    %2854 = vmatpush.bf16.msra.mxu0 %v1743
    %2855 = vmatpush.bf16.msra.mxu0 %v1734
    %2856 = vmatpush.bf16.msra.mxu0 %v1725
    %2857 = vmatpush.bf16.msra.mxu0 %v1716
    %2858 = vmatpush.bf16.msra.mxu0 %v1707
    %2859 = vmatpush.bf16.msra.mxu0 %v1698
    %2860 = vmatpush.bf16.msra.mxu0 %v1689
    %2861 = vmatmul.bf16.gmra.mxu0 %v286
    %v2862 = vpop.f32.mrf.mxu0
    %v2863 = vadd.f32 %v663, %v2862
    %v2864 = vpop.f32.mrf.mxu0
    %2865 = vdwg.mxu0
    %2866 = vmatpush.bf16.msra.mxu0 %v1824
    %2867 = vmatpush.bf16.msra.mxu0 %v1815
    %2868 = vmatpush.bf16.msra.mxu0 %v1806
    %2869 = vmatpush.bf16.msra.mxu0 %v1797
    %2870 = vmatpush.bf16.msra.mxu0 %v1788
    %2871 = vmatpush.bf16.msra.mxu0 %v1779
    %2872 = vmatpush.bf16.msra.mxu0 %v1770
    %2873 = vmatpush.bf16.msra.mxu0 %v1761
    %2874 = vmatmul.bf16.gmra.mxu0 %v287
    %v2875 = vpop.f32.mrf.mxu0
    %v2876 = vadd.f32 %v2863, %v2875
    %v2877 = vpop.f32.mrf.mxu0
    %2878 = vdwg.mxu0
    %2879 = vmatpush.bf16.msra.mxu0 %v1896
    %2880 = vmatpush.bf16.msra.mxu0 %v1887
    %2881 = vmatpush.bf16.msra.mxu0 %v1878
    %2882 = vmatpush.bf16.msra.mxu0 %v1869
    %2883 = vmatpush.bf16.msra.mxu0 %v1860
    %2884 = vmatpush.bf16.msra.mxu0 %v1851
    %2885 = vmatpush.bf16.msra.mxu0 %v1842
    %2886 = vmatpush.bf16.msra.mxu0 %v1833
    %2887 = vmatmul.bf16.gmra.mxu0 %v288
    %v2888 = vpop.f32.mrf.mxu0
    %v2889 = vadd.f32 %v2876, %v2888
    %v2890 = vpop.f32.mrf.mxu0
    %2891 = vdwg.mxu0
    %2892 = vmatpush.bf16.msra.mxu0 %v1968
    %2893 = vmatpush.bf16.msra.mxu0 %v1959
    %2894 = vmatpush.bf16.msra.mxu0 %v1950
    %2895 = vmatpush.bf16.msra.mxu0 %v1941
    %2896 = vmatpush.bf16.msra.mxu0 %v1932
    %2897 = vmatpush.bf16.msra.mxu0 %v1923
    %2898 = vmatpush.bf16.msra.mxu0 %v1914
    %2899 = vmatpush.bf16.msra.mxu0 %v1905
    %2900 = vmatmul.bf16.gmra.mxu0 %v289
    %v2901 = vpop.f32.mrf.mxu0
    %v2902 = vadd.f32 %v2889, %v2901
    %v2903 = vpop.f32.mrf.mxu0
    %2904 = vdwg.mxu0
    %2905 = vmatpush.bf16.msra.mxu0 0
    %2906 = vmatpush.bf16.msra.mxu0 0
    %2907 = vmatpush.bf16.msra.mxu0 0
    %2908 = vmatpush.bf16.msra.mxu0 0
    %2909 = vmatpush.bf16.msra.mxu0 %v2004
    %2910 = vmatpush.bf16.msra.mxu0 %v1995
    %2911 = vmatpush.bf16.msra.mxu0 %v1986
    %2912 = vmatpush.bf16.msra.mxu0 %v1977
    %2913 = vmatmul.bf16.gmra.mxu0 %v2331
    %v2914 = vpop.f32.mrf.mxu0
    %v2915 = vadd.f32 %v2902, %v2914
    %v2916 = vpop.f32.mrf.mxu0
    %2917 = vdwg.mxu0
    %v2918 = vmax.f32 %v2395, 0.0
    %v2919 = vmax.f32 %v2460, 0.0
    %v2920 = vmax.f32 %v2525, 0.0
    %v2921 = vmax.f32 %v2590, 0.0
    %v2922 = vmax.f32 %v2655, 0.0
    %v2923 = vmax.f32 %v2720, 0.0
    %v2924 = vmax.f32 %v2785, 0.0
    %v2925 = vmax.f32 %v2850, 0.0
    %v2926 = vmax.f32 %v2915, 0.0
    %v2927 = vpack.c.bf16 %v2918, %v2918
    %v2928 = vpack.c.bf16 %v2919, %v2919
    %v2929 = vpack.c.bf16 %v2920, %v2920
    %v2930 = vpack.c.bf16 %v2921, %v2921
    %v2931 = vpack.c.bf16 %v2922, %v2922
    %v2932 = vpack.c.bf16 %v2923, %v2923
    %v2933 = vpack.c.bf16 %v2924, %v2924
    %v2934 = vpack.c.bf16 %v2925, %v2925
    %v2935 = vpack.c.bf16 %v2926, %v2926
    %v2936 = vld [vmem:[#allocation10] sm:$0xf]
    %v2937 = vld [vmem:[#allocation10 + $0x4] sm:$0xf]
    %v2938 = vld [vmem:[#allocation10 + $0x8] sm:$0xf]
    %v2939 = vld [vmem:[#allocation10 + $0xc] sm:$0xf]
    %v2940 = vld [vmem:[#allocation10 + $0x10] sm:$0xf]
    %v2941 = vld [vmem:[#allocation10 + $0x14] sm:$0xf]
    %v2942 = vld [vmem:[#allocation10 + $0x18] sm:$0xf]
    %v2943 = vld [vmem:[#allocation10 + $0x1c] sm:$0xf]
    %v2944 = vld [vmem:[#allocation10 + $0x20] sm:$0xf]
    %v2945 = vld [vmem:[#allocation10 + $0x24] sm:$0xf]
    %v2946 = vld [vmem:[#allocation10 + $0x28] sm:$0xf]
    %v2947 = vld [vmem:[#allocation10 + $0x2c] sm:$0xf]
    %v2948 = vld [vmem:[#allocation10 + $0x30] sm:$0xf]
    %v2949 = vld [vmem:[#allocation10 + $0x34] sm:$0xf]
    %v2950 = vld [vmem:[#allocation10 + $0x38] sm:$0xf]
    %v2951 = vld [vmem:[#allocation10 + $0x3c] sm:$0xf]
    %v2952 = vld [vmem:[#allocation10 + $0x40] sm:$0xf]
    %v2953 = vld [vmem:[#allocation10 + $0x44] sm:$0xf]
    %v2954 = vld [vmem:[#allocation10 + $0x48] sm:$0xf]
    %v2955 = vld [vmem:[#allocation10 + $0x4c] sm:$0xf]
    %v2956 = vld [vmem:[#allocation10 + $0x50] sm:$0xf]
    %v2957 = vld [vmem:[#allocation10 + $0x54] sm:$0xf]
    %v2958 = vld [vmem:[#allocation10 + $0x58] sm:$0xf]
    %v2959 = vld [vmem:[#allocation10 + $0x5c] sm:$0xf]
    %v2960 = vld [vmem:[#allocation10 + $0x60] sm:$0xf]
    %v2961 = vld [vmem:[#allocation10 + $0x64] sm:$0xf]
    %v2962 = vld [vmem:[#allocation10 + $0x68] sm:$0xf]
    %v2963 = vld [vmem:[#allocation10 + $0x6c] sm:$0xf]
    %v2964 = vld [vmem:[#allocation10 + $0x70] sm:$0xf]
    %v2965 = vld [vmem:[#allocation10 + $0x74] sm:$0xf]
    %v2966 = vld [vmem:[#allocation10 + $0x78] sm:$0xf]
    %v2967 = vld [vmem:[#allocation10 + $0x7c] sm:$0xf]
    %v2968 = vld [vmem:[#allocation10 + $0x80] sm:$0xf]
    %v2969 = vld [vmem:[#allocation10 + $0x84] sm:$0xf]
    %v2970 = vld [vmem:[#allocation10 + $0x88] sm:$0xf]
    %v2971 = vld [vmem:[#allocation10 + $0x8c] sm:$0xf]
    %v2972 = vld [vmem:[#allocation10 + $0x90] sm:$0xf]
    %v2973 = vld [vmem:[#allocation10 + $0x94] sm:$0xf]
    %v2974 = vld [vmem:[#allocation10 + $0x98] sm:$0xf]
    %v2975 = vld [vmem:[#allocation10 + $0x9c] sm:$0xf]
    %v2976 = vld [vmem:[#allocation10 + $0xa0] sm:$0xf]
    %v2977 = vld [vmem:[#allocation10 + $0xa4] sm:$0xf]
    %v2978 = vld [vmem:[#allocation10 + $0xa8] sm:$0xf]
    %v2979 = vld [vmem:[#allocation10 + $0xac] sm:$0xf]
    %v2980 = vld [vmem:[#allocation10 + $0xb0] sm:$0xf]
    %v2981 = vld [vmem:[#allocation10 + $0xb4] sm:$0xf]
    %v2982 = vld [vmem:[#allocation10 + $0xb8] sm:$0xf]
    %v2983 = vld [vmem:[#allocation10 + $0xbc] sm:$0xf]
    %v2984 = vld [vmem:[#allocation10 + $0xc0] sm:$0xf]
    %v2985 = vld [vmem:[#allocation10 + $0xc4] sm:$0xf]
    %v2986 = vld [vmem:[#allocation10 + $0xc8] sm:$0xf]
    %v2987 = vld [vmem:[#allocation10 + $0xcc] sm:$0xf]
    %v2988 = vld [vmem:[#allocation10 + $0xd0] sm:$0xf]
    %v2989 = vld [vmem:[#allocation10 + $0xd4] sm:$0xf]
    %v2990 = vld [vmem:[#allocation10 + $0xd8] sm:$0xf]
    %v2991 = vld [vmem:[#allocation10 + $0xdc] sm:$0xf]
    %v2992 = vld [vmem:[#allocation10 + $0xe0] sm:$0xf]
    %v2993 = vld [vmem:[#allocation10 + $0xe4] sm:$0xf]
    %v2994 = vld [vmem:[#allocation10 + $0xe8] sm:$0xf]
    %v2995 = vld [vmem:[#allocation10 + $0xec] sm:$0xf]
    %v2996 = vld [vmem:[#allocation10 + $0xf0] sm:$0xf]
    %v2997 = vld [vmem:[#allocation10 + $0xf4] sm:$0xf]
    %v2998 = vld [vmem:[#allocation10 + $0xf8] sm:$0xf]
    %v2999 = vld [vmem:[#allocation10 + $0xfc] sm:$0xf]
    %v3000 = vld [vmem:[#allocation10 + $0x100] sm:$0xf]
    %v3001 = vld [vmem:[#allocation10 + $0x104] sm:$0xf]
    %v3002 = vld [vmem:[#allocation10 + $0x108] sm:$0xf]
    %v3003 = vld [vmem:[#allocation10 + $0x10c] sm:$0xf]
    %v3004 = vld [vmem:[#allocation10 + $0x110] sm:$0xf]
    %v3005 = vld [vmem:[#allocation10 + $0x114] sm:$0xf]
    %v3006 = vld [vmem:[#allocation10 + $0x118] sm:$0xf]
    %v3007 = vld [vmem:[#allocation10 + $0x11c] sm:$0xf]
    %v3008 = vld [vmem:[#allocation10 + $0x120] sm:$0xf]
    %v3009 = vld [vmem:[#allocation10 + $0x124] sm:$0xf]
    %v3010 = vld [vmem:[#allocation10 + $0x128] sm:$0xf]
    %v3011 = vld [vmem:[#allocation10 + $0x12c] sm:$0xf]
    %v3012 = vld [vmem:[#allocation10 + $0x130] sm:$0xf]
    %v3013 = vld [vmem:[#allocation10 + $0x134] sm:$0xf]
    %v3014 = vld [vmem:[#allocation10 + $0x138] sm:$0xf]
    %v3015 = vld [vmem:[#allocation10 + $0x13c] sm:$0xf]
    %v3016 = vld [vmem:[#allocation10 + $0x140] sm:$0xf]
    %v3017 = vld [vmem:[#allocation10 + $0x144] sm:$0xf]
    %v3018 = vld [vmem:[#allocation10 + $0x148] sm:$0xf]
    %v3019 = vld [vmem:[#allocation10 + $0x14c] sm:$0xf]
    %v3020 = vld [vmem:[#allocation10 + $0x150] sm:$0xf]
    %v3021 = vld [vmem:[#allocation10 + $0x154] sm:$0xf]
    %v3022 = vld [vmem:[#allocation10 + $0x158] sm:$0xf]
    %v3023 = vld [vmem:[#allocation10 + $0x15c] sm:$0xf]
    %v3024 = vld [vmem:[#allocation10 + $0x160] sm:$0xf]
    %v3025 = vld [vmem:[#allocation10 + $0x164] sm:$0xf]
    %v3026 = vld [vmem:[#allocation10 + $0x168] sm:$0xf]
    %v3027 = vld [vmem:[#allocation10 + $0x16c] sm:$0xf]
    %v3028 = vld [vmem:[#allocation10 + $0x170] sm:$0xf]
    %v3029 = vld [vmem:[#allocation10 + $0x174] sm:$0xf]
    %v3030 = vld [vmem:[#allocation10 + $0x178] sm:$0xf]
    %v3031 = vld [vmem:[#allocation10 + $0x17c] sm:$0xf]
    %v3032 = vld [vmem:[#allocation10 + $0x180] sm:$0xf]
    %v3033 = vld [vmem:[#allocation10 + $0x184] sm:$0xf]
    %v3034 = vld [vmem:[#allocation10 + $0x188] sm:$0xf]
    %v3035 = vld [vmem:[#allocation10 + $0x18c] sm:$0xf]
    %v3036 = vld [vmem:[#allocation10 + $0x190] sm:$0xf]
    %v3037 = vld [vmem:[#allocation10 + $0x194] sm:$0xf]
    %v3038 = vld [vmem:[#allocation10 + $0x198] sm:$0xf]
    %v3039 = vld [vmem:[#allocation10 + $0x19c] sm:$0xf]
    %v3040 = vld [vmem:[#allocation10 + $0x1a0] sm:$0xf]
    %v3041 = vld [vmem:[#allocation10 + $0x1a4] sm:$0xf]
    %v3042 = vld [vmem:[#allocation10 + $0x1a8] sm:$0xf]
    %v3043 = vld [vmem:[#allocation10 + $0x1ac] sm:$0xf]
    %v3044 = vld [vmem:[#allocation10 + $0x1b0] sm:$0xf]
    %v3045 = vld [vmem:[#allocation10 + $0x1b4] sm:$0xf]
    %v3046 = vld [vmem:[#allocation10 + $0x1b8] sm:$0xf]
    %v3047 = vld [vmem:[#allocation10 + $0x1bc] sm:$0xf]
    %v3048 = vld [vmem:[#allocation10 + $0x1c0] sm:$0xf]
    %v3049 = vld [vmem:[#allocation10 + $0x1c4] sm:$0xf]
    %v3050 = vld [vmem:[#allocation10 + $0x1c8] sm:$0xf]
    %v3051 = vld [vmem:[#allocation10 + $0x1cc] sm:$0xf]
    %v3052 = vld [vmem:[#allocation10 + $0x1d0] sm:$0xf]
    %v3053 = vld [vmem:[#allocation10 + $0x1d4] sm:$0xf]
    %v3054 = vld [vmem:[#allocation10 + $0x1d8] sm:$0xf]
    %v3055 = vld [vmem:[#allocation10 + $0x1dc] sm:$0xf]
    %v3056 = vld [vmem:[#allocation10 + $0x1e0] sm:$0xf]
    %v3057 = vld [vmem:[#allocation10 + $0x1e4] sm:$0xf]
    %v3058 = vld [vmem:[#allocation10 + $0x1e8] sm:$0xf]
    %v3059 = vld [vmem:[#allocation10 + $0x1ec] sm:$0xf]
    %v3060 = vld [vmem:[#allocation10 + $0x1f0] sm:$0xf]
    %v3061 = vld [vmem:[#allocation10 + $0x1f4] sm:$0xf]
    %v3062 = vld [vmem:[#allocation10 + $0x1f8] sm:$0xf]
    %v3063 = vld [vmem:[#allocation10 + $0x1fc] sm:$0xf]
    %v3064 = vld [vmem:[#allocation10 + $0x200] sm:$0xf]
    %v3065 = vld [vmem:[#allocation10 + $0x204] sm:$0xf]
    %v3066 = vld [vmem:[#allocation10 + $0x208] sm:$0xf]
    %v3067 = vld [vmem:[#allocation10 + $0x20c] sm:$0xf]
    %v3068 = vld [vmem:[#allocation10 + $0x210] sm:$0xf]
    %v3069 = vld [vmem:[#allocation10 + $0x214] sm:$0xf]
    %v3070 = vld [vmem:[#allocation10 + $0x218] sm:$0xf]
    %v3071 = vld [vmem:[#allocation10 + $0x21c] sm:$0xf]
    %v3072 = vld [vmem:[#allocation10 + $0x220] sm:$0xf]
    %v3073 = vld [vmem:[#allocation10 + $0x224] sm:$0xf]
    %v3074 = vld [vmem:[#allocation10 + $0x228] sm:$0xf]
    %v3075 = vld [vmem:[#allocation10 + $0x22c] sm:$0xf]
    %v3076 = vld [vmem:[#allocation10 + $0x230] sm:$0xf]
    %v3077 = vld [vmem:[#allocation10 + $0x234] sm:$0xf]
    %v3078 = vld [vmem:[#allocation10 + $0x238] sm:$0xf]
    %v3079 = vld [vmem:[#allocation10 + $0x23c] sm:$0xf]
    %v3080 = vld [vmem:[#allocation11] sm:$0x1]
    %v3082 = vperm.slane %v3080, 0
    %v3228 = vunpack.c.l.b16 %v2936
    %v3229 = vunpack.c.l.b16 %v2937
    %v3230 = vunpack.c.l.b16 %v2938
    %v3231 = vunpack.c.l.b16 %v2939
    %v3232 = vunpack.c.l.b16 %v2940
    %v3233 = vunpack.c.l.b16 %v2941
    %v3234 = vunpack.c.l.b16 %v2942
    %v3235 = vunpack.c.l.b16 %v2943
    %v3236 = vunpack.c.l.b16 %v2944
    %v3237 = vunpack.c.l.b16 %v2945
    %v3238 = vunpack.c.l.b16 %v2946
    %v3239 = vunpack.c.l.b16 %v2947
    %v3240 = vunpack.c.l.b16 %v2948
    %v3241 = vunpack.c.l.b16 %v2949
    %v3242 = vunpack.c.l.b16 %v2950
    %v3243 = vunpack.c.l.b16 %v2951
    %v3244 = vunpack.c.l.b16 %v2952
    %v3245 = vunpack.c.l.b16 %v2953
    %v3246 = vunpack.c.l.b16 %v2954
    %v3247 = vunpack.c.l.b16 %v2955
    %v3248 = vunpack.c.l.b16 %v2956
    %v3249 = vunpack.c.l.b16 %v2957
    %v3250 = vunpack.c.l.b16 %v2958
    %v3251 = vunpack.c.l.b16 %v2959
    %v3252 = vunpack.c.l.b16 %v2960
    %v3253 = vunpack.c.l.b16 %v2961
    %v3254 = vunpack.c.l.b16 %v2962
    %v3255 = vunpack.c.l.b16 %v2963
    %v3256 = vunpack.c.l.b16 %v2964
    %v3257 = vunpack.c.l.b16 %v2965
    %v3258 = vunpack.c.l.b16 %v2966
    %v3259 = vunpack.c.l.b16 %v2967
    %v3260 = vunpack.c.l.b16 %v2968
    %v3261 = vunpack.c.l.b16 %v2969
    %v3262 = vunpack.c.l.b16 %v2970
    %v3263 = vunpack.c.l.b16 %v2971
    %v3264 = vunpack.c.l.b16 %v2972
    %v3265 = vunpack.c.l.b16 %v2973
    %v3266 = vunpack.c.l.b16 %v2974
    %v3267 = vunpack.c.l.b16 %v2975
    %v3268 = vunpack.c.l.b16 %v2976
    %v3269 = vunpack.c.l.b16 %v2977
    %v3270 = vunpack.c.l.b16 %v2978
    %v3271 = vunpack.c.l.b16 %v2979
    %v3272 = vunpack.c.l.b16 %v2980
    %v3273 = vunpack.c.l.b16 %v2981
    %v3274 = vunpack.c.l.b16 %v2982
    %v3275 = vunpack.c.l.b16 %v2983
    %v3276 = vunpack.c.l.b16 %v2984
    %v3277 = vunpack.c.l.b16 %v2985
    %v3278 = vunpack.c.l.b16 %v2986
    %v3279 = vunpack.c.l.b16 %v2987
    %v3280 = vunpack.c.l.b16 %v2988
    %v3281 = vunpack.c.l.b16 %v2989
    %v3282 = vunpack.c.l.b16 %v2990
    %v3283 = vunpack.c.l.b16 %v2991
    %v3284 = vunpack.c.l.b16 %v2992
    %v3285 = vunpack.c.l.b16 %v2993
    %v3286 = vunpack.c.l.b16 %v2994
    %v3287 = vunpack.c.l.b16 %v2995
    %v3288 = vunpack.c.l.b16 %v2996
    %v3289 = vunpack.c.l.b16 %v2997
    %v3290 = vunpack.c.l.b16 %v2998
    %v3291 = vunpack.c.l.b16 %v2999
    %v3292 = vunpack.c.l.b16 %v3000
    %v3293 = vunpack.c.l.b16 %v3001
    %v3294 = vunpack.c.l.b16 %v3002
    %v3295 = vunpack.c.l.b16 %v3003
    %v3296 = vunpack.c.l.b16 %v3004
    %v3297 = vunpack.c.l.b16 %v3005
    %v3298 = vunpack.c.l.b16 %v3006
    %v3299 = vunpack.c.l.b16 %v3007
    %v3300 = vunpack.c.l.b16 %v3008
    %v3301 = vunpack.c.l.b16 %v3009
    %v3302 = vunpack.c.l.b16 %v3010
    %v3303 = vunpack.c.l.b16 %v3011
    %v3304 = vunpack.c.l.b16 %v3012
    %v3305 = vunpack.c.l.b16 %v3013
    %v3306 = vunpack.c.l.b16 %v3014
    %v3307 = vunpack.c.l.b16 %v3015
    %v3308 = vunpack.c.l.b16 %v3016
    %v3309 = vunpack.c.l.b16 %v3017
    %v3310 = vunpack.c.l.b16 %v3018
    %v3311 = vunpack.c.l.b16 %v3019
    %v3312 = vunpack.c.l.b16 %v3020
    %v3313 = vunpack.c.l.b16 %v3021
    %v3314 = vunpack.c.l.b16 %v3022
    %v3315 = vunpack.c.l.b16 %v3023
    %v3316 = vunpack.c.l.b16 %v3024
    %v3317 = vunpack.c.l.b16 %v3025
    %v3318 = vunpack.c.l.b16 %v3026
    %v3319 = vunpack.c.l.b16 %v3027
    %v3320 = vunpack.c.l.b16 %v3028
    %v3321 = vunpack.c.l.b16 %v3029
    %v3322 = vunpack.c.l.b16 %v3030
    %v3323 = vunpack.c.l.b16 %v3031
    %v3324 = vunpack.c.l.b16 %v3032
    %v3325 = vunpack.c.l.b16 %v3033
    %v3326 = vunpack.c.l.b16 %v3034
    %v3327 = vunpack.c.l.b16 %v3035
    %v3328 = vunpack.c.l.b16 %v3036
    %v3329 = vunpack.c.l.b16 %v3037
    %v3330 = vunpack.c.l.b16 %v3038
    %v3331 = vunpack.c.l.b16 %v3039
    %v3332 = vunpack.c.l.b16 %v3040
    %v3333 = vunpack.c.l.b16 %v3041
    %v3334 = vunpack.c.l.b16 %v3042
    %v3335 = vunpack.c.l.b16 %v3043
    %v3336 = vunpack.c.l.b16 %v3044
    %v3337 = vunpack.c.l.b16 %v3045
    %v3338 = vunpack.c.l.b16 %v3046
    %v3339 = vunpack.c.l.b16 %v3047
    %v3340 = vunpack.c.l.b16 %v3048
    %v3341 = vunpack.c.l.b16 %v3049
    %v3342 = vunpack.c.l.b16 %v3050
    %v3343 = vunpack.c.l.b16 %v3051
    %v3344 = vunpack.c.l.b16 %v3052
    %v3345 = vunpack.c.l.b16 %v3053
    %v3346 = vunpack.c.l.b16 %v3054
    %v3347 = vunpack.c.l.b16 %v3055
    %v3348 = vunpack.c.l.b16 %v3056
    %v3349 = vunpack.c.l.b16 %v3057
    %v3350 = vunpack.c.l.b16 %v3058
    %v3351 = vunpack.c.l.b16 %v3059
    %v3352 = vunpack.c.l.b16 %v3060
    %v3353 = vunpack.c.l.b16 %v3061
    %v3354 = vunpack.c.l.b16 %v3062
    %v3355 = vunpack.c.l.b16 %v3063
    %v3356 = vunpack.c.l.b16 %v3064
    %v3357 = vunpack.c.l.b16 %v3065
    %v3358 = vunpack.c.l.b16 %v3066
    %v3359 = vunpack.c.l.b16 %v3067
    %v3360 = vunpack.c.l.b16 %v3068
    %v3361 = vunpack.c.l.b16 %v3069
    %v3362 = vunpack.c.l.b16 %v3070
    %v3363 = vunpack.c.l.b16 %v3071
    %v3364 = vunpack.c.l.b16 %v3072
    %v3365 = vunpack.c.l.b16 %v3073
    %v3366 = vunpack.c.l.b16 %v3074
    %v3367 = vunpack.c.l.b16 %v3075
    %v3368 = vunpack.c.l.b16 %v3076
    %v3369 = vunpack.c.l.b16 %v3077
    %v3370 = vunpack.c.l.b16 %v3078
    %v3371 = vunpack.c.l.b16 %v3079
    %v3372 = vpack.c.b16 %v3229, %v3228
    %v3373 = vpack.c.b16 %v3231, %v3230
    %v3374 = vpack.c.b16 %v3233, %v3232
    %v3375 = vpack.c.b16 %v3235, %v3234
    %v3376 = vpack.c.b16 %v3237, %v3236
    %v3377 = vpack.c.b16 %v3239, %v3238
    %v3378 = vpack.c.b16 %v3241, %v3240
    %v3379 = vpack.c.b16 %v3243, %v3242
    %v3380 = vpack.c.b16 %v3245, %v3244
    %v3381 = vpack.c.b16 %v3247, %v3246
    %v3382 = vpack.c.b16 %v3249, %v3248
    %v3383 = vpack.c.b16 %v3251, %v3250
    %v3384 = vpack.c.b16 %v3253, %v3252
    %v3385 = vpack.c.b16 %v3255, %v3254
    %v3386 = vpack.c.b16 %v3257, %v3256
    %v3387 = vpack.c.b16 %v3259, %v3258
    %v3388 = vpack.c.b16 %v3261, %v3260
    %v3389 = vpack.c.b16 %v3263, %v3262
    %v3390 = vpack.c.b16 %v3265, %v3264
    %v3391 = vpack.c.b16 %v3267, %v3266
    %v3392 = vpack.c.b16 %v3269, %v3268
    %v3393 = vpack.c.b16 %v3271, %v3270
    %v3394 = vpack.c.b16 %v3273, %v3272
    %v3395 = vpack.c.b16 %v3275, %v3274
    %v3396 = vpack.c.b16 %v3277, %v3276
    %v3397 = vpack.c.b16 %v3279, %v3278
    %v3398 = vpack.c.b16 %v3281, %v3280
    %v3399 = vpack.c.b16 %v3283, %v3282
    %v3400 = vpack.c.b16 %v3285, %v3284
    %v3401 = vpack.c.b16 %v3287, %v3286
    %v3402 = vpack.c.b16 %v3289, %v3288
    %v3403 = vpack.c.b16 %v3291, %v3290
    %v3404 = vpack.c.b16 %v3293, %v3292
    %v3405 = vpack.c.b16 %v3295, %v3294
    %v3406 = vpack.c.b16 %v3297, %v3296
    %v3407 = vpack.c.b16 %v3299, %v3298
    %v3408 = vpack.c.b16 %v3301, %v3300
    %v3409 = vpack.c.b16 %v3303, %v3302
    %v3410 = vpack.c.b16 %v3305, %v3304
    %v3411 = vpack.c.b16 %v3307, %v3306
    %v3412 = vpack.c.b16 %v3309, %v3308
    %v3413 = vpack.c.b16 %v3311, %v3310
    %v3414 = vpack.c.b16 %v3313, %v3312
    %v3415 = vpack.c.b16 %v3315, %v3314
    %v3416 = vpack.c.b16 %v3317, %v3316
    %v3417 = vpack.c.b16 %v3319, %v3318
    %v3418 = vpack.c.b16 %v3321, %v3320
    %v3419 = vpack.c.b16 %v3323, %v3322
    %v3420 = vpack.c.b16 %v3325, %v3324
    %v3421 = vpack.c.b16 %v3327, %v3326
    %v3422 = vpack.c.b16 %v3329, %v3328
    %v3423 = vpack.c.b16 %v3331, %v3330
    %v3424 = vpack.c.b16 %v3333, %v3332
    %v3425 = vpack.c.b16 %v3335, %v3334
    %v3426 = vpack.c.b16 %v3337, %v3336
    %v3427 = vpack.c.b16 %v3339, %v3338
    %v3428 = vpack.c.b16 %v3341, %v3340
    %v3429 = vpack.c.b16 %v3343, %v3342
    %v3430 = vpack.c.b16 %v3345, %v3344
    %v3431 = vpack.c.b16 %v3347, %v3346
    %v3432 = vpack.c.b16 %v3349, %v3348
    %v3433 = vpack.c.b16 %v3351, %v3350
    %v3434 = vpack.c.b16 %v3353, %v3352
    %v3435 = vpack.c.b16 %v3355, %v3354
    %v3436 = vpack.c.b16 %v3357, %v3356
    %v3437 = vpack.c.b16 %v3359, %v3358
    %v3438 = vpack.c.b16 %v3361, %v3360
    %v3439 = vpack.c.b16 %v3363, %v3362
    %v3440 = vpack.c.b16 %v3365, %v3364
    %v3441 = vpack.c.b16 %v3367, %v3366
    %v3442 = vpack.c.b16 %v3369, %v3368
    %v3443 = vpack.c.b16 %v3371, %v3370
    %3516 = vmatpush.bf16.msra.mxu0 %v3379
    %3517 = vmatpush.bf16.msra.mxu0 %v3378
    %3518 = vmatpush.bf16.msra.mxu0 %v3377
    %3519 = vmatpush.bf16.msra.mxu0 %v3376
    %3520 = vmatpush.bf16.msra.mxu0 %v3375
    %3521 = vmatpush.bf16.msra.mxu0 %v3374
    %3522 = vmatpush.bf16.msra.mxu0 %v3373
    %3523 = vmatpush.bf16.msra.mxu0 %v3372
    %3524 = vmatmul.bf16.gmra.mxu0 %v2927
    %v3525 = vpop.f32.mrf.mxu0
    %v3526 = vadd.f32 %v3082, %v3525
    %v3527 = vpop.f32.mrf.mxu0
    %3528 = vdwg.mxu0
    %3529 = vmatpush.bf16.msra.mxu0 %v3387
    %3530 = vmatpush.bf16.msra.mxu0 %v3386
    %3531 = vmatpush.bf16.msra.mxu0 %v3385
    %3532 = vmatpush.bf16.msra.mxu0 %v3384
    %3533 = vmatpush.bf16.msra.mxu0 %v3383
    %3534 = vmatpush.bf16.msra.mxu0 %v3382
    %3535 = vmatpush.bf16.msra.mxu0 %v3381
    %3536 = vmatpush.bf16.msra.mxu0 %v3380
    %3537 = vmatmul.bf16.gmra.mxu0 %v2928
    %v3538 = vpop.f32.mrf.mxu0
    %v3539 = vadd.f32 %v3526, %v3538
    %v3540 = vpop.f32.mrf.mxu0
    %3541 = vdwg.mxu0
    %3542 = vmatpush.bf16.msra.mxu0 %v3395
    %3543 = vmatpush.bf16.msra.mxu0 %v3394
    %3544 = vmatpush.bf16.msra.mxu0 %v3393
    %3545 = vmatpush.bf16.msra.mxu0 %v3392
    %3546 = vmatpush.bf16.msra.mxu0 %v3391
    %3547 = vmatpush.bf16.msra.mxu0 %v3390
    %3548 = vmatpush.bf16.msra.mxu0 %v3389
    %3549 = vmatpush.bf16.msra.mxu0 %v3388
    %3550 = vmatmul.bf16.gmra.mxu0 %v2929
    %v3551 = vpop.f32.mrf.mxu0
    %v3552 = vadd.f32 %v3539, %v3551
    %v3553 = vpop.f32.mrf.mxu0
    %3554 = vdwg.mxu0
    %3555 = vmatpush.bf16.msra.mxu0 %v3403
    %3556 = vmatpush.bf16.msra.mxu0 %v3402
    %3557 = vmatpush.bf16.msra.mxu0 %v3401
    %3558 = vmatpush.bf16.msra.mxu0 %v3400
    %3559 = vmatpush.bf16.msra.mxu0 %v3399
    %3560 = vmatpush.bf16.msra.mxu0 %v3398
    %3561 = vmatpush.bf16.msra.mxu0 %v3397
    %3562 = vmatpush.bf16.msra.mxu0 %v3396
    %3563 = vmatmul.bf16.gmra.mxu0 %v2930
    %v3564 = vpop.f32.mrf.mxu0
    %v3565 = vadd.f32 %v3552, %v3564
    %v3566 = vpop.f32.mrf.mxu0
    %3567 = vdwg.mxu0
    %3568 = vmatpush.bf16.msra.mxu0 %v3411
    %3569 = vmatpush.bf16.msra.mxu0 %v3410
    %3570 = vmatpush.bf16.msra.mxu0 %v3409
    %3571 = vmatpush.bf16.msra.mxu0 %v3408
    %3572 = vmatpush.bf16.msra.mxu0 %v3407
    %3573 = vmatpush.bf16.msra.mxu0 %v3406
    %3574 = vmatpush.bf16.msra.mxu0 %v3405
    %3575 = vmatpush.bf16.msra.mxu0 %v3404
    %3576 = vmatmul.bf16.gmra.mxu0 %v2931
    %v3577 = vpop.f32.mrf.mxu0
    %v3578 = vadd.f32 %v3565, %v3577
    %v3579 = vpop.f32.mrf.mxu0
    %3580 = vdwg.mxu0
    %3581 = vmatpush.bf16.msra.mxu0 %v3419
    %3582 = vmatpush.bf16.msra.mxu0 %v3418
    %3583 = vmatpush.bf16.msra.mxu0 %v3417
    %3584 = vmatpush.bf16.msra.mxu0 %v3416
    %3585 = vmatpush.bf16.msra.mxu0 %v3415
    %3586 = vmatpush.bf16.msra.mxu0 %v3414
    %3587 = vmatpush.bf16.msra.mxu0 %v3413
    %3588 = vmatpush.bf16.msra.mxu0 %v3412
    %3589 = vmatmul.bf16.gmra.mxu0 %v2932
    %v3590 = vpop.f32.mrf.mxu0
    %v3591 = vadd.f32 %v3578, %v3590
    %v3592 = vpop.f32.mrf.mxu0
    %3593 = vdwg.mxu0
    %3594 = vmatpush.bf16.msra.mxu0 %v3427
    %3595 = vmatpush.bf16.msra.mxu0 %v3426
    %3596 = vmatpush.bf16.msra.mxu0 %v3425
    %3597 = vmatpush.bf16.msra.mxu0 %v3424
    %3598 = vmatpush.bf16.msra.mxu0 %v3423
    %3599 = vmatpush.bf16.msra.mxu0 %v3422
    %3600 = vmatpush.bf16.msra.mxu0 %v3421
    %3601 = vmatpush.bf16.msra.mxu0 %v3420
    %3602 = vmatmul.bf16.gmra.mxu0 %v2933
    %v3603 = vpop.f32.mrf.mxu0
    %v3604 = vadd.f32 %v3591, %v3603
    %v3605 = vpop.f32.mrf.mxu0
    %3606 = vdwg.mxu0
    %3607 = vmatpush.bf16.msra.mxu0 %v3435
    %3608 = vmatpush.bf16.msra.mxu0 %v3434
    %3609 = vmatpush.bf16.msra.mxu0 %v3433
    %3610 = vmatpush.bf16.msra.mxu0 %v3432
    %3611 = vmatpush.bf16.msra.mxu0 %v3431
    %3612 = vmatpush.bf16.msra.mxu0 %v3430
    %3613 = vmatpush.bf16.msra.mxu0 %v3429
    %3614 = vmatpush.bf16.msra.mxu0 %v3428
    %3615 = vmatmul.bf16.gmra.mxu0 %v2934
    %v3616 = vpop.f32.mrf.mxu0
    %v3617 = vadd.f32 %v3604, %v3616
    %v3618 = vpop.f32.mrf.mxu0
    %3619 = vdwg.mxu0
    %3620 = vmatpush.bf16.msra.mxu0 %v3443
    %3621 = vmatpush.bf16.msra.mxu0 %v3442
    %3622 = vmatpush.bf16.msra.mxu0 %v3441
    %3623 = vmatpush.bf16.msra.mxu0 %v3440
    %3624 = vmatpush.bf16.msra.mxu0 %v3439
    %3625 = vmatpush.bf16.msra.mxu0 %v3438
    %3626 = vmatpush.bf16.msra.mxu0 %v3437
    %3627 = vmatpush.bf16.msra.mxu0 %v3436
    %3628 = vmatmul.bf16.gmra.mxu0 %v2935
    %v3629 = vpop.f32.mrf.mxu0
    %v3630 = vadd.f32 %v3617, %v3629
    %v3631 = vpop.f32.mrf.mxu0
    %3632 = vdwg.mxu0
    %v3633 = vmax.f32 %v3630, 0.0
    %v3634 = vld [vmem:[#allocation13] sm:$0x1]
    %s3635 = sld [smem:[#allocation2]]
    %v3636 = vstv %s3635
    %3637 = vmatpush.xpose.msra.mxu0 0.0
    %3638 = vmatpush.xpose.msra.mxu0 0.0
    %3639 = vmatpush.xpose.msra.mxu0 0.0
    %3640 = vmatpush.xpose.msra.mxu0 0.0
    %3641 = vmatpush.xpose.msra.mxu0 0.0
    %3642 = vmatpush.xpose.msra.mxu0 0.0
    %3643 = vmatpush.xpose.msra.mxu0 0.0
    %3644 = vmatpush.xpose.msra.mxu0 0.0
    %3645 = vmatpush.xpose.msra.mxu0 0.0
    %3646 = vmatpush.xpose.msra.mxu0 0.0
    %3647 = vmatpush.xpose.msra.mxu0 0.0
    %3648 = vmatpush.xpose.msra.mxu0 0.0
    %3649 = vmatpush.xpose.msra.mxu0 0.0
    %3650 = vmatpush.xpose.msra.mxu0 0.0
    %3651 = vmatpush.xpose.msra.mxu0 0.0
    %3652 = vmatpush.xpose.msra.mxu0 %v3633
    %3653 = vmatmul.f32.gmra.mxu0 %v3634
    %v3654 = vpop.f32.mrf.mxu0
    %v3655 = vadd.f32 %v3636, %v3654
    %3656 = vdwg.mxu0
    %vm3657 = vcmask 57344
    %3658 = vst.msk [vmem:[%s9] sm:$0x1] %vm3657, %v3655
    // Predicated region
    $region66: #{convnet_forward.1} parent=1 // pred_check
      _
    $region67: #{convnet_forward.1} parent=1 // pred_check_branch
      %3660 = sbr.rel (0) target = $region69
    $region68: #{convnet_forward.1} parent=1 // pred_region
      _
    $region69: #{convnet_forward.1} parent=1 // pred_fallthru
      _
    // Predicated region
    $region70: #{convnet_forward.1} parent=1 // pred_check
      _
    $region71: #{convnet_forward.1} parent=1 // pred_check_branch
      %3662 = sbr.rel (0) target = $region73
    $region72: #{convnet_forward.1} parent=1 // pred_region
      _
    $region73: #{convnet_forward.1} parent=1 // pred_fallthru
      _
    %3663 = vsyncpa [#allocation4], 1
    %3664 = vsyncpa [#allocation6], 1
    %3665 = vsyncpa [#allocation9], 1
    %3666 = vsyncpa [#allocation12], 1

</llo_original>
